<compile_context>
chip_gen: v7x
topology: tpu7x:2x2x1
jax: 0.10.0
libtpu: 0.0.40
codegen_flags: <defaults>
</compile_context>

<pallas_src>
import functools

import jax
import jax.numpy as jnp
from jax.experimental import pallas as pl
from jax.experimental.pallas import tpu as pltpu


# ---------------- fused MSP kernel ------------------------------------------

def _msp_kernel(x_ref, w14_ref, s14_ref, b14_ref, w58_ref, s58_ref, b58_ref,
                woutx_ref, woutb_ref, sout_ref, bout_ref,
                o_ref, xhp_ref, col_ref, *, H, W, K):
    # x_ref:    (1, C, H*W)  f32  one batch element, channels on sublanes,
    #                             flattened spatial (row-major) on lanes
    # w14_ref:  (4*inter, K*K*C)    bf16  conv1..conv4 embedded in 7x7 taps
    # s14/b14:  (4*inter, 1)        f32   folded BN scale/bias (branches 1-4)
    # w58_ref:  (4*inter, 4*inter)  bf16  block-diagonal conv5..conv8
    # woutx/woutb: (Cout, C)        bf16  out-conv weights for [x | x1..x4]
    # sout/bout:(Cout, 1)           f32
    # o_ref:    (1, Cout, H*W)
    # xhp_ref:  (C, (H+K-1)*W + K-1) f32 scratch  (H-padded row-flat input)
    # col_ref:  (K*K*C, H*W)        bf16 scratch  (im2col)
    C = x_ref.shape[1]
    HW = H * W
    p = (K - 1) // 2
    off = p * W + p                       # guard of p rows + p flat elements
    bf16 = col_ref.dtype

    x = x_ref[0]                          # (C, HW) f32

    # ---- in-kernel zero padding (no jnp.pad / extra HBM pass) ----
    xhp_ref[...] = jnp.zeros_like(xhp_ref)
    xhp_ref[:, off:off + HW] = x

    # ---- im2col: K*K lane-shifted, column-masked taps ----
    w_col = jax.lax.broadcasted_iota(jnp.int32, (1, HW), 1) % W
    for dh in range(K):
        for dw in range(K):
            s = dh * W + dw
            xs = xhp_ref[:, s:s + HW]     # (C, HW), static lane-offset slice
            lo, hi = p - dw, W + p - dw   # valid output columns for this tap
            if lo > 0 or hi < W:
                valid = (w_col >= lo) & (w_col < hi)
                xs = jnp.where(valid, xs, 0.0)
            tap = dh * K + dw
            col_ref[tap * C:(tap + 1) * C, :] = xs.astype(bf16)

    # ---- conv1..conv4 (1/3/5/7, pad 0/1/2/3) as ONE MXU matmul + BN + ReLU ----
    acc14 = jnp.dot(w14_ref[...], col_ref[...],
                    preferred_element_type=jnp.float32)        # (4*inter, HW)
    b_stack = jnp.maximum(acc14 * s14_ref[...] + b14_ref[...], 0.0)

    # ---- conv5..conv8 (block-diagonal 1x1) + BN + ReLU ----
    acc58 = jnp.dot(w58_ref[...], b_stack.astype(bf16),
                    preferred_element_type=jnp.float32)        # (4*inter, HW)
    x_stack = jnp.maximum(acc58 * s58_ref[...] + b58_ref[...], 0.0)

    # ---- out 1x1 conv over concat([x, x1..x4]) : split matmul, no concat ----
    acc_out = (jnp.dot(woutx_ref[...], x.astype(bf16),
                       preferred_element_type=jnp.float32)
               + jnp.dot(woutb_ref[...], x_stack.astype(bf16),
                         preferred_element_type=jnp.float32))  # (Cout, HW)
    y = jnp.maximum(acc_out * sout_ref[...] + bout_ref[...], 0.0)
    o_ref[0] = y.astype(o_ref.dtype)


def multiscale_pyramid_forward(x_nchw, folded):
    """Fused MSP forward. x_nchw: (N, C, H, W) f32 -> (N, Cout, H, W) f32."""
    N, C, H, W = x_nchw.shape
    inter = C // 4
    K = 7
    HW = H * W
    L = (H + K - 1) * W + (K - 1)
    out_c = folded["sout"].shape[0]
    x_flat = x_nchw.reshape(N, C, HW)     # free: NCHW row-major == (N, C, H*W)

    kernel = functools.partial(_msp_kernel, H=H, W=W, K=K)
    full = lambda n: (0, 0)
    out = pl.pallas_call(
        kernel,
        out_shape=jax.ShapeDtypeStruct((N, out_c, HW), x_nchw.dtype),
        grid_spec=pltpu.PrefetchScalarGridSpec(
            num_scalar_prefetch=0,
            grid=(N,),
            in_specs=[
                pl.BlockSpec((1, C, HW), lambda n: (n, 0, 0)),        # x
                pl.BlockSpec((4 * inter, K * K * C), full),           # w14
                pl.BlockSpec((4 * inter, 1), full),                   # s14
                pl.BlockSpec((4 * inter, 1), full),                   # b14
                pl.BlockSpec((4 * inter, 4 * inter), full),           # w58
                pl.BlockSpec((4 * inter, 1), full),                   # s58
                pl.BlockSpec((4 * inter, 1), full),                   # b58
                pl.BlockSpec((out_c, C), full),                       # wout_x
                pl.BlockSpec((out_c, C), full),                       # wout_b
                pl.BlockSpec((out_c, 1), full),                       # sout
                pl.BlockSpec((out_c, 1), full),                       # bout
            ],
            out_specs=pl.BlockSpec((1, out_c, HW), lambda n: (n, 0, 0)),
            scratch_shapes=[
                pltpu.VMEM((C, L), jnp.float32),                      # padded x
                pltpu.VMEM((K * K * C, HW), jnp.bfloat16),            # im2col
            ],
        ),
        compiler_params=pltpu.CompilerParams(
            dimension_semantics=("parallel",)),
    )(x_flat, folded["w14"], folded["s14"], folded["b14"],
      folded["w58"], folded["s58"], folded["b58"],
      folded["wout_x"], folded["wout_b"], folded["sout"], folded["bout"])
    return out.reshape(N, out_c, H, W)


# ---------------- parameter construction (deterministic) --------------------

def make_cbr_params(key, cin, cout, k):
    kw, kg, kb, km, kv = jax.random.split(key, 5)
    w = 0.1 * jax.random.normal(kw, (k, k, cin, cout), jnp.float32)   # HWIO
    gamma = 1.0 + 0.1 * jax.random.normal(kg, (cout,), jnp.float32)
    beta = 0.1 * jax.random.normal(kb, (cout,), jnp.float32)
    mean = 0.1 * jax.random.normal(km, (cout,), jnp.float32)
    var = jnp.abs(jax.random.normal(kv, (cout,), jnp.float32)) + 0.5
    eps = 1e-5
    scale = gamma * jax.lax.rsqrt(var + eps)      # folded eval-mode BN
    bias = beta - mean * scale
    return (w, scale, bias)


def make_msp_params(key, in_channels, out_channels):
    inter = in_channels // 4
    keys = jax.random.split(key, 9)
    return {
        "conv1": make_cbr_params(keys[0], in_channels, inter, 1),
        "conv2": make_cbr_params(keys[1], in_channels, inter, 3),
        "conv3": make_cbr_params(keys[2], in_channels, inter, 5),
        "conv4": make_cbr_params(keys[3], in_channels, inter, 7),
        "conv5": make_cbr_params(keys[4], inter, inter, 1),
        "conv6": make_cbr_params(keys[5], inter, inter, 1),
        "conv7": make_cbr_params(keys[6], inter, inter, 1),
        "conv8": make_cbr_params(keys[7], inter, inter, 1),
        "out":   make_cbr_params(keys[8], in_channels * 2, out_channels, 1),
    }


def fold_msp_params(params, in_channels, out_channels):
    """Assemble the fused weight layout used by the kernel (done once)."""
    C = in_channels
    inter = C // 4
    K, p = 7, 3

    # conv1..conv4 embedded into a (4*inter, 49*C) 7x7-tap matrix.
    w14 = jnp.zeros((4 * inter, K * K * C), jnp.float32)
    s14, b14 = [], []
    for bi, name in enumerate(["conv1", "conv2", "conv3", "conv4"]):
        w, scale, bias = params[name]
        k = w.shape[0]
        o = p - (k - 1) // 2
        for kh in range(k):
            for kw in range(k):
                tap = (kh + o) * K + (kw + o)
                blk = w[kh, kw].T                           # (inter, C)
                w14 = w14.at[bi * inter:(bi + 1) * inter,
                             tap * C:(tap + 1) * C].set(blk)
        s14.append(scale)
        b14.append(bias)
    s14 = jnp.concatenate(s14).reshape(4 * inter, 1)
    b14 = jnp.concatenate(b14).reshape(4 * inter, 1)

    # conv5..conv8 as a block-diagonal (4*inter, 4*inter) 1x1 matrix.
    w58 = jnp.zeros((4 * inter, 4 * inter), jnp.float32)
    s58, b58 = [], []
    for bi, name in enumerate(["conv5", "conv6", "conv7", "conv8"]):
        w, scale, bias = params[name]
        w58 = w58.at[bi * inter:(bi + 1) * inter,
                     bi * inter:(bi + 1) * inter].set(w[0, 0].T)
        s58.append(scale)
        b58.append(bias)
    s58 = jnp.concatenate(s58).reshape(4 * inter, 1)
    b58 = jnp.concatenate(b58).reshape(4 * inter, 1)

    # out conv split over [x | x1..x4].
    w_out, scale_out, bias_out = params["out"]
    wout = w_out[0, 0].T                                    # (Cout, 2C)
    bf = jnp.bfloat16
    return dict(
        w14=w14.astype(bf), s14=s14, b14=b14,
        w58=w58.astype(bf), s58=s58, b58=b58,
        wout_x=wout[:, :C].astype(bf), wout_b=wout[:, C:].astype(bf),
        sout=scale_out.reshape(out_channels, 1),
        bout=bias_out.reshape(out_channels, 1))


# ---------------- pure-JAX reference (for verification) ---------------------

def _ref_cbr(x, w, scale, bias, padding=0, cast=None):
    if cast is not None:                       # match kernel's bf16 MXU operands
        x = x.astype(cast)
        w = w.astype(cast)
    y = jax.lax.conv_general_dilated(
        x, w, window_strides=(1, 1),
        padding=[(padding, padding), (padding, padding)],
        dimension_numbers=("NHWC", "HWIO", "NHWC"),
        preferred_element_type=jnp.float32)
    return jnp.maximum(y * scale + bias, 0.0)


def _ref_forward(x_nchw, params, cast=None):
    x = jnp.transpose(x_nchw, (0, 2, 3, 1))
    b1 = _ref_cbr(x, *params["conv1"], padding=0, cast=cast)
    b2 = _ref_cbr(x, *params["conv2"], padding=1, cast=cast)
    b3 = _ref_cbr(x, *params["conv3"], padding=2, cast=cast)
    b4 = _ref_cbr(x, *params["conv4"], padding=3, cast=cast)
    x1 = _ref_cbr(b1, *params["conv5"], padding=0, cast=cast)
    x2 = _ref_cbr(b2, *params["conv6"], padding=0, cast=cast)
    x3 = _ref_cbr(b3, *params["conv7"], padding=0, cast=cast)
    x4 = _ref_cbr(b4, *params["conv8"], padding=0, cast=cast)
    cat = jnp.concatenate([x, x1, x2, x3, x4], axis=-1)
    y = _ref_cbr(cat, *params["out"], padding=0, cast=cast)
    return jnp.transpose(y, (0, 3, 1, 2))


if __name__ == "__main__":
    key = jax.random.PRNGKey(0)
    kx, kp = jax.random.split(key)

    N, C, H, W = 2, 16, 16, 16             # in_channels=16 -> inter_channels=4
    OUT_C = 16
    x = jax.random.normal(kx, (N, C, H, W), jnp.float32)   # NCHW like PyTorch
    params = make_msp_params(kp, C, OUT_C)
    folded = fold_msp_params(params, C, OUT_C)

    fwd = jax.jit(multiscale_pyramid_forward)
    out = jax.block_until_ready(fwd(x, folded))
    assert out.shape == (N, OUT_C, H, W), out.shape

    # Precision-matched reference (bf16 MXU operands, f32 accumulation):
    # validates weight embedding, im2col shifts/masks and fusion exactly.
    ref_bf = jax.block_until_ready(_ref_forward(x, params, cast=jnp.bfloat16))
    err_bf = float(jnp.max(jnp.abs(out - ref_bf)))
    assert jnp.allclose(out, ref_bf, rtol=1e-2, atol=1e-2), err_bf

    # Full-f32 module reference: difference is bf16 operand rounding only.
    ref_f32 = jax.block_until_ready(_ref_forward(x, params, cast=None))
    err_f32 = float(jnp.max(jnp.abs(out - ref_f32)))
    assert jnp.allclose(out, ref_f32, rtol=1e-1, atol=2e-1), err_f32

    print("KERNEL_OK")
</pallas_src>

<mosaic_0001>
module attributes {stable_mosaic.version = 11 : i64} {
  func.func @_msp_kernel(%arg0: i32, %arg1: memref<1x16x256xf32, #tpu.memory_space<vmem>>, %arg2: memref<16x784xbf16, #tpu.memory_space<vmem>>, %arg3: memref<16x1xf32, #tpu.memory_space<vmem>>, %arg4: memref<16x1xf32, #tpu.memory_space<vmem>>, %arg5: memref<16x16xbf16, #tpu.memory_space<vmem>>, %arg6: memref<16x1xf32, #tpu.memory_space<vmem>>, %arg7: memref<16x1xf32, #tpu.memory_space<vmem>>, %arg8: memref<16x16xbf16, #tpu.memory_space<vmem>>, %arg9: memref<16x16xbf16, #tpu.memory_space<vmem>>, %arg10: memref<16x1xf32, #tpu.memory_space<vmem>>, %arg11: memref<16x1xf32, #tpu.memory_space<vmem>>, %arg12: memref<1x16x256xf32, #tpu.memory_space<vmem>>, %arg13: memref<16x358xf32, #tpu.memory_space<vmem>>, %arg14: memref<784x256xbf16, #tpu.memory_space<vmem>>) attributes {dimension_semantics = [#tpu.dimension_semantics<parallel>], iteration_bounds = array<i64: 2>, scalar_prefetch = 0 : i64, scratch_operands = 2 : i64, tpu.core_type = #tpu.core_type<tc>, window_params = [{transform_indices = @transform_0, window_bounds = array<i64: 1, 16, 256>}, {pipeline_mode = #tpu.pipeline_mode<synchronous>, transform_indices = @transform_1, window_bounds = array<i64: 16, 784>}, {pipeline_mode = #tpu.pipeline_mode<synchronous>, transform_indices = @transform_2, window_bounds = array<i64: 16, 1>}, {pipeline_mode = #tpu.pipeline_mode<synchronous>, transform_indices = @transform_3, window_bounds = array<i64: 16, 1>}, {pipeline_mode = #tpu.pipeline_mode<synchronous>, transform_indices = @transform_4, window_bounds = array<i64: 16, 16>}, {pipeline_mode = #tpu.pipeline_mode<synchronous>, transform_indices = @transform_5, window_bounds = array<i64: 16, 1>}, {pipeline_mode = #tpu.pipeline_mode<synchronous>, transform_indices = @transform_6, window_bounds = array<i64: 16, 1>}, {pipeline_mode = #tpu.pipeline_mode<synchronous>, transform_indices = @transform_7, window_bounds = array<i64: 16, 16>}, {pipeline_mode = #tpu.pipeline_mode<synchronous>, transform_indices = @transform_8, window_bounds = array<i64: 16, 16>}, {pipeline_mode = #tpu.pipeline_mode<synchronous>, transform_indices = @transform_9, window_bounds = array<i64: 16, 1>}, {pipeline_mode = #tpu.pipeline_mode<synchronous>, transform_indices = @transform_10, window_bounds = array<i64: 16, 1>}, {transform_indices = @transform_11, window_bounds = array<i64: 1, 16, 256>}]} {
    %c0 = arith.constant 0 : index
    %c0_0 = arith.constant 0 : index
    %c0_1 = arith.constant 0 : index
    %0 = vector.load %arg1[%c0, %c0_0, %c0_1] : memref<1x16x256xf32, #tpu.memory_space<vmem>>, vector<1x16x256xf32>
    %1 = vector.shape_cast %0 : vector<1x16x256xf32> to vector<16x256xf32>
    %cst = arith.constant 0.000000e+00 : f32
    %2 = vector.broadcast %cst : f32 to vector<16x358xf32>
    %c0_2 = arith.constant 0 : index
    %c0_3 = arith.constant 0 : index
    %3 = vector.load %arg13[%c0_2, %c0_3] : memref<16x358xf32, #tpu.memory_space<vmem>>, vector<16x358xf32>
    tpu.vector_store %arg13[%c0_2, %c0_3], %2 {strides = array<i32>} : memref<16x358xf32, #tpu.memory_space<vmem>>, vector<16x358xf32>,
    %c0_4 = arith.constant 0 : index
    %c51 = arith.constant 51 : index
    %4 = vector.load %arg13[%c0_4, %c51] : memref<16x358xf32, #tpu.memory_space<vmem>>, vector<16x256xf32>
    tpu.vector_store %arg13[%c0_4, %c51], %1 {strides = array<i32>} : memref<16x358xf32, #tpu.memory_space<vmem>>, vector<16x256xf32>,
    %5 = tpu.iota {dimensions = array<i32: 1>} : vector<1x256xi32>
    %c16_i32 = arith.constant 16 : i32
    %c0_i32 = arith.constant 0 : i32
    %6 = arith.cmpi eq, %c16_i32, %c0_i32 : i32
    %c1_i32 = arith.constant 1 : i32
    %7 = arith.select %6, %c1_i32, %c16_i32 : i32
    %8 = vector.broadcast %7 : i32 to vector<1x256xi32>
    %9 = arith.remsi %5, %8 : vector<1x256xi32>
    %c0_i32_5 = arith.constant 0 : i32
    %10 = vector.broadcast %c0_i32_5 : i32 to vector<1x256xi32>
    %11 = arith.cmpi ne, %9, %10 : vector<1x256xi32>
    %c0_i32_6 = arith.constant 0 : i32
    %12 = vector.broadcast %c0_i32_6 : i32 to vector<1x256xi32>
    %13 = arith.cmpi slt, %9, %12 : vector<1x256xi32>
    %c0_i32_7 = arith.constant 0 : i32
    %14 = arith.cmpi slt, %7, %c0_i32_7 : i32
    %15 = vector.broadcast %14 : i1 to vector<1x256xi1>
    %16 = vector.broadcast %15 : vector<1x256xi1> to vector<1x256xi1>
    %17 = arith.xori %13, %16 : vector<1x256xi1>
    %18 = arith.andi %17, %11 : vector<1x256xi1>
    %19 = vector.broadcast %7 : i32 to vector<1x256xi32>
    %20 = arith.addi %9, %19 : vector<1x256xi32>
    %21 = arith.select %18, %20, %9 : vector<1x256xi1>, vector<1x256xi32>
    %c0_8 = arith.constant 0 : index
    %c0_9 = arith.constant 0 : index
    %22 = vector.load %arg13[%c0_8, %c0_9] : memref<16x358xf32, #tpu.memory_space<vmem>>, vector<16x256xf32>
    %c3_i32 = arith.constant 3 : i32
    %23 = vector.broadcast %c3_i32 : i32 to vector<1x256xi32>
    %24 = arith.cmpi sge, %21, %23 : vector<1x256xi32>
    %c19_i32 = arith.constant 19 : i32
    %25 = vector.broadcast %c19_i32 : i32 to vector<1x256xi32>
    %26 = arith.cmpi slt, %21, %25 : vector<1x256xi32>
    %27 = arith.andi %24, %26 : vector<1x256xi1>
    %cst_10 = arith.constant 0.000000e+00 : f32
    %28 = vector.shape_cast %27 : vector<1x256xi1> to vector<1x256xi1>
    %29 = vector.broadcast %28 : vector<1x256xi1> to vector<16x256xi1>
    %30 = vector.broadcast %cst_10 : f32 to vector<16x256xf32>
    %31 = arith.select %29, %22, %30 : vector<16x256xi1>, vector<16x256xf32>
    %32 = arith.truncf %31 : vector<16x256xf32> to vector<16x256xbf16>
    %c0_11 = arith.constant 0 : index
    %c0_12 = arith.constant 0 : index
    %33 = vector.load %arg14[%c0_11, %c0_12] : memref<784x256xbf16, #tpu.memory_space<vmem>>, vector<16x256xbf16>
    tpu.vector_store %arg14[%c0_11, %c0_12], %32 {strides = array<i32>} : memref<784x256xbf16, #tpu.memory_space<vmem>>, vector<16x256xbf16>,
    %c0_13 = arith.constant 0 : index
    %c1 = arith.constant 1 : index
    %34 = vector.load %arg13[%c0_13, %c1] : memref<16x358xf32, #tpu.memory_space<vmem>>, vector<16x256xf32>
    %c2_i32 = arith.constant 2 : i32
    %35 = vector.broadcast %c2_i32 : i32 to vector<1x256xi32>
    %36 = arith.cmpi sge, %21, %35 : vector<1x256xi32>
    %c18_i32 = arith.constant 18 : i32
    %37 = vector.broadcast %c18_i32 : i32 to vector<1x256xi32>
    %38 = arith.cmpi slt, %21, %37 : vector<1x256xi32>
    %39 = arith.andi %36, %38 : vector<1x256xi1>
    %cst_14 = arith.constant 0.000000e+00 : f32
    %40 = vector.shape_cast %39 : vector<1x256xi1> to vector<1x256xi1>
    %41 = vector.broadcast %40 : vector<1x256xi1> to vector<16x256xi1>
    %42 = vector.broadcast %cst_14 : f32 to vector<16x256xf32>
    %43 = arith.select %41, %34, %42 : vector<16x256xi1>, vector<16x256xf32>
    %44 = arith.truncf %43 : vector<16x256xf32> to vector<16x256xbf16>
    %c16 = arith.constant 16 : index
    %c0_15 = arith.constant 0 : index
    %45 = vector.load %arg14[%c16, %c0_15] : memref<784x256xbf16, #tpu.memory_space<vmem>>, vector<16x256xbf16>
    tpu.vector_store %arg14[%c16, %c0_15], %44 {strides = array<i32>} : memref<784x256xbf16, #tpu.memory_space<vmem>>, vector<16x256xbf16>,
    %c0_16 = arith.constant 0 : index
    %c2 = arith.constant 2 : index
    %46 = vector.load %arg13[%c0_16, %c2] : memref<16x358xf32, #tpu.memory_space<vmem>>, vector<16x256xf32>
    %c1_i32_17 = arith.constant 1 : i32
    %47 = vector.broadcast %c1_i32_17 : i32 to vector<1x256xi32>
    %48 = arith.cmpi sge, %21, %47 : vector<1x256xi32>
    %c17_i32 = arith.constant 17 : i32
    %49 = vector.broadcast %c17_i32 : i32 to vector<1x256xi32>
    %50 = arith.cmpi slt, %21, %49 : vector<1x256xi32>
    %51 = arith.andi %48, %50 : vector<1x256xi1>
    %cst_18 = arith.constant 0.000000e+00 : f32
    %52 = vector.shape_cast %51 : vector<1x256xi1> to vector<1x256xi1>
    %53 = vector.broadcast %52 : vector<1x256xi1> to vector<16x256xi1>
    %54 = vector.broadcast %cst_18 : f32 to vector<16x256xf32>
    %55 = arith.select %53, %46, %54 : vector<16x256xi1>, vector<16x256xf32>
    %56 = arith.truncf %55 : vector<16x256xf32> to vector<16x256xbf16>
    %c32 = arith.constant 32 : index
    %c0_19 = arith.constant 0 : index
    %57 = vector.load %arg14[%c32, %c0_19] : memref<784x256xbf16, #tpu.memory_space<vmem>>, vector<16x256xbf16>
    tpu.vector_store %arg14[%c32, %c0_19], %56 {strides = array<i32>} : memref<784x256xbf16, #tpu.memory_space<vmem>>, vector<16x256xbf16>,
    %c0_20 = arith.constant 0 : index
    %c3 = arith.constant 3 : index
    %58 = vector.load %arg13[%c0_20, %c3] : memref<16x358xf32, #tpu.memory_space<vmem>>, vector<16x256xf32>
    %59 = arith.truncf %58 : vector<16x256xf32> to vector<16x256xbf16>
    %c48 = arith.constant 48 : index
    %c0_21 = arith.constant 0 : index
    %60 = vector.load %arg14[%c48, %c0_21] : memref<784x256xbf16, #tpu.memory_space<vmem>>, vector<16x256xbf16>
    tpu.vector_store %arg14[%c48, %c0_21], %59 {strides = array<i32>} : memref<784x256xbf16, #tpu.memory_space<vmem>>, vector<16x256xbf16>,
    %c0_22 = arith.constant 0 : index
    %c4 = arith.constant 4 : index
    %61 = vector.load %arg13[%c0_22, %c4] : memref<16x358xf32, #tpu.memory_space<vmem>>, vector<16x256xf32>
    %c-1_i32 = arith.constant -1 : i32
    %62 = vector.broadcast %c-1_i32 : i32 to vector<1x256xi32>
    %63 = arith.cmpi sge, %21, %62 : vector<1x256xi32>
    %c15_i32 = arith.constant 15 : i32
    %64 = vector.broadcast %c15_i32 : i32 to vector<1x256xi32>
    %65 = arith.cmpi slt, %21, %64 : vector<1x256xi32>
    %66 = arith.andi %63, %65 : vector<1x256xi1>
    %cst_23 = arith.constant 0.000000e+00 : f32
    %67 = vector.shape_cast %66 : vector<1x256xi1> to vector<1x256xi1>
    %68 = vector.broadcast %67 : vector<1x256xi1> to vector<16x256xi1>
    %69 = vector.broadcast %cst_23 : f32 to vector<16x256xf32>
    %70 = arith.select %68, %61, %69 : vector<16x256xi1>, vector<16x256xf32>
    %71 = arith.truncf %70 : vector<16x256xf32> to vector<16x256xbf16>
    %c64 = arith.constant 64 : index
    %c0_24 = arith.constant 0 : index
    %72 = vector.load %arg14[%c64, %c0_24] : memref<784x256xbf16, #tpu.memory_space<vmem>>, vector<16x256xbf16>
    tpu.vector_store %arg14[%c64, %c0_24], %71 {strides = array<i32>} : memref<784x256xbf16, #tpu.memory_space<vmem>>, vector<16x256xbf16>,
    %c0_25 = arith.constant 0 : index
    %c5 = arith.constant 5 : index
    %73 = vector.load %arg13[%c0_25, %c5] : memref<16x358xf32, #tpu.memory_space<vmem>>, vector<16x256xf32>
    %c-2_i32 = arith.constant -2 : i32
    %74 = vector.broadcast %c-2_i32 : i32 to vector<1x256xi32>
    %75 = arith.cmpi sge, %21, %74 : vector<1x256xi32>
    %c14_i32 = arith.constant 14 : i32
    %76 = vector.broadcast %c14_i32 : i32 to vector<1x256xi32>
    %77 = arith.cmpi slt, %21, %76 : vector<1x256xi32>
    %78 = arith.andi %75, %77 : vector<1x256xi1>
    %cst_26 = arith.constant 0.000000e+00 : f32
    %79 = vector.shape_cast %78 : vector<1x256xi1> to vector<1x256xi1>
    %80 = vector.broadcast %79 : vector<1x256xi1> to vector<16x256xi1>
    %81 = vector.broadcast %cst_26 : f32 to vector<16x256xf32>
    %82 = arith.select %80, %73, %81 : vector<16x256xi1>, vector<16x256xf32>
    %83 = arith.truncf %82 : vector<16x256xf32> to vector<16x256xbf16>
    %c80 = arith.constant 80 : index
    %c0_27 = arith.constant 0 : index
    %84 = vector.load %arg14[%c80, %c0_27] : memref<784x256xbf16, #tpu.memory_space<vmem>>, vector<16x256xbf16>
    tpu.vector_store %arg14[%c80, %c0_27], %83 {strides = array<i32>} : memref<784x256xbf16, #tpu.memory_space<vmem>>, vector<16x256xbf16>,
    %c0_28 = arith.constant 0 : index
    %c6 = arith.constant 6 : index
    %85 = vector.load %arg13[%c0_28, %c6] : memref<16x358xf32, #tpu.memory_space<vmem>>, vector<16x256xf32>
    %c-3_i32 = arith.constant -3 : i32
    %86 = vector.broadcast %c-3_i32 : i32 to vector<1x256xi32>
    %87 = arith.cmpi sge, %21, %86 : vector<1x256xi32>
    %c13_i32 = arith.constant 13 : i32
    %88 = vector.broadcast %c13_i32 : i32 to vector<1x256xi32>
    %89 = arith.cmpi slt, %21, %88 : vector<1x256xi32>
    %90 = arith.andi %87, %89 : vector<1x256xi1>
    %cst_29 = arith.constant 0.000000e+00 : f32
    %91 = vector.shape_cast %90 : vector<1x256xi1> to vector<1x256xi1>
    %92 = vector.broadcast %91 : vector<1x256xi1> to vector<16x256xi1>
    %93 = vector.broadcast %cst_29 : f32 to vector<16x256xf32>
    %94 = arith.select %92, %85, %93 : vector<16x256xi1>, vector<16x256xf32>
    %95 = arith.truncf %94 : vector<16x256xf32> to vector<16x256xbf16>
    %c96 = arith.constant 96 : index
    %c0_30 = arith.constant 0 : index
    %96 = vector.load %arg14[%c96, %c0_30] : memref<784x256xbf16, #tpu.memory_space<vmem>>, vector<16x256xbf16>
    tpu.vector_store %arg14[%c96, %c0_30], %95 {strides = array<i32>} : memref<784x256xbf16, #tpu.memory_space<vmem>>, vector<16x256xbf16>,
    %c0_31 = arith.constant 0 : index
    %c16_32 = arith.constant 16 : index
    %97 = vector.load %arg13[%c0_31, %c16_32] : memref<16x358xf32, #tpu.memory_space<vmem>>, vector<16x256xf32>
    %c3_i32_33 = arith.constant 3 : i32
    %98 = vector.broadcast %c3_i32_33 : i32 to vector<1x256xi32>
    %99 = arith.cmpi sge, %21, %98 : vector<1x256xi32>
    %c19_i32_34 = arith.constant 19 : i32
    %100 = vector.broadcast %c19_i32_34 : i32 to vector<1x256xi32>
    %101 = arith.cmpi slt, %21, %100 : vector<1x256xi32>
    %102 = arith.andi %99, %101 : vector<1x256xi1>
    %cst_35 = arith.constant 0.000000e+00 : f32
    %103 = vector.shape_cast %102 : vector<1x256xi1> to vector<1x256xi1>
    %104 = vector.broadcast %103 : vector<1x256xi1> to vector<16x256xi1>
    %105 = vector.broadcast %cst_35 : f32 to vector<16x256xf32>
    %106 = arith.select %104, %97, %105 : vector<16x256xi1>, vector<16x256xf32>
    %107 = arith.truncf %106 : vector<16x256xf32> to vector<16x256xbf16>
    %c112 = arith.constant 112 : index
    %c0_36 = arith.constant 0 : index
    %108 = vector.load %arg14[%c112, %c0_36] : memref<784x256xbf16, #tpu.memory_space<vmem>>, vector<16x256xbf16>
    tpu.vector_store %arg14[%c112, %c0_36], %107 {strides = array<i32>} : memref<784x256xbf16, #tpu.memory_space<vmem>>, vector<16x256xbf16>,
    %c0_37 = arith.constant 0 : index
    %c17 = arith.constant 17 : index
    %109 = vector.load %arg13[%c0_37, %c17] : memref<16x358xf32, #tpu.memory_space<vmem>>, vector<16x256xf32>
    %c2_i32_38 = arith.constant 2 : i32
    %110 = vector.broadcast %c2_i32_38 : i32 to vector<1x256xi32>
    %111 = arith.cmpi sge, %21, %110 : vector<1x256xi32>
    %c18_i32_39 = arith.constant 18 : i32
    %112 = vector.broadcast %c18_i32_39 : i32 to vector<1x256xi32>
    %113 = arith.cmpi slt, %21, %112 : vector<1x256xi32>
    %114 = arith.andi %111, %113 : vector<1x256xi1>
    %cst_40 = arith.constant 0.000000e+00 : f32
    %115 = vector.shape_cast %114 : vector<1x256xi1> to vector<1x256xi1>
    %116 = vector.broadcast %115 : vector<1x256xi1> to vector<16x256xi1>
    %117 = vector.broadcast %cst_40 : f32 to vector<16x256xf32>
    %118 = arith.select %116, %109, %117 : vector<16x256xi1>, vector<16x256xf32>
    %119 = arith.truncf %118 : vector<16x256xf32> to vector<16x256xbf16>
    %c128 = arith.constant 128 : index
    %c0_41 = arith.constant 0 : index
    %120 = vector.load %arg14[%c128, %c0_41] : memref<784x256xbf16, #tpu.memory_space<vmem>>, vector<16x256xbf16>
    tpu.vector_store %arg14[%c128, %c0_41], %119 {strides = array<i32>} : memref<784x256xbf16, #tpu.memory_space<vmem>>, vector<16x256xbf16>,
    %c0_42 = arith.constant 0 : index
    %c18 = arith.constant 18 : index
    %121 = vector.load %arg13[%c0_42, %c18] : memref<16x358xf32, #tpu.memory_space<vmem>>, vector<16x256xf32>
    %c1_i32_43 = arith.constant 1 : i32
    %122 = vector.broadcast %c1_i32_43 : i32 to vector<1x256xi32>
    %123 = arith.cmpi sge, %21, %122 : vector<1x256xi32>
    %c17_i32_44 = arith.constant 17 : i32
    %124 = vector.broadcast %c17_i32_44 : i32 to vector<1x256xi32>
    %125 = arith.cmpi slt, %21, %124 : vector<1x256xi32>
    %126 = arith.andi %123, %125 : vector<1x256xi1>
    %cst_45 = arith.constant 0.000000e+00 : f32
    %127 = vector.shape_cast %126 : vector<1x256xi1> to vector<1x256xi1>
    %128 = vector.broadcast %127 : vector<1x256xi1> to vector<16x256xi1>
    %129 = vector.broadcast %cst_45 : f32 to vector<16x256xf32>
    %130 = arith.select %128, %121, %129 : vector<16x256xi1>, vector<16x256xf32>
    %131 = arith.truncf %130 : vector<16x256xf32> to vector<16x256xbf16>
    %c144 = arith.constant 144 : index
    %c0_46 = arith.constant 0 : index
    %132 = vector.load %arg14[%c144, %c0_46] : memref<784x256xbf16, #tpu.memory_space<vmem>>, vector<16x256xbf16>
    tpu.vector_store %arg14[%c144, %c0_46], %131 {strides = array<i32>} : memref<784x256xbf16, #tpu.memory_space<vmem>>, vector<16x256xbf16>,
    %c0_47 = arith.constant 0 : index
    %c19 = arith.constant 19 : index
    %133 = vector.load %arg13[%c0_47, %c19] : memref<16x358xf32, #tpu.memory_space<vmem>>, vector<16x256xf32>
    %134 = arith.truncf %133 : vector<16x256xf32> to vector<16x256xbf16>
    %c160 = arith.constant 160 : index
    %c0_48 = arith.constant 0 : index
    %135 = vector.load %arg14[%c160, %c0_48] : memref<784x256xbf16, #tpu.memory_space<vmem>>, vector<16x256xbf16>
    tpu.vector_store %arg14[%c160, %c0_48], %134 {strides = array<i32>} : memref<784x256xbf16, #tpu.memory_space<vmem>>, vector<16x256xbf16>,
    %c0_49 = arith.constant 0 : index
    %c20 = arith.constant 20 : index
    %136 = vector.load %arg13[%c0_49, %c20] : memref<16x358xf32, #tpu.memory_space<vmem>>, vector<16x256xf32>
    %c-1_i32_50 = arith.constant -1 : i32
    %137 = vector.broadcast %c-1_i32_50 : i32 to vector<1x256xi32>
    %138 = arith.cmpi sge, %21, %137 : vector<1x256xi32>
    %c15_i32_51 = arith.constant 15 : i32
    %139 = vector.broadcast %c15_i32_51 : i32 to vector<1x256xi32>
    %140 = arith.cmpi slt, %21, %139 : vector<1x256xi32>
    %141 = arith.andi %138, %140 : vector<1x256xi1>
    %cst_52 = arith.constant 0.000000e+00 : f32
    %142 = vector.shape_cast %141 : vector<1x256xi1> to vector<1x256xi1>
    %143 = vector.broadcast %142 : vector<1x256xi1> to vector<16x256xi1>
    %144 = vector.broadcast %cst_52 : f32 to vector<16x256xf32>
    %145 = arith.select %143, %136, %144 : vector<16x256xi1>, vector<16x256xf32>
    %146 = arith.truncf %145 : vector<16x256xf32> to vector<16x256xbf16>
    %c176 = arith.constant 176 : index
    %c0_53 = arith.constant 0 : index
    %147 = vector.load %arg14[%c176, %c0_53] : memref<784x256xbf16, #tpu.memory_space<vmem>>, vector<16x256xbf16>
    tpu.vector_store %arg14[%c176, %c0_53], %146 {strides = array<i32>} : memref<784x256xbf16, #tpu.memory_space<vmem>>, vector<16x256xbf16>,
    %c0_54 = arith.constant 0 : index
    %c21 = arith.constant 21 : index
    %148 = vector.load %arg13[%c0_54, %c21] : memref<16x358xf32, #tpu.memory_space<vmem>>, vector<16x256xf32>
    %c-2_i32_55 = arith.constant -2 : i32
    %149 = vector.broadcast %c-2_i32_55 : i32 to vector<1x256xi32>
    %150 = arith.cmpi sge, %21, %149 : vector<1x256xi32>
    %c14_i32_56 = arith.constant 14 : i32
    %151 = vector.broadcast %c14_i32_56 : i32 to vector<1x256xi32>
    %152 = arith.cmpi slt, %21, %151 : vector<1x256xi32>
    %153 = arith.andi %150, %152 : vector<1x256xi1>
    %cst_57 = arith.constant 0.000000e+00 : f32
    %154 = vector.shape_cast %153 : vector<1x256xi1> to vector<1x256xi1>
    %155 = vector.broadcast %154 : vector<1x256xi1> to vector<16x256xi1>
    %156 = vector.broadcast %cst_57 : f32 to vector<16x256xf32>
    %157 = arith.select %155, %148, %156 : vector<16x256xi1>, vector<16x256xf32>
    %158 = arith.truncf %157 : vector<16x256xf32> to vector<16x256xbf16>
    %c192 = arith.constant 192 : index
    %c0_58 = arith.constant 0 : index
    %159 = vector.load %arg14[%c192, %c0_58] : memref<784x256xbf16, #tpu.memory_space<vmem>>, vector<16x256xbf16>
    tpu.vector_store %arg14[%c192, %c0_58], %158 {strides = array<i32>} : memref<784x256xbf16, #tpu.memory_space<vmem>>, vector<16x256xbf16>,
    %c0_59 = arith.constant 0 : index
    %c22 = arith.constant 22 : index
    %160 = vector.load %arg13[%c0_59, %c22] : memref<16x358xf32, #tpu.memory_space<vmem>>, vector<16x256xf32>
    %c-3_i32_60 = arith.constant -3 : i32
    %161 = vector.broadcast %c-3_i32_60 : i32 to vector<1x256xi32>
    %162 = arith.cmpi sge, %21, %161 : vector<1x256xi32>
    %c13_i32_61 = arith.constant 13 : i32
    %163 = vector.broadcast %c13_i32_61 : i32 to vector<1x256xi32>
    %164 = arith.cmpi slt, %21, %163 : vector<1x256xi32>
    %165 = arith.andi %162, %164 : vector<1x256xi1>
    %cst_62 = arith.constant 0.000000e+00 : f32
    %166 = vector.shape_cast %165 : vector<1x256xi1> to vector<1x256xi1>
    %167 = vector.broadcast %166 : vector<1x256xi1> to vector<16x256xi1>
    %168 = vector.broadcast %cst_62 : f32 to vector<16x256xf32>
    %169 = arith.select %167, %160, %168 : vector<16x256xi1>, vector<16x256xf32>
    %170 = arith.truncf %169 : vector<16x256xf32> to vector<16x256xbf16>
    %c208 = arith.constant 208 : index
    %c0_63 = arith.constant 0 : index
    %171 = vector.load %arg14[%c208, %c0_63] : memref<784x256xbf16, #tpu.memory_space<vmem>>, vector<16x256xbf16>
    tpu.vector_store %arg14[%c208, %c0_63], %170 {strides = array<i32>} : memref<784x256xbf16, #tpu.memory_space<vmem>>, vector<16x256xbf16>,
    %c0_64 = arith.constant 0 : index
    %c32_65 = arith.constant 32 : index
    %172 = vector.load %arg13[%c0_64, %c32_65] : memref<16x358xf32, #tpu.memory_space<vmem>>, vector<16x256xf32>
    %c3_i32_66 = arith.constant 3 : i32
    %173 = vector.broadcast %c3_i32_66 : i32 to vector<1x256xi32>
    %174 = arith.cmpi sge, %21, %173 : vector<1x256xi32>
    %c19_i32_67 = arith.constant 19 : i32
    %175 = vector.broadcast %c19_i32_67 : i32 to vector<1x256xi32>
    %176 = arith.cmpi slt, %21, %175 : vector<1x256xi32>
    %177 = arith.andi %174, %176 : vector<1x256xi1>
    %cst_68 = arith.constant 0.000000e+00 : f32
    %178 = vector.shape_cast %177 : vector<1x256xi1> to vector<1x256xi1>
    %179 = vector.broadcast %178 : vector<1x256xi1> to vector<16x256xi1>
    %180 = vector.broadcast %cst_68 : f32 to vector<16x256xf32>
    %181 = arith.select %179, %172, %180 : vector<16x256xi1>, vector<16x256xf32>
    %182 = arith.truncf %181 : vector<16x256xf32> to vector<16x256xbf16>
    %c224 = arith.constant 224 : index
    %c0_69 = arith.constant 0 : index
    %183 = vector.load %arg14[%c224, %c0_69] : memref<784x256xbf16, #tpu.memory_space<vmem>>, vector<16x256xbf16>
    tpu.vector_store %arg14[%c224, %c0_69], %182 {strides = array<i32>} : memref<784x256xbf16, #tpu.memory_space<vmem>>, vector<16x256xbf16>,
    %c0_70 = arith.constant 0 : index
    %c33 = arith.constant 33 : index
    %184 = vector.load %arg13[%c0_70, %c33] : memref<16x358xf32, #tpu.memory_space<vmem>>, vector<16x256xf32>
    %c2_i32_71 = arith.constant 2 : i32
    %185 = vector.broadcast %c2_i32_71 : i32 to vector<1x256xi32>
    %186 = arith.cmpi sge, %21, %185 : vector<1x256xi32>
    %c18_i32_72 = arith.constant 18 : i32
    %187 = vector.broadcast %c18_i32_72 : i32 to vector<1x256xi32>
    %188 = arith.cmpi slt, %21, %187 : vector<1x256xi32>
    %189 = arith.andi %186, %188 : vector<1x256xi1>
    %cst_73 = arith.constant 0.000000e+00 : f32
    %190 = vector.shape_cast %189 : vector<1x256xi1> to vector<1x256xi1>
    %191 = vector.broadcast %190 : vector<1x256xi1> to vector<16x256xi1>
    %192 = vector.broadcast %cst_73 : f32 to vector<16x256xf32>
    %193 = arith.select %191, %184, %192 : vector<16x256xi1>, vector<16x256xf32>
    %194 = arith.truncf %193 : vector<16x256xf32> to vector<16x256xbf16>
    %c240 = arith.constant 240 : index
    %c0_74 = arith.constant 0 : index
    %195 = vector.load %arg14[%c240, %c0_74] : memref<784x256xbf16, #tpu.memory_space<vmem>>, vector<16x256xbf16>
    tpu.vector_store %arg14[%c240, %c0_74], %194 {strides = array<i32>} : memref<784x256xbf16, #tpu.memory_space<vmem>>, vector<16x256xbf16>,
    %c0_75 = arith.constant 0 : index
    %c34 = arith.constant 34 : index
    %196 = vector.load %arg13[%c0_75, %c34] : memref<16x358xf32, #tpu.memory_space<vmem>>, vector<16x256xf32>
    %c1_i32_76 = arith.constant 1 : i32
    %197 = vector.broadcast %c1_i32_76 : i32 to vector<1x256xi32>
    %198 = arith.cmpi sge, %21, %197 : vector<1x256xi32>
    %c17_i32_77 = arith.constant 17 : i32
    %199 = vector.broadcast %c17_i32_77 : i32 to vector<1x256xi32>
    %200 = arith.cmpi slt, %21, %199 : vector<1x256xi32>
    %201 = arith.andi %198, %200 : vector<1x256xi1>
    %cst_78 = arith.constant 0.000000e+00 : f32
    %202 = vector.shape_cast %201 : vector<1x256xi1> to vector<1x256xi1>
    %203 = vector.broadcast %202 : vector<1x256xi1> to vector<16x256xi1>
    %204 = vector.broadcast %cst_78 : f32 to vector<16x256xf32>
    %205 = arith.select %203, %196, %204 : vector<16x256xi1>, vector<16x256xf32>
    %206 = arith.truncf %205 : vector<16x256xf32> to vector<16x256xbf16>
    %c256 = arith.constant 256 : index
    %c0_79 = arith.constant 0 : index
    %207 = vector.load %arg14[%c256, %c0_79] : memref<784x256xbf16, #tpu.memory_space<vmem>>, vector<16x256xbf16>
    tpu.vector_store %arg14[%c256, %c0_79], %206 {strides = array<i32>} : memref<784x256xbf16, #tpu.memory_space<vmem>>, vector<16x256xbf16>,
    %c0_80 = arith.constant 0 : index
    %c35 = arith.constant 35 : index
    %208 = vector.load %arg13[%c0_80, %c35] : memref<16x358xf32, #tpu.memory_space<vmem>>, vector<16x256xf32>
    %209 = arith.truncf %208 : vector<16x256xf32> to vector<16x256xbf16>
    %c272 = arith.constant 272 : index
    %c0_81 = arith.constant 0 : index
    %210 = vector.load %arg14[%c272, %c0_81] : memref<784x256xbf16, #tpu.memory_space<vmem>>, vector<16x256xbf16>
    tpu.vector_store %arg14[%c272, %c0_81], %209 {strides = array<i32>} : memref<784x256xbf16, #tpu.memory_space<vmem>>, vector<16x256xbf16>,
    %c0_82 = arith.constant 0 : index
    %c36 = arith.constant 36 : index
    %211 = vector.load %arg13[%c0_82, %c36] : memref<16x358xf32, #tpu.memory_space<vmem>>, vector<16x256xf32>
    %c-1_i32_83 = arith.constant -1 : i32
    %212 = vector.broadcast %c-1_i32_83 : i32 to vector<1x256xi32>
    %213 = arith.cmpi sge, %21, %212 : vector<1x256xi32>
    %c15_i32_84 = arith.constant 15 : i32
    %214 = vector.broadcast %c15_i32_84 : i32 to vector<1x256xi32>
    %215 = arith.cmpi slt, %21, %214 : vector<1x256xi32>
    %216 = arith.andi %213, %215 : vector<1x256xi1>
    %cst_85 = arith.constant 0.000000e+00 : f32
    %217 = vector.shape_cast %216 : vector<1x256xi1> to vector<1x256xi1>
    %218 = vector.broadcast %217 : vector<1x256xi1> to vector<16x256xi1>
    %219 = vector.broadcast %cst_85 : f32 to vector<16x256xf32>
    %220 = arith.select %218, %211, %219 : vector<16x256xi1>, vector<16x256xf32>
    %221 = arith.truncf %220 : vector<16x256xf32> to vector<16x256xbf16>
    %c288 = arith.constant 288 : index
    %c0_86 = arith.constant 0 : index
    %222 = vector.load %arg14[%c288, %c0_86] : memref<784x256xbf16, #tpu.memory_space<vmem>>, vector<16x256xbf16>
    tpu.vector_store %arg14[%c288, %c0_86], %221 {strides = array<i32>} : memref<784x256xbf16, #tpu.memory_space<vmem>>, vector<16x256xbf16>,
    %c0_87 = arith.constant 0 : index
    %c37 = arith.constant 37 : index
    %223 = vector.load %arg13[%c0_87, %c37] : memref<16x358xf32, #tpu.memory_space<vmem>>, vector<16x256xf32>
    %c-2_i32_88 = arith.constant -2 : i32
    %224 = vector.broadcast %c-2_i32_88 : i32 to vector<1x256xi32>
    %225 = arith.cmpi sge, %21, %224 : vector<1x256xi32>
    %c14_i32_89 = arith.constant 14 : i32
    %226 = vector.broadcast %c14_i32_89 : i32 to vector<1x256xi32>
    %227 = arith.cmpi slt, %21, %226 : vector<1x256xi32>
    %228 = arith.andi %225, %227 : vector<1x256xi1>
    %cst_90 = arith.constant 0.000000e+00 : f32
    %229 = vector.shape_cast %228 : vector<1x256xi1> to vector<1x256xi1>
    %230 = vector.broadcast %229 : vector<1x256xi1> to vector<16x256xi1>
    %231 = vector.broadcast %cst_90 : f32 to vector<16x256xf32>
    %232 = arith.select %230, %223, %231 : vector<16x256xi1>, vector<16x256xf32>
    %233 = arith.truncf %232 : vector<16x256xf32> to vector<16x256xbf16>
    %c304 = arith.constant 304 : index
    %c0_91 = arith.constant 0 : index
    %234 = vector.load %arg14[%c304, %c0_91] : memref<784x256xbf16, #tpu.memory_space<vmem>>, vector<16x256xbf16>
    tpu.vector_store %arg14[%c304, %c0_91], %233 {strides = array<i32>} : memref<784x256xbf16, #tpu.memory_space<vmem>>, vector<16x256xbf16>,
    %c0_92 = arith.constant 0 : index
    %c38 = arith.constant 38 : index
    %235 = vector.load %arg13[%c0_92, %c38] : memref<16x358xf32, #tpu.memory_space<vmem>>, vector<16x256xf32>
    %c-3_i32_93 = arith.constant -3 : i32
    %236 = vector.broadcast %c-3_i32_93 : i32 to vector<1x256xi32>
    %237 = arith.cmpi sge, %21, %236 : vector<1x256xi32>
    %c13_i32_94 = arith.constant 13 : i32
    %238 = vector.broadcast %c13_i32_94 : i32 to vector<1x256xi32>
    %239 = arith.cmpi slt, %21, %238 : vector<1x256xi32>
    %240 = arith.andi %237, %239 : vector<1x256xi1>
    %cst_95 = arith.constant 0.000000e+00 : f32
    %241 = vector.shape_cast %240 : vector<1x256xi1> to vector<1x256xi1>
    %242 = vector.broadcast %241 : vector<1x256xi1> to vector<16x256xi1>
    %243 = vector.broadcast %cst_95 : f32 to vector<16x256xf32>
    %244 = arith.select %242, %235, %243 : vector<16x256xi1>, vector<16x256xf32>
    %245 = arith.truncf %244 : vector<16x256xf32> to vector<16x256xbf16>
    %c320 = arith.constant 320 : index
    %c0_96 = arith.constant 0 : index
    %246 = vector.load %arg14[%c320, %c0_96] : memref<784x256xbf16, #tpu.memory_space<vmem>>, vector<16x256xbf16>
    tpu.vector_store %arg14[%c320, %c0_96], %245 {strides = array<i32>} : memref<784x256xbf16, #tpu.memory_space<vmem>>, vector<16x256xbf16>,
    %c0_97 = arith.constant 0 : index
    %c48_98 = arith.constant 48 : index
    %247 = vector.load %arg13[%c0_97, %c48_98] : memref<16x358xf32, #tpu.memory_space<vmem>>, vector<16x256xf32>
    %c3_i32_99 = arith.constant 3 : i32
    %248 = vector.broadcast %c3_i32_99 : i32 to vector<1x256xi32>
    %249 = arith.cmpi sge, %21, %248 : vector<1x256xi32>
    %c19_i32_100 = arith.constant 19 : i32
    %250 = vector.broadcast %c19_i32_100 : i32 to vector<1x256xi32>
    %251 = arith.cmpi slt, %21, %250 : vector<1x256xi32>
    %252 = arith.andi %249, %251 : vector<1x256xi1>
    %cst_101 = arith.constant 0.000000e+00 : f32
    %253 = vector.shape_cast %252 : vector<1x256xi1> to vector<1x256xi1>
    %254 = vector.broadcast %253 : vector<1x256xi1> to vector<16x256xi1>
    %255 = vector.broadcast %cst_101 : f32 to vector<16x256xf32>
    %256 = arith.select %254, %247, %255 : vector<16x256xi1>, vector<16x256xf32>
    %257 = arith.truncf %256 : vector<16x256xf32> to vector<16x256xbf16>
    %c336 = arith.constant 336 : index
    %c0_102 = arith.constant 0 : index
    %258 = vector.load %arg14[%c336, %c0_102] : memref<784x256xbf16, #tpu.memory_space<vmem>>, vector<16x256xbf16>
    tpu.vector_store %arg14[%c336, %c0_102], %257 {strides = array<i32>} : memref<784x256xbf16, #tpu.memory_space<vmem>>, vector<16x256xbf16>,
    %c0_103 = arith.constant 0 : index
    %c49 = arith.constant 49 : index
    %259 = vector.load %arg13[%c0_103, %c49] : memref<16x358xf32, #tpu.memory_space<vmem>>, vector<16x256xf32>
    %c2_i32_104 = arith.constant 2 : i32
    %260 = vector.broadcast %c2_i32_104 : i32 to vector<1x256xi32>
    %261 = arith.cmpi sge, %21, %260 : vector<1x256xi32>
    %c18_i32_105 = arith.constant 18 : i32
    %262 = vector.broadcast %c18_i32_105 : i32 to vector<1x256xi32>
    %263 = arith.cmpi slt, %21, %262 : vector<1x256xi32>
    %264 = arith.andi %261, %263 : vector<1x256xi1>
    %cst_106 = arith.constant 0.000000e+00 : f32
    %265 = vector.shape_cast %264 : vector<1x256xi1> to vector<1x256xi1>
    %266 = vector.broadcast %265 : vector<1x256xi1> to vector<16x256xi1>
    %267 = vector.broadcast %cst_106 : f32 to vector<16x256xf32>
    %268 = arith.select %266, %259, %267 : vector<16x256xi1>, vector<16x256xf32>
    %269 = arith.truncf %268 : vector<16x256xf32> to vector<16x256xbf16>
    %c352 = arith.constant 352 : index
    %c0_107 = arith.constant 0 : index
    %270 = vector.load %arg14[%c352, %c0_107] : memref<784x256xbf16, #tpu.memory_space<vmem>>, vector<16x256xbf16>
    tpu.vector_store %arg14[%c352, %c0_107], %269 {strides = array<i32>} : memref<784x256xbf16, #tpu.memory_space<vmem>>, vector<16x256xbf16>,
    %c0_108 = arith.constant 0 : index
    %c50 = arith.constant 50 : index
    %271 = vector.load %arg13[%c0_108, %c50] : memref<16x358xf32, #tpu.memory_space<vmem>>, vector<16x256xf32>
    %c1_i32_109 = arith.constant 1 : i32
    %272 = vector.broadcast %c1_i32_109 : i32 to vector<1x256xi32>
    %273 = arith.cmpi sge, %21, %272 : vector<1x256xi32>
    %c17_i32_110 = arith.constant 17 : i32
    %274 = vector.broadcast %c17_i32_110 : i32 to vector<1x256xi32>
    %275 = arith.cmpi slt, %21, %274 : vector<1x256xi32>
    %276 = arith.andi %273, %275 : vector<1x256xi1>
    %cst_111 = arith.constant 0.000000e+00 : f32
    %277 = vector.shape_cast %276 : vector<1x256xi1> to vector<1x256xi1>
    %278 = vector.broadcast %277 : vector<1x256xi1> to vector<16x256xi1>
    %279 = vector.broadcast %cst_111 : f32 to vector<16x256xf32>
    %280 = arith.select %278, %271, %279 : vector<16x256xi1>, vector<16x256xf32>
    %281 = arith.truncf %280 : vector<16x256xf32> to vector<16x256xbf16>
    %c368 = arith.constant 368 : index
    %c0_112 = arith.constant 0 : index
    %282 = vector.load %arg14[%c368, %c0_112] : memref<784x256xbf16, #tpu.memory_space<vmem>>, vector<16x256xbf16>
    tpu.vector_store %arg14[%c368, %c0_112], %281 {strides = array<i32>} : memref<784x256xbf16, #tpu.memory_space<vmem>>, vector<16x256xbf16>,
    %c0_113 = arith.constant 0 : index
    %c51_114 = arith.constant 51 : index
    %283 = vector.load %arg13[%c0_113, %c51_114] : memref<16x358xf32, #tpu.memory_space<vmem>>, vector<16x256xf32>
    %284 = arith.truncf %283 : vector<16x256xf32> to vector<16x256xbf16>
    %c384 = arith.constant 384 : index
    %c0_115 = arith.constant 0 : index
    %285 = vector.load %arg14[%c384, %c0_115] : memref<784x256xbf16, #tpu.memory_space<vmem>>, vector<16x256xbf16>
    tpu.vector_store %arg14[%c384, %c0_115], %284 {strides = array<i32>} : memref<784x256xbf16, #tpu.memory_space<vmem>>, vector<16x256xbf16>,
    %c0_116 = arith.constant 0 : index
    %c52 = arith.constant 52 : index
    %286 = vector.load %arg13[%c0_116, %c52] : memref<16x358xf32, #tpu.memory_space<vmem>>, vector<16x256xf32>
    %c-1_i32_117 = arith.constant -1 : i32
    %287 = vector.broadcast %c-1_i32_117 : i32 to vector<1x256xi32>
    %288 = arith.cmpi sge, %21, %287 : vector<1x256xi32>
    %c15_i32_118 = arith.constant 15 : i32
    %289 = vector.broadcast %c15_i32_118 : i32 to vector<1x256xi32>
    %290 = arith.cmpi slt, %21, %289 : vector<1x256xi32>
    %291 = arith.andi %288, %290 : vector<1x256xi1>
    %cst_119 = arith.constant 0.000000e+00 : f32
    %292 = vector.shape_cast %291 : vector<1x256xi1> to vector<1x256xi1>
    %293 = vector.broadcast %292 : vector<1x256xi1> to vector<16x256xi1>
    %294 = vector.broadcast %cst_119 : f32 to vector<16x256xf32>
    %295 = arith.select %293, %286, %294 : vector<16x256xi1>, vector<16x256xf32>
    %296 = arith.truncf %295 : vector<16x256xf32> to vector<16x256xbf16>
    %c400 = arith.constant 400 : index
    %c0_120 = arith.constant 0 : index
    %297 = vector.load %arg14[%c400, %c0_120] : memref<784x256xbf16, #tpu.memory_space<vmem>>, vector<16x256xbf16>
    tpu.vector_store %arg14[%c400, %c0_120], %296 {strides = array<i32>} : memref<784x256xbf16, #tpu.memory_space<vmem>>, vector<16x256xbf16>,
    %c0_121 = arith.constant 0 : index
    %c53 = arith.constant 53 : index
    %298 = vector.load %arg13[%c0_121, %c53] : memref<16x358xf32, #tpu.memory_space<vmem>>, vector<16x256xf32>
    %c-2_i32_122 = arith.constant -2 : i32
    %299 = vector.broadcast %c-2_i32_122 : i32 to vector<1x256xi32>
    %300 = arith.cmpi sge, %21, %299 : vector<1x256xi32>
    %c14_i32_123 = arith.constant 14 : i32
    %301 = vector.broadcast %c14_i32_123 : i32 to vector<1x256xi32>
    %302 = arith.cmpi slt, %21, %301 : vector<1x256xi32>
    %303 = arith.andi %300, %302 : vector<1x256xi1>
    %cst_124 = arith.constant 0.000000e+00 : f32
    %304 = vector.shape_cast %303 : vector<1x256xi1> to vector<1x256xi1>
    %305 = vector.broadcast %304 : vector<1x256xi1> to vector<16x256xi1>
    %306 = vector.broadcast %cst_124 : f32 to vector<16x256xf32>
    %307 = arith.select %305, %298, %306 : vector<16x256xi1>, vector<16x256xf32>
    %308 = arith.truncf %307 : vector<16x256xf32> to vector<16x256xbf16>
    %c416 = arith.constant 416 : index
    %c0_125 = arith.constant 0 : index
    %309 = vector.load %arg14[%c416, %c0_125] : memref<784x256xbf16, #tpu.memory_space<vmem>>, vector<16x256xbf16>
    tpu.vector_store %arg14[%c416, %c0_125], %308 {strides = array<i32>} : memref<784x256xbf16, #tpu.memory_space<vmem>>, vector<16x256xbf16>,
    %c0_126 = arith.constant 0 : index
    %c54 = arith.constant 54 : index
    %310 = vector.load %arg13[%c0_126, %c54] : memref<16x358xf32, #tpu.memory_space<vmem>>, vector<16x256xf32>
    %c-3_i32_127 = arith.constant -3 : i32
    %311 = vector.broadcast %c-3_i32_127 : i32 to vector<1x256xi32>
    %312 = arith.cmpi sge, %21, %311 : vector<1x256xi32>
    %c13_i32_128 = arith.constant 13 : i32
    %313 = vector.broadcast %c13_i32_128 : i32 to vector<1x256xi32>
    %314 = arith.cmpi slt, %21, %313 : vector<1x256xi32>
    %315 = arith.andi %312, %314 : vector<1x256xi1>
    %cst_129 = arith.constant 0.000000e+00 : f32
    %316 = vector.shape_cast %315 : vector<1x256xi1> to vector<1x256xi1>
    %317 = vector.broadcast %316 : vector<1x256xi1> to vector<16x256xi1>
    %318 = vector.broadcast %cst_129 : f32 to vector<16x256xf32>
    %319 = arith.select %317, %310, %318 : vector<16x256xi1>, vector<16x256xf32>
    %320 = arith.truncf %319 : vector<16x256xf32> to vector<16x256xbf16>
    %c432 = arith.constant 432 : index
    %c0_130 = arith.constant 0 : index
    %321 = vector.load %arg14[%c432, %c0_130] : memref<784x256xbf16, #tpu.memory_space<vmem>>, vector<16x256xbf16>
    tpu.vector_store %arg14[%c432, %c0_130], %320 {strides = array<i32>} : memref<784x256xbf16, #tpu.memory_space<vmem>>, vector<16x256xbf16>,
    %c0_131 = arith.constant 0 : index
    %c64_132 = arith.constant 64 : index
    %322 = vector.load %arg13[%c0_131, %c64_132] : memref<16x358xf32, #tpu.memory_space<vmem>>, vector<16x256xf32>
    %c3_i32_133 = arith.constant 3 : i32
    %323 = vector.broadcast %c3_i32_133 : i32 to vector<1x256xi32>
    %324 = arith.cmpi sge, %21, %323 : vector<1x256xi32>
    %c19_i32_134 = arith.constant 19 : i32
    %325 = vector.broadcast %c19_i32_134 : i32 to vector<1x256xi32>
    %326 = arith.cmpi slt, %21, %325 : vector<1x256xi32>
    %327 = arith.andi %324, %326 : vector<1x256xi1>
    %cst_135 = arith.constant 0.000000e+00 : f32
    %328 = vector.shape_cast %327 : vector<1x256xi1> to vector<1x256xi1>
    %329 = vector.broadcast %328 : vector<1x256xi1> to vector<16x256xi1>
    %330 = vector.broadcast %cst_135 : f32 to vector<16x256xf32>
    %331 = arith.select %329, %322, %330 : vector<16x256xi1>, vector<16x256xf32>
    %332 = arith.truncf %331 : vector<16x256xf32> to vector<16x256xbf16>
    %c448 = arith.constant 448 : index
    %c0_136 = arith.constant 0 : index
    %333 = vector.load %arg14[%c448, %c0_136] : memref<784x256xbf16, #tpu.memory_space<vmem>>, vector<16x256xbf16>
    tpu.vector_store %arg14[%c448, %c0_136], %332 {strides = array<i32>} : memref<784x256xbf16, #tpu.memory_space<vmem>>, vector<16x256xbf16>,
    %c0_137 = arith.constant 0 : index
    %c65 = arith.constant 65 : index
    %334 = vector.load %arg13[%c0_137, %c65] : memref<16x358xf32, #tpu.memory_space<vmem>>, vector<16x256xf32>
    %c2_i32_138 = arith.constant 2 : i32
    %335 = vector.broadcast %c2_i32_138 : i32 to vector<1x256xi32>
    %336 = arith.cmpi sge, %21, %335 : vector<1x256xi32>
    %c18_i32_139 = arith.constant 18 : i32
    %337 = vector.broadcast %c18_i32_139 : i32 to vector<1x256xi32>
    %338 = arith.cmpi slt, %21, %337 : vector<1x256xi32>
    %339 = arith.andi %336, %338 : vector<1x256xi1>
    %cst_140 = arith.constant 0.000000e+00 : f32
    %340 = vector.shape_cast %339 : vector<1x256xi1> to vector<1x256xi1>
    %341 = vector.broadcast %340 : vector<1x256xi1> to vector<16x256xi1>
    %342 = vector.broadcast %cst_140 : f32 to vector<16x256xf32>
    %343 = arith.select %341, %334, %342 : vector<16x256xi1>, vector<16x256xf32>
    %344 = arith.truncf %343 : vector<16x256xf32> to vector<16x256xbf16>
    %c464 = arith.constant 464 : index
    %c0_141 = arith.constant 0 : index
    %345 = vector.load %arg14[%c464, %c0_141] : memref<784x256xbf16, #tpu.memory_space<vmem>>, vector<16x256xbf16>
    tpu.vector_store %arg14[%c464, %c0_141], %344 {strides = array<i32>} : memref<784x256xbf16, #tpu.memory_space<vmem>>, vector<16x256xbf16>,
    %c0_142 = arith.constant 0 : index
    %c66 = arith.constant 66 : index
    %346 = vector.load %arg13[%c0_142, %c66] : memref<16x358xf32, #tpu.memory_space<vmem>>, vector<16x256xf32>
    %c1_i32_143 = arith.constant 1 : i32
    %347 = vector.broadcast %c1_i32_143 : i32 to vector<1x256xi32>
    %348 = arith.cmpi sge, %21, %347 : vector<1x256xi32>
    %c17_i32_144 = arith.constant 17 : i32
    %349 = vector.broadcast %c17_i32_144 : i32 to vector<1x256xi32>
    %350 = arith.cmpi slt, %21, %349 : vector<1x256xi32>
    %351 = arith.andi %348, %350 : vector<1x256xi1>
    %cst_145 = arith.constant 0.000000e+00 : f32
    %352 = vector.shape_cast %351 : vector<1x256xi1> to vector<1x256xi1>
    %353 = vector.broadcast %352 : vector<1x256xi1> to vector<16x256xi1>
    %354 = vector.broadcast %cst_145 : f32 to vector<16x256xf32>
    %355 = arith.select %353, %346, %354 : vector<16x256xi1>, vector<16x256xf32>
    %356 = arith.truncf %355 : vector<16x256xf32> to vector<16x256xbf16>
    %c480 = arith.constant 480 : index
    %c0_146 = arith.constant 0 : index
    %357 = vector.load %arg14[%c480, %c0_146] : memref<784x256xbf16, #tpu.memory_space<vmem>>, vector<16x256xbf16>
    tpu.vector_store %arg14[%c480, %c0_146], %356 {strides = array<i32>} : memref<784x256xbf16, #tpu.memory_space<vmem>>, vector<16x256xbf16>,
    %c0_147 = arith.constant 0 : index
    %c67 = arith.constant 67 : index
    %358 = vector.load %arg13[%c0_147, %c67] : memref<16x358xf32, #tpu.memory_space<vmem>>, vector<16x256xf32>
    %359 = arith.truncf %358 : vector<16x256xf32> to vector<16x256xbf16>
    %c496 = arith.constant 496 : index
    %c0_148 = arith.constant 0 : index
    %360 = vector.load %arg14[%c496, %c0_148] : memref<784x256xbf16, #tpu.memory_space<vmem>>, vector<16x256xbf16>
    tpu.vector_store %arg14[%c496, %c0_148], %359 {strides = array<i32>} : memref<784x256xbf16, #tpu.memory_space<vmem>>, vector<16x256xbf16>,
    %c0_149 = arith.constant 0 : index
    %c68 = arith.constant 68 : index
    %361 = vector.load %arg13[%c0_149, %c68] : memref<16x358xf32, #tpu.memory_space<vmem>>, vector<16x256xf32>
    %c-1_i32_150 = arith.constant -1 : i32
    %362 = vector.broadcast %c-1_i32_150 : i32 to vector<1x256xi32>
    %363 = arith.cmpi sge, %21, %362 : vector<1x256xi32>
    %c15_i32_151 = arith.constant 15 : i32
    %364 = vector.broadcast %c15_i32_151 : i32 to vector<1x256xi32>
    %365 = arith.cmpi slt, %21, %364 : vector<1x256xi32>
    %366 = arith.andi %363, %365 : vector<1x256xi1>
    %cst_152 = arith.constant 0.000000e+00 : f32
    %367 = vector.shape_cast %366 : vector<1x256xi1> to vector<1x256xi1>
    %368 = vector.broadcast %367 : vector<1x256xi1> to vector<16x256xi1>
    %369 = vector.broadcast %cst_152 : f32 to vector<16x256xf32>
    %370 = arith.select %368, %361, %369 : vector<16x256xi1>, vector<16x256xf32>
    %371 = arith.truncf %370 : vector<16x256xf32> to vector<16x256xbf16>
    %c512 = arith.constant 512 : index
    %c0_153 = arith.constant 0 : index
    %372 = vector.load %arg14[%c512, %c0_153] : memref<784x256xbf16, #tpu.memory_space<vmem>>, vector<16x256xbf16>
    tpu.vector_store %arg14[%c512, %c0_153], %371 {strides = array<i32>} : memref<784x256xbf16, #tpu.memory_space<vmem>>, vector<16x256xbf16>,
    %c0_154 = arith.constant 0 : index
    %c69 = arith.constant 69 : index
    %373 = vector.load %arg13[%c0_154, %c69] : memref<16x358xf32, #tpu.memory_space<vmem>>, vector<16x256xf32>
    %c-2_i32_155 = arith.constant -2 : i32
    %374 = vector.broadcast %c-2_i32_155 : i32 to vector<1x256xi32>
    %375 = arith.cmpi sge, %21, %374 : vector<1x256xi32>
    %c14_i32_156 = arith.constant 14 : i32
    %376 = vector.broadcast %c14_i32_156 : i32 to vector<1x256xi32>
    %377 = arith.cmpi slt, %21, %376 : vector<1x256xi32>
    %378 = arith.andi %375, %377 : vector<1x256xi1>
    %cst_157 = arith.constant 0.000000e+00 : f32
    %379 = vector.shape_cast %378 : vector<1x256xi1> to vector<1x256xi1>
    %380 = vector.broadcast %379 : vector<1x256xi1> to vector<16x256xi1>
    %381 = vector.broadcast %cst_157 : f32 to vector<16x256xf32>
    %382 = arith.select %380, %373, %381 : vector<16x256xi1>, vector<16x256xf32>
    %383 = arith.truncf %382 : vector<16x256xf32> to vector<16x256xbf16>
    %c528 = arith.constant 528 : index
    %c0_158 = arith.constant 0 : index
    %384 = vector.load %arg14[%c528, %c0_158] : memref<784x256xbf16, #tpu.memory_space<vmem>>, vector<16x256xbf16>
    tpu.vector_store %arg14[%c528, %c0_158], %383 {strides = array<i32>} : memref<784x256xbf16, #tpu.memory_space<vmem>>, vector<16x256xbf16>,
    %c0_159 = arith.constant 0 : index
    %c70 = arith.constant 70 : index
    %385 = vector.load %arg13[%c0_159, %c70] : memref<16x358xf32, #tpu.memory_space<vmem>>, vector<16x256xf32>
    %c-3_i32_160 = arith.constant -3 : i32
    %386 = vector.broadcast %c-3_i32_160 : i32 to vector<1x256xi32>
    %387 = arith.cmpi sge, %21, %386 : vector<1x256xi32>
    %c13_i32_161 = arith.constant 13 : i32
    %388 = vector.broadcast %c13_i32_161 : i32 to vector<1x256xi32>
    %389 = arith.cmpi slt, %21, %388 : vector<1x256xi32>
    %390 = arith.andi %387, %389 : vector<1x256xi1>
    %cst_162 = arith.constant 0.000000e+00 : f32
    %391 = vector.shape_cast %390 : vector<1x256xi1> to vector<1x256xi1>
    %392 = vector.broadcast %391 : vector<1x256xi1> to vector<16x256xi1>
    %393 = vector.broadcast %cst_162 : f32 to vector<16x256xf32>
    %394 = arith.select %392, %385, %393 : vector<16x256xi1>, vector<16x256xf32>
    %395 = arith.truncf %394 : vector<16x256xf32> to vector<16x256xbf16>
    %c544 = arith.constant 544 : index
    %c0_163 = arith.constant 0 : index
    %396 = vector.load %arg14[%c544, %c0_163] : memref<784x256xbf16, #tpu.memory_space<vmem>>, vector<16x256xbf16>
    tpu.vector_store %arg14[%c544, %c0_163], %395 {strides = array<i32>} : memref<784x256xbf16, #tpu.memory_space<vmem>>, vector<16x256xbf16>,
    %c0_164 = arith.constant 0 : index
    %c80_165 = arith.constant 80 : index
    %397 = vector.load %arg13[%c0_164, %c80_165] : memref<16x358xf32, #tpu.memory_space<vmem>>, vector<16x256xf32>
    %c3_i32_166 = arith.constant 3 : i32
    %398 = vector.broadcast %c3_i32_166 : i32 to vector<1x256xi32>
    %399 = arith.cmpi sge, %21, %398 : vector<1x256xi32>
    %c19_i32_167 = arith.constant 19 : i32
    %400 = vector.broadcast %c19_i32_167 : i32 to vector<1x256xi32>
    %401 = arith.cmpi slt, %21, %400 : vector<1x256xi32>
    %402 = arith.andi %399, %401 : vector<1x256xi1>
    %cst_168 = arith.constant 0.000000e+00 : f32
    %403 = vector.shape_cast %402 : vector<1x256xi1> to vector<1x256xi1>
    %404 = vector.broadcast %403 : vector<1x256xi1> to vector<16x256xi1>
    %405 = vector.broadcast %cst_168 : f32 to vector<16x256xf32>
    %406 = arith.select %404, %397, %405 : vector<16x256xi1>, vector<16x256xf32>
    %407 = arith.truncf %406 : vector<16x256xf32> to vector<16x256xbf16>
    %c560 = arith.constant 560 : index
    %c0_169 = arith.constant 0 : index
    %408 = vector.load %arg14[%c560, %c0_169] : memref<784x256xbf16, #tpu.memory_space<vmem>>, vector<16x256xbf16>
    tpu.vector_store %arg14[%c560, %c0_169], %407 {strides = array<i32>} : memref<784x256xbf16, #tpu.memory_space<vmem>>, vector<16x256xbf16>,
    %c0_170 = arith.constant 0 : index
    %c81 = arith.constant 81 : index
    %409 = vector.load %arg13[%c0_170, %c81] : memref<16x358xf32, #tpu.memory_space<vmem>>, vector<16x256xf32>
    %c2_i32_171 = arith.constant 2 : i32
    %410 = vector.broadcast %c2_i32_171 : i32 to vector<1x256xi32>
    %411 = arith.cmpi sge, %21, %410 : vector<1x256xi32>
    %c18_i32_172 = arith.constant 18 : i32
    %412 = vector.broadcast %c18_i32_172 : i32 to vector<1x256xi32>
    %413 = arith.cmpi slt, %21, %412 : vector<1x256xi32>
    %414 = arith.andi %411, %413 : vector<1x256xi1>
    %cst_173 = arith.constant 0.000000e+00 : f32
    %415 = vector.shape_cast %414 : vector<1x256xi1> to vector<1x256xi1>
    %416 = vector.broadcast %415 : vector<1x256xi1> to vector<16x256xi1>
    %417 = vector.broadcast %cst_173 : f32 to vector<16x256xf32>
    %418 = arith.select %416, %409, %417 : vector<16x256xi1>, vector<16x256xf32>
    %419 = arith.truncf %418 : vector<16x256xf32> to vector<16x256xbf16>
    %c576 = arith.constant 576 : index
    %c0_174 = arith.constant 0 : index
    %420 = vector.load %arg14[%c576, %c0_174] : memref<784x256xbf16, #tpu.memory_space<vmem>>, vector<16x256xbf16>
    tpu.vector_store %arg14[%c576, %c0_174], %419 {strides = array<i32>} : memref<784x256xbf16, #tpu.memory_space<vmem>>, vector<16x256xbf16>,
    %c0_175 = arith.constant 0 : index
    %c82 = arith.constant 82 : index
    %421 = vector.load %arg13[%c0_175, %c82] : memref<16x358xf32, #tpu.memory_space<vmem>>, vector<16x256xf32>
    %c1_i32_176 = arith.constant 1 : i32
    %422 = vector.broadcast %c1_i32_176 : i32 to vector<1x256xi32>
    %423 = arith.cmpi sge, %21, %422 : vector<1x256xi32>
    %c17_i32_177 = arith.constant 17 : i32
    %424 = vector.broadcast %c17_i32_177 : i32 to vector<1x256xi32>
    %425 = arith.cmpi slt, %21, %424 : vector<1x256xi32>
    %426 = arith.andi %423, %425 : vector<1x256xi1>
    %cst_178 = arith.constant 0.000000e+00 : f32
    %427 = vector.shape_cast %426 : vector<1x256xi1> to vector<1x256xi1>
    %428 = vector.broadcast %427 : vector<1x256xi1> to vector<16x256xi1>
    %429 = vector.broadcast %cst_178 : f32 to vector<16x256xf32>
    %430 = arith.select %428, %421, %429 : vector<16x256xi1>, vector<16x256xf32>
    %431 = arith.truncf %430 : vector<16x256xf32> to vector<16x256xbf16>
    %c592 = arith.constant 592 : index
    %c0_179 = arith.constant 0 : index
    %432 = vector.load %arg14[%c592, %c0_179] : memref<784x256xbf16, #tpu.memory_space<vmem>>, vector<16x256xbf16>
    tpu.vector_store %arg14[%c592, %c0_179], %431 {strides = array<i32>} : memref<784x256xbf16, #tpu.memory_space<vmem>>, vector<16x256xbf16>,
    %c0_180 = arith.constant 0 : index
    %c83 = arith.constant 83 : index
    %433 = vector.load %arg13[%c0_180, %c83] : memref<16x358xf32, #tpu.memory_space<vmem>>, vector<16x256xf32>
    %434 = arith.truncf %433 : vector<16x256xf32> to vector<16x256xbf16>
    %c608 = arith.constant 608 : index
    %c0_181 = arith.constant 0 : index
    %435 = vector.load %arg14[%c608, %c0_181] : memref<784x256xbf16, #tpu.memory_space<vmem>>, vector<16x256xbf16>
    tpu.vector_store %arg14[%c608, %c0_181], %434 {strides = array<i32>} : memref<784x256xbf16, #tpu.memory_space<vmem>>, vector<16x256xbf16>,
    %c0_182 = arith.constant 0 : index
    %c84 = arith.constant 84 : index
    %436 = vector.load %arg13[%c0_182, %c84] : memref<16x358xf32, #tpu.memory_space<vmem>>, vector<16x256xf32>
    %c-1_i32_183 = arith.constant -1 : i32
    %437 = vector.broadcast %c-1_i32_183 : i32 to vector<1x256xi32>
    %438 = arith.cmpi sge, %21, %437 : vector<1x256xi32>
    %c15_i32_184 = arith.constant 15 : i32
    %439 = vector.broadcast %c15_i32_184 : i32 to vector<1x256xi32>
    %440 = arith.cmpi slt, %21, %439 : vector<1x256xi32>
    %441 = arith.andi %438, %440 : vector<1x256xi1>
    %cst_185 = arith.constant 0.000000e+00 : f32
    %442 = vector.shape_cast %441 : vector<1x256xi1> to vector<1x256xi1>
    %443 = vector.broadcast %442 : vector<1x256xi1> to vector<16x256xi1>
    %444 = vector.broadcast %cst_185 : f32 to vector<16x256xf32>
    %445 = arith.select %443, %436, %444 : vector<16x256xi1>, vector<16x256xf32>
    %446 = arith.truncf %445 : vector<16x256xf32> to vector<16x256xbf16>
    %c624 = arith.constant 624 : index
    %c0_186 = arith.constant 0 : index
    %447 = vector.load %arg14[%c624, %c0_186] : memref<784x256xbf16, #tpu.memory_space<vmem>>, vector<16x256xbf16>
    tpu.vector_store %arg14[%c624, %c0_186], %446 {strides = array<i32>} : memref<784x256xbf16, #tpu.memory_space<vmem>>, vector<16x256xbf16>,
    %c0_187 = arith.constant 0 : index
    %c85 = arith.constant 85 : index
    %448 = vector.load %arg13[%c0_187, %c85] : memref<16x358xf32, #tpu.memory_space<vmem>>, vector<16x256xf32>
    %c-2_i32_188 = arith.constant -2 : i32
    %449 = vector.broadcast %c-2_i32_188 : i32 to vector<1x256xi32>
    %450 = arith.cmpi sge, %21, %449 : vector<1x256xi32>
    %c14_i32_189 = arith.constant 14 : i32
    %451 = vector.broadcast %c14_i32_189 : i32 to vector<1x256xi32>
    %452 = arith.cmpi slt, %21, %451 : vector<1x256xi32>
    %453 = arith.andi %450, %452 : vector<1x256xi1>
    %cst_190 = arith.constant 0.000000e+00 : f32
    %454 = vector.shape_cast %453 : vector<1x256xi1> to vector<1x256xi1>
    %455 = vector.broadcast %454 : vector<1x256xi1> to vector<16x256xi1>
    %456 = vector.broadcast %cst_190 : f32 to vector<16x256xf32>
    %457 = arith.select %455, %448, %456 : vector<16x256xi1>, vector<16x256xf32>
    %458 = arith.truncf %457 : vector<16x256xf32> to vector<16x256xbf16>
    %c640 = arith.constant 640 : index
    %c0_191 = arith.constant 0 : index
    %459 = vector.load %arg14[%c640, %c0_191] : memref<784x256xbf16, #tpu.memory_space<vmem>>, vector<16x256xbf16>
    tpu.vector_store %arg14[%c640, %c0_191], %458 {strides = array<i32>} : memref<784x256xbf16, #tpu.memory_space<vmem>>, vector<16x256xbf16>,
    %c0_192 = arith.constant 0 : index
    %c86 = arith.constant 86 : index
    %460 = vector.load %arg13[%c0_192, %c86] : memref<16x358xf32, #tpu.memory_space<vmem>>, vector<16x256xf32>
    %c-3_i32_193 = arith.constant -3 : i32
    %461 = vector.broadcast %c-3_i32_193 : i32 to vector<1x256xi32>
    %462 = arith.cmpi sge, %21, %461 : vector<1x256xi32>
    %c13_i32_194 = arith.constant 13 : i32
    %463 = vector.broadcast %c13_i32_194 : i32 to vector<1x256xi32>
    %464 = arith.cmpi slt, %21, %463 : vector<1x256xi32>
    %465 = arith.andi %462, %464 : vector<1x256xi1>
    %cst_195 = arith.constant 0.000000e+00 : f32
    %466 = vector.shape_cast %465 : vector<1x256xi1> to vector<1x256xi1>
    %467 = vector.broadcast %466 : vector<1x256xi1> to vector<16x256xi1>
    %468 = vector.broadcast %cst_195 : f32 to vector<16x256xf32>
    %469 = arith.select %467, %460, %468 : vector<16x256xi1>, vector<16x256xf32>
    %470 = arith.truncf %469 : vector<16x256xf32> to vector<16x256xbf16>
    %c656 = arith.constant 656 : index
    %c0_196 = arith.constant 0 : index
    %471 = vector.load %arg14[%c656, %c0_196] : memref<784x256xbf16, #tpu.memory_space<vmem>>, vector<16x256xbf16>
    tpu.vector_store %arg14[%c656, %c0_196], %470 {strides = array<i32>} : memref<784x256xbf16, #tpu.memory_space<vmem>>, vector<16x256xbf16>,
    %c0_197 = arith.constant 0 : index
    %c96_198 = arith.constant 96 : index
    %472 = vector.load %arg13[%c0_197, %c96_198] : memref<16x358xf32, #tpu.memory_space<vmem>>, vector<16x256xf32>
    %c3_i32_199 = arith.constant 3 : i32
    %473 = vector.broadcast %c3_i32_199 : i32 to vector<1x256xi32>
    %474 = arith.cmpi sge, %21, %473 : vector<1x256xi32>
    %c19_i32_200 = arith.constant 19 : i32
    %475 = vector.broadcast %c19_i32_200 : i32 to vector<1x256xi32>
    %476 = arith.cmpi slt, %21, %475 : vector<1x256xi32>
    %477 = arith.andi %474, %476 : vector<1x256xi1>
    %cst_201 = arith.constant 0.000000e+00 : f32
    %478 = vector.shape_cast %477 : vector<1x256xi1> to vector<1x256xi1>
    %479 = vector.broadcast %478 : vector<1x256xi1> to vector<16x256xi1>
    %480 = vector.broadcast %cst_201 : f32 to vector<16x256xf32>
    %481 = arith.select %479, %472, %480 : vector<16x256xi1>, vector<16x256xf32>
    %482 = arith.truncf %481 : vector<16x256xf32> to vector<16x256xbf16>
    %c672 = arith.constant 672 : index
    %c0_202 = arith.constant 0 : index
    %483 = vector.load %arg14[%c672, %c0_202] : memref<784x256xbf16, #tpu.memory_space<vmem>>, vector<16x256xbf16>
    tpu.vector_store %arg14[%c672, %c0_202], %482 {strides = array<i32>} : memref<784x256xbf16, #tpu.memory_space<vmem>>, vector<16x256xbf16>,
    %c0_203 = arith.constant 0 : index
    %c97 = arith.constant 97 : index
    %484 = vector.load %arg13[%c0_203, %c97] : memref<16x358xf32, #tpu.memory_space<vmem>>, vector<16x256xf32>
    %c2_i32_204 = arith.constant 2 : i32
    %485 = vector.broadcast %c2_i32_204 : i32 to vector<1x256xi32>
    %486 = arith.cmpi sge, %21, %485 : vector<1x256xi32>
    %c18_i32_205 = arith.constant 18 : i32
    %487 = vector.broadcast %c18_i32_205 : i32 to vector<1x256xi32>
    %488 = arith.cmpi slt, %21, %487 : vector<1x256xi32>
    %489 = arith.andi %486, %488 : vector<1x256xi1>
    %cst_206 = arith.constant 0.000000e+00 : f32
    %490 = vector.shape_cast %489 : vector<1x256xi1> to vector<1x256xi1>
    %491 = vector.broadcast %490 : vector<1x256xi1> to vector<16x256xi1>
    %492 = vector.broadcast %cst_206 : f32 to vector<16x256xf32>
    %493 = arith.select %491, %484, %492 : vector<16x256xi1>, vector<16x256xf32>
    %494 = arith.truncf %493 : vector<16x256xf32> to vector<16x256xbf16>
    %c688 = arith.constant 688 : index
    %c0_207 = arith.constant 0 : index
    %495 = vector.load %arg14[%c688, %c0_207] : memref<784x256xbf16, #tpu.memory_space<vmem>>, vector<16x256xbf16>
    tpu.vector_store %arg14[%c688, %c0_207], %494 {strides = array<i32>} : memref<784x256xbf16, #tpu.memory_space<vmem>>, vector<16x256xbf16>,
    %c0_208 = arith.constant 0 : index
    %c98 = arith.constant 98 : index
    %496 = vector.load %arg13[%c0_208, %c98] : memref<16x358xf32, #tpu.memory_space<vmem>>, vector<16x256xf32>
    %c1_i32_209 = arith.constant 1 : i32
    %497 = vector.broadcast %c1_i32_209 : i32 to vector<1x256xi32>
    %498 = arith.cmpi sge, %21, %497 : vector<1x256xi32>
    %c17_i32_210 = arith.constant 17 : i32
    %499 = vector.broadcast %c17_i32_210 : i32 to vector<1x256xi32>
    %500 = arith.cmpi slt, %21, %499 : vector<1x256xi32>
    %501 = arith.andi %498, %500 : vector<1x256xi1>
    %cst_211 = arith.constant 0.000000e+00 : f32
    %502 = vector.shape_cast %501 : vector<1x256xi1> to vector<1x256xi1>
    %503 = vector.broadcast %502 : vector<1x256xi1> to vector<16x256xi1>
    %504 = vector.broadcast %cst_211 : f32 to vector<16x256xf32>
    %505 = arith.select %503, %496, %504 : vector<16x256xi1>, vector<16x256xf32>
    %506 = arith.truncf %505 : vector<16x256xf32> to vector<16x256xbf16>
    %c704 = arith.constant 704 : index
    %c0_212 = arith.constant 0 : index
    %507 = vector.load %arg14[%c704, %c0_212] : memref<784x256xbf16, #tpu.memory_space<vmem>>, vector<16x256xbf16>
    tpu.vector_store %arg14[%c704, %c0_212], %506 {strides = array<i32>} : memref<784x256xbf16, #tpu.memory_space<vmem>>, vector<16x256xbf16>,
    %c0_213 = arith.constant 0 : index
    %c99 = arith.constant 99 : index
    %508 = vector.load %arg13[%c0_213, %c99] : memref<16x358xf32, #tpu.memory_space<vmem>>, vector<16x256xf32>
    %509 = arith.truncf %508 : vector<16x256xf32> to vector<16x256xbf16>
    %c720 = arith.constant 720 : index
    %c0_214 = arith.constant 0 : index
    %510 = vector.load %arg14[%c720, %c0_214] : memref<784x256xbf16, #tpu.memory_space<vmem>>, vector<16x256xbf16>
    tpu.vector_store %arg14[%c720, %c0_214], %509 {strides = array<i32>} : memref<784x256xbf16, #tpu.memory_space<vmem>>, vector<16x256xbf16>,
    %c0_215 = arith.constant 0 : index
    %c100 = arith.constant 100 : index
    %511 = vector.load %arg13[%c0_215, %c100] : memref<16x358xf32, #tpu.memory_space<vmem>>, vector<16x256xf32>
    %c-1_i32_216 = arith.constant -1 : i32
    %512 = vector.broadcast %c-1_i32_216 : i32 to vector<1x256xi32>
    %513 = arith.cmpi sge, %21, %512 : vector<1x256xi32>
    %c15_i32_217 = arith.constant 15 : i32
    %514 = vector.broadcast %c15_i32_217 : i32 to vector<1x256xi32>
    %515 = arith.cmpi slt, %21, %514 : vector<1x256xi32>
    %516 = arith.andi %513, %515 : vector<1x256xi1>
    %cst_218 = arith.constant 0.000000e+00 : f32
    %517 = vector.shape_cast %516 : vector<1x256xi1> to vector<1x256xi1>
    %518 = vector.broadcast %517 : vector<1x256xi1> to vector<16x256xi1>
    %519 = vector.broadcast %cst_218 : f32 to vector<16x256xf32>
    %520 = arith.select %518, %511, %519 : vector<16x256xi1>, vector<16x256xf32>
    %521 = arith.truncf %520 : vector<16x256xf32> to vector<16x256xbf16>
    %c736 = arith.constant 736 : index
    %c0_219 = arith.constant 0 : index
    %522 = vector.load %arg14[%c736, %c0_219] : memref<784x256xbf16, #tpu.memory_space<vmem>>, vector<16x256xbf16>
    tpu.vector_store %arg14[%c736, %c0_219], %521 {strides = array<i32>} : memref<784x256xbf16, #tpu.memory_space<vmem>>, vector<16x256xbf16>,
    %c0_220 = arith.constant 0 : index
    %c101 = arith.constant 101 : index
    %523 = vector.load %arg13[%c0_220, %c101] : memref<16x358xf32, #tpu.memory_space<vmem>>, vector<16x256xf32>
    %c-2_i32_221 = arith.constant -2 : i32
    %524 = vector.broadcast %c-2_i32_221 : i32 to vector<1x256xi32>
    %525 = arith.cmpi sge, %21, %524 : vector<1x256xi32>
    %c14_i32_222 = arith.constant 14 : i32
    %526 = vector.broadcast %c14_i32_222 : i32 to vector<1x256xi32>
    %527 = arith.cmpi slt, %21, %526 : vector<1x256xi32>
    %528 = arith.andi %525, %527 : vector<1x256xi1>
    %cst_223 = arith.constant 0.000000e+00 : f32
    %529 = vector.shape_cast %528 : vector<1x256xi1> to vector<1x256xi1>
    %530 = vector.broadcast %529 : vector<1x256xi1> to vector<16x256xi1>
    %531 = vector.broadcast %cst_223 : f32 to vector<16x256xf32>
    %532 = arith.select %530, %523, %531 : vector<16x256xi1>, vector<16x256xf32>
    %533 = arith.truncf %532 : vector<16x256xf32> to vector<16x256xbf16>
    %c752 = arith.constant 752 : index
    %c0_224 = arith.constant 0 : index
    %534 = vector.load %arg14[%c752, %c0_224] : memref<784x256xbf16, #tpu.memory_space<vmem>>, vector<16x256xbf16>
    tpu.vector_store %arg14[%c752, %c0_224], %533 {strides = array<i32>} : memref<784x256xbf16, #tpu.memory_space<vmem>>, vector<16x256xbf16>,
    %c0_225 = arith.constant 0 : index
    %c102 = arith.constant 102 : index
    %535 = vector.load %arg13[%c0_225, %c102] : memref<16x358xf32, #tpu.memory_space<vmem>>, vector<16x256xf32>
    %c-3_i32_226 = arith.constant -3 : i32
    %536 = vector.broadcast %c-3_i32_226 : i32 to vector<1x256xi32>
    %537 = arith.cmpi sge, %21, %536 : vector<1x256xi32>
    %c13_i32_227 = arith.constant 13 : i32
    %538 = vector.broadcast %c13_i32_227 : i32 to vector<1x256xi32>
    %539 = arith.cmpi slt, %21, %538 : vector<1x256xi32>
    %540 = arith.andi %537, %539 : vector<1x256xi1>
    %cst_228 = arith.constant 0.000000e+00 : f32
    %541 = vector.shape_cast %540 : vector<1x256xi1> to vector<1x256xi1>
    %542 = vector.broadcast %541 : vector<1x256xi1> to vector<16x256xi1>
    %543 = vector.broadcast %cst_228 : f32 to vector<16x256xf32>
    %544 = arith.select %542, %535, %543 : vector<16x256xi1>, vector<16x256xf32>
    %545 = arith.truncf %544 : vector<16x256xf32> to vector<16x256xbf16>
    %c768 = arith.constant 768 : index
    %c0_229 = arith.constant 0 : index
    %546 = vector.load %arg14[%c768, %c0_229] : memref<784x256xbf16, #tpu.memory_space<vmem>>, vector<16x256xbf16>
    tpu.vector_store %arg14[%c768, %c0_229], %545 {strides = array<i32>} : memref<784x256xbf16, #tpu.memory_space<vmem>>, vector<16x256xbf16>,
    %c0_230 = arith.constant 0 : index
    %c0_231 = arith.constant 0 : index
    %547 = vector.load %arg2[%c0_230, %c0_231] : memref<16x784xbf16, #tpu.memory_space<vmem>>, vector<16x784xbf16>
    %c0_232 = arith.constant 0 : index
    %c0_233 = arith.constant 0 : index
    %548 = vector.load %arg14[%c0_232, %c0_233] : memref<784x256xbf16, #tpu.memory_space<vmem>>, vector<784x256xbf16>
    %cst_234 = arith.constant dense<0.000000e+00> : vector<16x256xf32>
    %549 = tpu.matmul %547, %548, %cst_234 {dimension_numbers = #tpu.dot_dimension_numbers<[1], [0], [0], [1], [0, 0, 1, 1], [], []>} : vector<16x784xbf16>, vector<784x256xbf16>, vector<16x256xf32> -> vector<16x256xf32>
    %c0_235 = arith.constant 0 : index
    %c0_236 = arith.constant 0 : index
    %550 = vector.load %arg3[%c0_235, %c0_236] : memref<16x1xf32, #tpu.memory_space<vmem>>, vector<16x1xf32>
    %551 = vector.broadcast %550 : vector<16x1xf32> to vector<16x256xf32>
    %552 = arith.mulf %549, %551 : vector<16x256xf32>
    %c0_237 = arith.constant 0 : index
    %c0_238 = arith.constant 0 : index
    %553 = vector.load %arg4[%c0_237, %c0_238] : memref<16x1xf32, #tpu.memory_space<vmem>>, vector<16x1xf32>
    %554 = vector.broadcast %553 : vector<16x1xf32> to vector<16x256xf32>
    %555 = arith.addf %552, %554 : vector<16x256xf32>
    %cst_239 = arith.constant 0.000000e+00 : f32
    %556 = vector.broadcast %cst_239 : f32 to vector<16x256xf32>
    %557 = arith.maximumf %555, %556 : vector<16x256xf32>
    %c0_240 = arith.constant 0 : index
    %c0_241 = arith.constant 0 : index
    %558 = vector.load %arg5[%c0_240, %c0_241] : memref<16x16xbf16, #tpu.memory_space<vmem>>, vector<16x16xbf16>
    %559 = arith.truncf %557 : vector<16x256xf32> to vector<16x256xbf16>
    %cst_242 = arith.constant dense<0.000000e+00> : vector<16x256xf32>
    %560 = tpu.matmul %558, %559, %cst_242 {dimension_numbers = #tpu.dot_dimension_numbers<[1], [0], [0], [1], [0, 0, 1, 1], [], []>} : vector<16x16xbf16>, vector<16x256xbf16>, vector<16x256xf32> -> vector<16x256xf32>
    %c0_243 = arith.constant 0 : index
    %c0_244 = arith.constant 0 : index
    %561 = vector.load %arg6[%c0_243, %c0_244] : memref<16x1xf32, #tpu.memory_space<vmem>>, vector<16x1xf32>
    %562 = vector.broadcast %561 : vector<16x1xf32> to vector<16x256xf32>
    %563 = arith.mulf %560, %562 : vector<16x256xf32>
    %c0_245 = arith.constant 0 : index
    %c0_246 = arith.constant 0 : index
    %564 = vector.load %arg7[%c0_245, %c0_246] : memref<16x1xf32, #tpu.memory_space<vmem>>, vector<16x1xf32>
    %565 = vector.broadcast %564 : vector<16x1xf32> to vector<16x256xf32>
    %566 = arith.addf %563, %565 : vector<16x256xf32>
    %cst_247 = arith.constant 0.000000e+00 : f32
    %567 = vector.broadcast %cst_247 : f32 to vector<16x256xf32>
    %568 = arith.maximumf %566, %567 : vector<16x256xf32>
    %c0_248 = arith.constant 0 : index
    %c0_249 = arith.constant 0 : index
    %569 = vector.load %arg8[%c0_248, %c0_249] : memref<16x16xbf16, #tpu.memory_space<vmem>>, vector<16x16xbf16>
    %570 = arith.truncf %1 : vector<16x256xf32> to vector<16x256xbf16>
    %cst_250 = arith.constant dense<0.000000e+00> : vector<16x256xf32>
    %571 = tpu.matmul %569, %570, %cst_250 {dimension_numbers = #tpu.dot_dimension_numbers<[1], [0], [0], [1], [0, 0, 1, 1], [], []>} : vector<16x16xbf16>, vector<16x256xbf16>, vector<16x256xf32> -> vector<16x256xf32>
    %c0_251 = arith.constant 0 : index
    %c0_252 = arith.constant 0 : index
    %572 = vector.load %arg9[%c0_251, %c0_252] : memref<16x16xbf16, #tpu.memory_space<vmem>>, vector<16x16xbf16>
    %573 = arith.truncf %568 : vector<16x256xf32> to vector<16x256xbf16>
    %cst_253 = arith.constant dense<0.000000e+00> : vector<16x256xf32>
    %574 = tpu.matmul %572, %573, %cst_253 {dimension_numbers = #tpu.dot_dimension_numbers<[1], [0], [0], [1], [0, 0, 1, 1], [], []>} : vector<16x16xbf16>, vector<16x256xbf16>, vector<16x256xf32> -> vector<16x256xf32>
    %575 = arith.addf %571, %574 : vector<16x256xf32>
    %c0_254 = arith.constant 0 : index
    %c0_255 = arith.constant 0 : index
    %576 = vector.load %arg10[%c0_254, %c0_255] : memref<16x1xf32, #tpu.memory_space<vmem>>, vector<16x1xf32>
    %577 = vector.broadcast %576 : vector<16x1xf32> to vector<16x256xf32>
    %578 = arith.mulf %575, %577 : vector<16x256xf32>
    %c0_256 = arith.constant 0 : index
    %c0_257 = arith.constant 0 : index
    %579 = vector.load %arg11[%c0_256, %c0_257] : memref<16x1xf32, #tpu.memory_space<vmem>>, vector<16x1xf32>
    %580 = vector.broadcast %579 : vector<16x1xf32> to vector<16x256xf32>
    %581 = arith.addf %578, %580 : vector<16x256xf32>
    %cst_258 = arith.constant 0.000000e+00 : f32
    %582 = vector.broadcast %cst_258 : f32 to vector<16x256xf32>
    %583 = arith.maximumf %581, %582 : vector<16x256xf32>
    %c0_259 = arith.constant 0 : index
    %c0_260 = arith.constant 0 : index
    %c0_261 = arith.constant 0 : index
    %584 = vector.load %arg12[%c0_259, %c0_260, %c0_261] : memref<1x16x256xf32, #tpu.memory_space<vmem>>, vector<1x16x256xf32>
    %585 = vector.shape_cast %584 : vector<1x16x256xf32> to vector<16x256xf32>
    %586 = vector.shape_cast %583 : vector<16x256xf32> to vector<1x16x256xf32>
    tpu.vector_store %arg12[%c0_259, %c0_260, %c0_261], %586 {strides = array<i32>} : memref<1x16x256xf32, #tpu.memory_space<vmem>>, vector<1x16x256xf32>,
    return
  }
  func.func @transform_0(%arg0: i32) -> (i32, i32, i32) {
    %c0_i32 = arith.constant 0 : i32
    %c0_i32_0 = arith.constant 0 : i32
    %c0_i32_1 = arith.constant 0 : i32
    return %arg0, %c0_i32, %c0_i32_0 : i32, i32, i32
  }
  func.func @transform_1(%arg0: i32) -> (i32, i32) {
    %c0_i32 = arith.constant 0 : i32
    %c0_i32_0 = arith.constant 0 : i32
    %c0_i32_1 = arith.constant 0 : i32
    return %c0_i32, %c0_i32_0 : i32, i32
  }
  func.func @transform_2(%arg0: i32) -> (i32, i32) {
    %c0_i32 = arith.constant 0 : i32
    %c0_i32_0 = arith.constant 0 : i32
    %c0_i32_1 = arith.constant 0 : i32
    return %c0_i32, %c0_i32_0 : i32, i32
  }
  func.func @transform_3(%arg0: i32) -> (i32, i32) {
    %c0_i32 = arith.constant 0 : i32
    %c0_i32_0 = arith.constant 0 : i32
    %c0_i32_1 = arith.constant 0 : i32
    return %c0_i32, %c0_i32_0 : i32, i32
  }
  func.func @transform_4(%arg0: i32) -> (i32, i32) {
    %c0_i32 = arith.constant 0 : i32
    %c0_i32_0 = arith.constant 0 : i32
    %c0_i32_1 = arith.constant 0 : i32
    return %c0_i32, %c0_i32_0 : i32, i32
  }
  func.func @transform_5(%arg0: i32) -> (i32, i32) {
    %c0_i32 = arith.constant 0 : i32
    %c0_i32_0 = arith.constant 0 : i32
    %c0_i32_1 = arith.constant 0 : i32
    return %c0_i32, %c0_i32_0 : i32, i32
  }
  func.func @transform_6(%arg0: i32) -> (i32, i32) {
    %c0_i32 = arith.constant 0 : i32
    %c0_i32_0 = arith.constant 0 : i32
    %c0_i32_1 = arith.constant 0 : i32
    return %c0_i32, %c0_i32_0 : i32, i32
  }
  func.func @transform_7(%arg0: i32) -> (i32, i32) {
    %c0_i32 = arith.constant 0 : i32
    %c0_i32_0 = arith.constant 0 : i32
    %c0_i32_1 = arith.constant 0 : i32
    return %c0_i32, %c0_i32_0 : i32, i32
  }
  func.func @transform_8(%arg0: i32) -> (i32, i32) {
    %c0_i32 = arith.constant 0 : i32
    %c0_i32_0 = arith.constant 0 : i32
    %c0_i32_1 = arith.constant 0 : i32
    return %c0_i32, %c0_i32_0 : i32, i32
  }
  func.func @transform_9(%arg0: i32) -> (i32, i32) {
    %c0_i32 = arith.constant 0 : i32
    %c0_i32_0 = arith.constant 0 : i32
    %c0_i32_1 = arith.constant 0 : i32
    return %c0_i32, %c0_i32_0 : i32, i32
  }
  func.func @transform_10(%arg0: i32) -> (i32, i32) {
    %c0_i32 = arith.constant 0 : i32
    %c0_i32_0 = arith.constant 0 : i32
    %c0_i32_1 = arith.constant 0 : i32
    return %c0_i32, %c0_i32_0 : i32, i32
  }
  func.func @transform_11(%arg0: i32) -> (i32, i32, i32) {
    %c0_i32 = arith.constant 0 : i32
    %c0_i32_0 = arith.constant 0 : i32
    %c0_i32_1 = arith.constant 0 : i32
    return %arg0, %c0_i32, %c0_i32_0 : i32, i32, i32
  }
}

</mosaic_0001>

<llo_original>
// kernel: multiscale_pyramid_forward.1
$region0: #{multiscale_pyramid_forward.1}
  #allocation0 [shape = 'u32[]', space=smem, size = 0x4, offset = 0x4, fixed_abs, tag = 'smem constant byte address 0x4 - core index']
  #allocation1 [shape = 'u32[144,128]{1,0:T(1,128)}', space=vmem, size = 0x12000, scoped, tag = 'internal scratch']
  #allocation2 [shape = 'f32[16,358]{1,0:T(8,128)}', space=vmem, size = 0x6000, scoped, tag = 'scratch operand']
  #allocation3 [shape = 'bf16[784,256]{1,0:T(16,128)(2,1)}', space=vmem, size = 0x62000, scoped, tag = 'scratch operand']
  %s0 = inlined_call_operand.vmem [shape: f32[2,16,256], index: 0, kind: input, shape index: {}]
  %s1 = inlined_call_operand.vmem [shape: bf16[16,784], index: 1, kind: input, shape index: {}]
  %s2 = inlined_call_operand.vmem [shape: f32[16,1], index: 2, kind: input, shape index: {}]
  %s3 = inlined_call_operand.vmem [shape: f32[16,1], index: 3, kind: input, shape index: {}]
  %s4 = inlined_call_operand.vmem [shape: bf16[16,16], index: 4, kind: input, shape index: {}]
  %s5 = inlined_call_operand.vmem [shape: f32[16,1], index: 5, kind: input, shape index: {}]
  %s6 = inlined_call_operand.vmem [shape: f32[16,1], index: 6, kind: input, shape index: {}]
  %s7 = inlined_call_operand.vmem [shape: bf16[16,16], index: 7, kind: input, shape index: {}]
  %s8 = inlined_call_operand.vmem [shape: bf16[16,16], index: 8, kind: input, shape index: {}]
  %s9 = inlined_call_operand.vmem [shape: f32[16,1], index: 9, kind: input, shape index: {}]
  %s10 = inlined_call_operand.vmem [shape: f32[16,1], index: 10, kind: input, shape index: {}]
  %s11 = inlined_call_operand.vmem [shape: f32[2,16,256], index: 11, kind: output, shape index: {}]
  %s12 = sld [smem:[#allocation0]]
  $region77: #{multiscale_pyramid_forward.1} parent=0
    _
  %s14 = ssub.s32 1, %s12
  %s15 = scalar_select 0, %s14, %s12
  loop: start=0, step=1, limit=4
  $region2: #{multiscale_pyramid_forward.1} parent=0 // loop_pre_header
    _
  $region3: #{multiscale_pyramid_forward.1} parent=0 // loop_header
    %s17 = sphi 0, %s21
    %p18 = scmp.ge.s32.totalorder %s17, 4
    %s27 = sphi 0, %s29
    %s30 = sphi 0, %s27
    %s31 = sphi 0, %s30
    %s47 = sphi 0, %s31
    %s51 = sphi 0, %s51
    %s53 = sphi 0, %s51
    %s54 = sphi 0, %s53
    %s68 = sphi 0, %s54
    %s72 = sphi 0, %s72
    %s74 = sphi 0, %s72
    %s75 = sphi 0, %s74
    %s89 = sphi 0, %s75
    %s93 = sphi 0, %s93
    %s95 = sphi 0, %s93
    %s96 = sphi 0, %s95
    %s110 = sphi 0, %s96
    %s114 = sphi 0, %s114
    %s116 = sphi 0, %s114
    %s117 = sphi 0, %s116
    %s131 = sphi 0, %s117
    %s135 = sphi 0, %s135
    %s137 = sphi 0, %s135
    %s138 = sphi 0, %s137
    %s152 = sphi 0, %s138
    %s156 = sphi 0, %s156
    %s158 = sphi 0, %s156
    %s159 = sphi 0, %s158
    %s173 = sphi 0, %s159
    %s177 = sphi 0, %s177
    %s179 = sphi 0, %s177
    %s180 = sphi 0, %s179
    %s194 = sphi 0, %s180
    %s198 = sphi 0, %s198
    %s200 = sphi 0, %s198
    %s201 = sphi 0, %s200
    %s215 = sphi 0, %s201
    %s219 = sphi 0, %s219
    %s221 = sphi 0, %s219
    %s222 = sphi 0, %s221
    %s236 = sphi 0, %s222
    %s240 = sphi 0, %s240
    %s242 = sphi 0, %s240
    %s243 = sphi 0, %s242
    %s257 = sphi 0, %s243
    %s263 = sphi 0, %s265
    %s266 = sphi 0, %s263
    %s267 = sphi 0, %s266
    %s283 = sphi 0, %s267
  $region4: #{multiscale_pyramid_forward.1} parent=0 // loop_header_branch
    %20 = sbr.rel (%p18) target = $region8
  $region5: #{multiscale_pyramid_forward.1} parent=0 // loop_body
    %s22 = ssub.s32 %s17, 1
    %s23 = ssub.s32 %s17, 2
    %s24 = sadd.s32 %s17, 1
    %s25 = ssub.s32 %s17, %s24
    %p26 = scmp.eq.s32.totalorder %s25, 0
    %s28 = sadd.s32 %s27, 1
    %s29 = scalar_select %p26, %s27, %s28
    %p32 = pneg %p26
    %p33 = scmp.eq.s32.totalorder %s17, 1
    %p34 = por %p32, %p33
    %p35 = scmp.ne.s32.totalorder %s27, %s30
    %p36 = scmp.eq.s32.totalorder %s17, 0
    %p37 = por %p35, %p36
    %p38 = scmp.ne.s32.totalorder %s27, %s30
    %p39 = scmp.eq.s32.totalorder %s22, 1
    %p40 = por %p38, %p39
    %p41 = scmp.ne.s32.totalorder %s30, %s31
    %p42 = scmp.eq.s32.totalorder %s22, 0
    %p43 = por %p41, %p42
    %p44 = scmp.ne.s32.totalorder %s30, %s31
    %p45 = scmp.eq.s32.totalorder %s23, 1
    %p46 = por %p44, %p45
    %p48 = scmp.ne.s32.totalorder %s31, %s47
    %p49 = scmp.eq.s32.totalorder %s23, 0
    %p50 = por %p48, %p49
    %s52 = sadd.s32 %s51, 1
    %p55 = scmp.eq.s32.totalorder %s17, 1
    %p56 = scmp.ne.s32.totalorder %s51, %s53
    %p57 = scmp.eq.s32.totalorder %s17, 0
    %p58 = por %p56, %p57
    %p59 = scmp.ne.s32.totalorder %s51, %s53
    %p60 = scmp.eq.s32.totalorder %s22, 1
    %p61 = por %p59, %p60
    %p62 = scmp.ne.s32.totalorder %s53, %s54
    %p63 = scmp.eq.s32.totalorder %s22, 0
    %p64 = por %p62, %p63
    %p65 = scmp.ne.s32.totalorder %s53, %s54
    %p66 = scmp.eq.s32.totalorder %s23, 1
    %p67 = por %p65, %p66
    %p69 = scmp.ne.s32.totalorder %s54, %s68
    %p70 = scmp.eq.s32.totalorder %s23, 0
    %p71 = por %p69, %p70
    %s73 = sadd.s32 %s72, 1
    %p76 = scmp.eq.s32.totalorder %s17, 1
    %p77 = scmp.ne.s32.totalorder %s72, %s74
    %p78 = scmp.eq.s32.totalorder %s17, 0
    %p79 = por %p77, %p78
    %p80 = scmp.ne.s32.totalorder %s72, %s74
    %p81 = scmp.eq.s32.totalorder %s22, 1
    %p82 = por %p80, %p81
    %p83 = scmp.ne.s32.totalorder %s74, %s75
    %p84 = scmp.eq.s32.totalorder %s22, 0
    %p85 = por %p83, %p84
    %p86 = scmp.ne.s32.totalorder %s74, %s75
    %p87 = scmp.eq.s32.totalorder %s23, 1
    %p88 = por %p86, %p87
    %p90 = scmp.ne.s32.totalorder %s75, %s89
    %p91 = scmp.eq.s32.totalorder %s23, 0
    %p92 = por %p90, %p91
    %s94 = sadd.s32 %s93, 1
    %p97 = scmp.eq.s32.totalorder %s17, 1
    %p98 = scmp.ne.s32.totalorder %s93, %s95
    %p99 = scmp.eq.s32.totalorder %s17, 0
    %p100 = por %p98, %p99
    %p101 = scmp.ne.s32.totalorder %s93, %s95
    %p102 = scmp.eq.s32.totalorder %s22, 1
    %p103 = por %p101, %p102
    %p104 = scmp.ne.s32.totalorder %s95, %s96
    %p105 = scmp.eq.s32.totalorder %s22, 0
    %p106 = por %p104, %p105
    %p107 = scmp.ne.s32.totalorder %s95, %s96
    %p108 = scmp.eq.s32.totalorder %s23, 1
    %p109 = por %p107, %p108
    %p111 = scmp.ne.s32.totalorder %s96, %s110
    %p112 = scmp.eq.s32.totalorder %s23, 0
    %p113 = por %p111, %p112
    %s115 = sadd.s32 %s114, 1
    %p118 = scmp.eq.s32.totalorder %s17, 1
    %p119 = scmp.ne.s32.totalorder %s114, %s116
    %p120 = scmp.eq.s32.totalorder %s17, 0
    %p121 = por %p119, %p120
    %p122 = scmp.ne.s32.totalorder %s114, %s116
    %p123 = scmp.eq.s32.totalorder %s22, 1
    %p124 = por %p122, %p123
    %p125 = scmp.ne.s32.totalorder %s116, %s117
    %p126 = scmp.eq.s32.totalorder %s22, 0
    %p127 = por %p125, %p126
    %p128 = scmp.ne.s32.totalorder %s116, %s117
    %p129 = scmp.eq.s32.totalorder %s23, 1
    %p130 = por %p128, %p129
    %p132 = scmp.ne.s32.totalorder %s117, %s131
    %p133 = scmp.eq.s32.totalorder %s23, 0
    %p134 = por %p132, %p133
    %s136 = sadd.s32 %s135, 1
    %p139 = scmp.eq.s32.totalorder %s17, 1
    %p140 = scmp.ne.s32.totalorder %s135, %s137
    %p141 = scmp.eq.s32.totalorder %s17, 0
    %p142 = por %p140, %p141
    %p143 = scmp.ne.s32.totalorder %s135, %s137
    %p144 = scmp.eq.s32.totalorder %s22, 1
    %p145 = por %p143, %p144
    %p146 = scmp.ne.s32.totalorder %s137, %s138
    %p147 = scmp.eq.s32.totalorder %s22, 0
    %p148 = por %p146, %p147
    %p149 = scmp.ne.s32.totalorder %s137, %s138
    %p150 = scmp.eq.s32.totalorder %s23, 1
    %p151 = por %p149, %p150
    %p153 = scmp.ne.s32.totalorder %s138, %s152
    %p154 = scmp.eq.s32.totalorder %s23, 0
    %p155 = por %p153, %p154
    %s157 = sadd.s32 %s156, 1
    %p160 = scmp.eq.s32.totalorder %s17, 1
    %p161 = scmp.ne.s32.totalorder %s156, %s158
    %p162 = scmp.eq.s32.totalorder %s17, 0
    %p163 = por %p161, %p162
    %p164 = scmp.ne.s32.totalorder %s156, %s158
    %p165 = scmp.eq.s32.totalorder %s22, 1
    %p166 = por %p164, %p165
    %p167 = scmp.ne.s32.totalorder %s158, %s159
    %p168 = scmp.eq.s32.totalorder %s22, 0
    %p169 = por %p167, %p168
    %p170 = scmp.ne.s32.totalorder %s158, %s159
    %p171 = scmp.eq.s32.totalorder %s23, 1
    %p172 = por %p170, %p171
    %p174 = scmp.ne.s32.totalorder %s159, %s173
    %p175 = scmp.eq.s32.totalorder %s23, 0
    %p176 = por %p174, %p175
    %s178 = sadd.s32 %s177, 1
    %p181 = scmp.eq.s32.totalorder %s17, 1
    %p182 = scmp.ne.s32.totalorder %s177, %s179
    %p183 = scmp.eq.s32.totalorder %s17, 0
    %p184 = por %p182, %p183
    %p185 = scmp.ne.s32.totalorder %s177, %s179
    %p186 = scmp.eq.s32.totalorder %s22, 1
    %p187 = por %p185, %p186
    %p188 = scmp.ne.s32.totalorder %s179, %s180
    %p189 = scmp.eq.s32.totalorder %s22, 0
    %p190 = por %p188, %p189
    %p191 = scmp.ne.s32.totalorder %s179, %s180
    %p192 = scmp.eq.s32.totalorder %s23, 1
    %p193 = por %p191, %p192
    %p195 = scmp.ne.s32.totalorder %s180, %s194
    %p196 = scmp.eq.s32.totalorder %s23, 0
    %p197 = por %p195, %p196
    %s199 = sadd.s32 %s198, 1
    %p202 = scmp.eq.s32.totalorder %s17, 1
    %p203 = scmp.ne.s32.totalorder %s198, %s200
    %p204 = scmp.eq.s32.totalorder %s17, 0
    %p205 = por %p203, %p204
    %p206 = scmp.ne.s32.totalorder %s198, %s200
    %p207 = scmp.eq.s32.totalorder %s22, 1
    %p208 = por %p206, %p207
    %p209 = scmp.ne.s32.totalorder %s200, %s201
    %p210 = scmp.eq.s32.totalorder %s22, 0
    %p211 = por %p209, %p210
    %p212 = scmp.ne.s32.totalorder %s200, %s201
    %p213 = scmp.eq.s32.totalorder %s23, 1
    %p214 = por %p212, %p213
    %p216 = scmp.ne.s32.totalorder %s201, %s215
    %p217 = scmp.eq.s32.totalorder %s23, 0
    %p218 = por %p216, %p217
    %s220 = sadd.s32 %s219, 1
    %p223 = scmp.eq.s32.totalorder %s17, 1
    %p224 = scmp.ne.s32.totalorder %s219, %s221
    %p225 = scmp.eq.s32.totalorder %s17, 0
    %p226 = por %p224, %p225
    %p227 = scmp.ne.s32.totalorder %s219, %s221
    %p228 = scmp.eq.s32.totalorder %s22, 1
    %p229 = por %p227, %p228
    %p230 = scmp.ne.s32.totalorder %s221, %s222
    %p231 = scmp.eq.s32.totalorder %s22, 0
    %p232 = por %p230, %p231
    %p233 = scmp.ne.s32.totalorder %s221, %s222
    %p234 = scmp.eq.s32.totalorder %s23, 1
    %p235 = por %p233, %p234
    %p237 = scmp.ne.s32.totalorder %s222, %s236
    %p238 = scmp.eq.s32.totalorder %s23, 0
    %p239 = por %p237, %p238
    %s241 = sadd.s32 %s240, 1
    %p244 = scmp.eq.s32.totalorder %s17, 1
    %p245 = scmp.ne.s32.totalorder %s240, %s242
    %p246 = scmp.eq.s32.totalorder %s17, 0
    %p247 = por %p245, %p246
    %p248 = scmp.ne.s32.totalorder %s240, %s242
    %p249 = scmp.eq.s32.totalorder %s22, 1
    %p250 = por %p248, %p249
    %p251 = scmp.ne.s32.totalorder %s242, %s243
    %p252 = scmp.eq.s32.totalorder %s22, 0
    %p253 = por %p251, %p252
    %p254 = scmp.ne.s32.totalorder %s242, %s243
    %p255 = scmp.eq.s32.totalorder %s23, 1
    %p256 = por %p254, %p255
    %p258 = scmp.ne.s32.totalorder %s243, %s257
    %p259 = scmp.eq.s32.totalorder %s23, 0
    %p260 = por %p258, %p259
    %s261 = ssub.s32 %s17, %s24
    %p262 = scmp.eq.s32.totalorder %s261, 0
    %s264 = sadd.s32 %s263, 1
    %s265 = scalar_select %p262, %s263, %s264
    %p268 = pneg %p262
    %p269 = scmp.eq.s32.totalorder %s17, 1
    %p270 = por %p268, %p269
    %p271 = scmp.ne.s32.totalorder %s263, %s266
    %p272 = scmp.eq.s32.totalorder %s17, 0
    %p273 = por %p271, %p272
    %p274 = scmp.ne.s32.totalorder %s263, %s266
    %p275 = scmp.eq.s32.totalorder %s22, 1
    %p276 = por %p274, %p275
    %p277 = scmp.ne.s32.totalorder %s266, %s267
    %p278 = scmp.eq.s32.totalorder %s22, 0
    %p279 = por %p277, %p278
    %p280 = scmp.ne.s32.totalorder %s266, %s267
    %p281 = scmp.eq.s32.totalorder %s23, 1
    %p282 = por %p280, %p281
    %p284 = scmp.ne.s32.totalorder %s267, %s283
    %p285 = scmp.eq.s32.totalorder %s23, 0
    %p286 = por %p284, %p285
    %p287 = scmp.le.s32.totalorder 1, %s17
    %p288 = scmp.lt.s32.totalorder %s17, 3
    %p289 = pnand %p287, %p288
    %p290 = pneg %p289
    // Predicated region
    $region9: #{multiscale_pyramid_forward.1} parent=5 // pred_check
      _
    $region10: #{multiscale_pyramid_forward.1} parent=5 // pred_check_branch
      %292 = sbr.rel (%p289) target = $region12
    $region11: #{multiscale_pyramid_forward.1} parent=5 // pred_region
      %s293 = ssub.s32 %s17, 1
      // Predicated region
      $region13: #{multiscale_pyramid_forward.1} parent=11 // pred_check
        %p294 = pneg %p64
      $region14: #{multiscale_pyramid_forward.1} parent=11 // pred_check_branch
        %296 = sbr.rel (%p294) target = $region16
      $region15: #{multiscale_pyramid_forward.1} parent=11 // pred_region
        _
      $region16: #{multiscale_pyramid_forward.1} parent=11 // pred_fallthru
        _
      // Predicated region
      $region17: #{multiscale_pyramid_forward.1} parent=11 // pred_check
        %p297 = pneg %p85
      $region18: #{multiscale_pyramid_forward.1} parent=11 // pred_check_branch
        %299 = sbr.rel (%p297) target = $region20
      $region19: #{multiscale_pyramid_forward.1} parent=11 // pred_region
        _
      $region20: #{multiscale_pyramid_forward.1} parent=11 // pred_fallthru
        _
      // Predicated region
      $region21: #{multiscale_pyramid_forward.1} parent=11 // pred_check
        %p300 = pneg %p106
      $region22: #{multiscale_pyramid_forward.1} parent=11 // pred_check_branch
        %302 = sbr.rel (%p300) target = $region24
      $region23: #{multiscale_pyramid_forward.1} parent=11 // pred_region
        _
      $region24: #{multiscale_pyramid_forward.1} parent=11 // pred_fallthru
        _
      // Predicated region
      $region25: #{multiscale_pyramid_forward.1} parent=11 // pred_check
        %p303 = pneg %p127
      $region26: #{multiscale_pyramid_forward.1} parent=11 // pred_check_branch
        %305 = sbr.rel (%p303) target = $region28
      $region27: #{multiscale_pyramid_forward.1} parent=11 // pred_region
        _
      $region28: #{multiscale_pyramid_forward.1} parent=11 // pred_fallthru
        _
      // Predicated region
      $region29: #{multiscale_pyramid_forward.1} parent=11 // pred_check
        %p306 = pneg %p148
      $region30: #{multiscale_pyramid_forward.1} parent=11 // pred_check_branch
        %308 = sbr.rel (%p306) target = $region32
      $region31: #{multiscale_pyramid_forward.1} parent=11 // pred_region
        _
      $region32: #{multiscale_pyramid_forward.1} parent=11 // pred_fallthru
        _
      // Predicated region
      $region33: #{multiscale_pyramid_forward.1} parent=11 // pred_check
        %p309 = pneg %p169
      $region34: #{multiscale_pyramid_forward.1} parent=11 // pred_check_branch
        %311 = sbr.rel (%p309) target = $region36
      $region35: #{multiscale_pyramid_forward.1} parent=11 // pred_region
        _
      $region36: #{multiscale_pyramid_forward.1} parent=11 // pred_fallthru
        _
      // Predicated region
      $region37: #{multiscale_pyramid_forward.1} parent=11 // pred_check
        %p312 = pneg %p190
      $region38: #{multiscale_pyramid_forward.1} parent=11 // pred_check_branch
        %314 = sbr.rel (%p312) target = $region40
      $region39: #{multiscale_pyramid_forward.1} parent=11 // pred_region
        _
      $region40: #{multiscale_pyramid_forward.1} parent=11 // pred_fallthru
        _
      // Predicated region
      $region41: #{multiscale_pyramid_forward.1} parent=11 // pred_check
        %p315 = pneg %p211
      $region42: #{multiscale_pyramid_forward.1} parent=11 // pred_check_branch
        %317 = sbr.rel (%p315) target = $region44
      $region43: #{multiscale_pyramid_forward.1} parent=11 // pred_region
        _
      $region44: #{multiscale_pyramid_forward.1} parent=11 // pred_fallthru
        _
      // Predicated region
      $region45: #{multiscale_pyramid_forward.1} parent=11 // pred_check
        %p318 = pneg %p232
      $region46: #{multiscale_pyramid_forward.1} parent=11 // pred_check_branch
        %320 = sbr.rel (%p318) target = $region48
      $region47: #{multiscale_pyramid_forward.1} parent=11 // pred_region
        _
      $region48: #{multiscale_pyramid_forward.1} parent=11 // pred_fallthru
        _
      // Predicated region
      $region49: #{multiscale_pyramid_forward.1} parent=11 // pred_check
        %p321 = pneg %p253
      $region50: #{multiscale_pyramid_forward.1} parent=11 // pred_check_branch
        %323 = sbr.rel (%p321) target = $region52
      $region51: #{multiscale_pyramid_forward.1} parent=11 // pred_region
        _
      $region52: #{multiscale_pyramid_forward.1} parent=11 // pred_fallthru
        _
    $region12: #{multiscale_pyramid_forward.1} parent=5 // pred_fallthru
      _
    %p324 = scmp.lt.s32.totalorder %s17, 2
    // Predicated region
    $region53: #{multiscale_pyramid_forward.1} parent=5 // pred_check
      %p325 = pneg %p324
    $region54: #{multiscale_pyramid_forward.1} parent=5 // pred_check_branch
      %327 = sbr.rel (%p325) target = $region56
    $region55: #{multiscale_pyramid_forward.1} parent=5 // pred_region
      // Predicated region
      $region57: #{multiscale_pyramid_forward.1} parent=55 // pred_check
        %p328 = pneg %p37
      $region58: #{multiscale_pyramid_forward.1} parent=55 // pred_check_branch
        %330 = sbr.rel (%p328) target = $region60
      $region59: #{multiscale_pyramid_forward.1} parent=55 // pred_region
        %p331 = scmp.lt.s32.totalorder %s17, 1
        %s332 = scalar_select %p331, %s17, 1
        %s333 = smul.addr %s332, 4
        %s334 = smul.addr %s333, 8
        %s335 = scalar_lea.vmem %s0, %s334
      $region60: #{multiscale_pyramid_forward.1} parent=55 // pred_fallthru
        _
    $region56: #{multiscale_pyramid_forward.1} parent=5 // pred_fallthru
      _
    %p336 = scmp.le.s32.totalorder 1, %s17
    %p337 = scmp.lt.s32.totalorder %s17, 3
    %p338 = pnand %p336, %p337
    %p339 = pneg %p338
    // Predicated region
    $region61: #{multiscale_pyramid_forward.1} parent=5 // pred_check
      _
    $region62: #{multiscale_pyramid_forward.1} parent=5 // pred_check_branch
      %341 = sbr.rel (%p338) target = $region64
    $region63: #{multiscale_pyramid_forward.1} parent=5 // pred_region
      %s342 = ssub.s32 %s17, 1
      %p343 = scmp.lt.s32.totalorder %s22, 1
      %s344 = scalar_select %p343, %s22, 1
      %s345 = smul.addr %s344, 4
      %s346 = smul.addr %s345, 8
      %s347 = scalar_lea.vmem %s0, %s346
      %p348 = pneg %p43
      %p349 = pneg %p40
      %p350 = pneg %p64
      %p351 = pneg %p61
      %p352 = pneg %p85
      %p353 = pneg %p82
      %p354 = pneg %p106
      %p355 = pneg %p103
      %p356 = pneg %p127
      %p357 = pneg %p124
      %p358 = pneg %p148
      %p359 = pneg %p145
      %p360 = pneg %p169
      %p361 = pneg %p166
      %p362 = pneg %p190
      %p363 = pneg %p187
      %p364 = pneg %p211
      %p365 = pneg %p208
      %p366 = pneg %p232
      %p367 = pneg %p229
      %p368 = pneg %p253
      %p369 = pneg %p250
      %p370 = pneg %p279
      %p371 = pneg %p276
      %p372 = scmp.lt.s32.totalorder %s22, 1
      %s373 = scalar_select %p372, %s22, 1
      %s374 = smul.addr %s373, 4
      %s375 = smul.addr %s374, 8
      %s376 = scalar_lea.vmem %s11, %s375
      %p377 = scmp.lt.s32.totalorder %s22, 1
      %s378 = scalar_select %p377, %s22, 1
      %s379 = smul.addr %s378, 4
      %s380 = smul.addr %s379, 8
      %s381 = scalar_lea.vmem %s0, %s380
      %p382 = scmp.lt.s32.totalorder %s22, 1
      %s383 = scalar_select %p382, %s22, 1
      %s384 = smul.addr %s383, 4
      %s385 = smul.addr %s384, 8
      %s386 = scalar_lea.vmem %s11, %s385
      %v388 = vld [vmem:[%s381] sm:$0xff]
      %v389 = vld [vmem:[%s381 + $0x8] sm:$0xff]
      %v390 = vld [vmem:[%s381 + $0x10] sm:$0xff]
      %v391 = vld [vmem:[%s381 + $0x18] sm:$0xff]
      %392 = vst [vmem:[#allocation2] sm:$0xff] 0.0
      %393 = vst [vmem:[#allocation2 + $0x8] sm:$0xff] 0.0
      %vm394 = vcmask 834560
      %395 = vst.msk [vmem:[#allocation2 + $0x10] sm:$0xff] %vm394, 0.0
      %396 = vst [vmem:[#allocation2 + $0x18] sm:$0xff] 0.0
      %397 = vst [vmem:[#allocation2 + $0x20] sm:$0xff] 0.0
      %398 = vst.msk [vmem:[#allocation2 + $0x28] sm:$0xff] %vm394, 0.0
      %403 = vrot.lane.b32.xlu0 %v388, 51
      %v404 = vpop.permute.xlu0 %403
      %405 = vrot.lane.b32.xlu0 %v389, 51
      %v406 = vpop.permute.xlu0 %405
      %407 = vrot.lane.b32.xlu0 %v390, 51
      %v408 = vpop.permute.xlu0 %407
      %409 = vrot.lane.b32.xlu0 %v391, 51
      %v410 = vpop.permute.xlu0 %409
      %vm411 = vcmask 416768
      %v412 = vsel %vm411, %v404, %v406
      %v413 = vsel %vm411, %v408, %v410
      %vm420 = vcmask 1047960
      %421 = vst.msk [vmem:[#allocation2] sm:$0xff] %vm420, %v404
      %422 = vst [vmem:[#allocation2 + $0x8] sm:$0xff] %v412
      %423 = vst.msk [vmem:[#allocation2 + $0x10] sm:$0xff] %vm411, %v406
      %424 = vst.msk [vmem:[#allocation2 + $0x18] sm:$0xff] %vm420, %v408
      %425 = vst [vmem:[#allocation2 + $0x20] sm:$0xff] %v413
      %426 = vst.msk [vmem:[#allocation2 + $0x28] sm:$0xff] %vm411, %v410
      %v427 = vlaneseq
      %v428 = vand.u32 %v427, 127
      %v429 = vadd.s32 %v428, 128
      %vm430 = vcmp.lt.s32.totalorder %v428, 0
      %v431 = vsub.s32 0, %v428
      %v432 = vsel %vm430, %v431, %v428
      %v433 = vshrl.u32 %v432, 4
      %v434 = vand.u32 %v432, 15
      %v435 = vsub.s32 0, %v434
      %v436 = vsel %vm430, %v435, %v434
      %vm437 = vcmp.lt.s32.totalorder %v429, 0
      %v438 = vsub.s32 0, %v429
      %v439 = vsel %vm437, %v438, %v429
      %v440 = vshrl.u32 %v439, 4
      %v441 = vand.u32 %v439, 15
      %v442 = vsub.s32 0, %v441
      %v443 = vsel %vm437, %v442, %v441
      %vm444 = vcmp.ne.s32.totalorder %v436, 0
      %vm445 = vcmp.ne.s32.totalorder %v443, 0
      %vm446 = vcmp.lt.s32.totalorder %v436, 0
      %vm447 = vcmp.lt.s32.totalorder %v443, 0
      %vm448 = vmand %vm446, %vm444
      %vm449 = vmand %vm447, %vm445
      %v450 = vadd.s32 %v436, 16
      %v451 = vadd.s32 %v443, 16
      %v452 = vsel %vm448, %v450, %v436
      %v453 = vsel %vm449, %v451, %v443
      %v454 = vld [vmem:[#allocation2] sm:$0xff]
      %v455 = vld [vmem:[#allocation2 + $0x8] sm:$0xff]
      %v456 = vld [vmem:[#allocation2 + $0x18] sm:$0xff]
      %v457 = vld [vmem:[#allocation2 + $0x20] sm:$0xff]
      %vm458 = vcmp.ge.s32.totalorder %v452, 3
      %vm459 = vcmp.ge.s32.totalorder %v453, 3
      %vm460 = vcmp.lt.s32.totalorder %v452, 19
      %vm461 = vcmp.lt.s32.totalorder %v453, 19
      %vm462 = vmand %vm458, %vm460
      %vm463 = vmand %vm459, %vm461
      %v464 = vsel %vm462, 1, 0
      %v465 = vsel %vm463, 1, 0
      %vm466 = vcmp.eq.s32.totalorder %v464, 1
      %vm467 = vcmp.eq.s32.totalorder %v465, 1
      %v468 = vsel %vm466, %v454, 0.0
      %v469 = vsel %vm467, %v455, 0.0
      %v470 = vsel %vm466, %v456, 0.0
      %v471 = vsel %vm467, %v457, 0.0
      %v472 = vpack.c.bf16 %v470, %v468
      %v473 = vpack.c.bf16 %v471, %v469
      %474 = vst [vmem:[#allocation3] sm:$0xff] %v472
      %475 = vst [vmem:[#allocation3 + $0x8] sm:$0xff] %v473
      %v476 = vld [vmem:[#allocation2] sm:$0xff]
      %v477 = vld [vmem:[#allocation2 + $0x8] sm:$0xff]
      %v478 = vld [vmem:[#allocation2 + $0x10] sm:$0xff]
      %v479 = vld [vmem:[#allocation2 + $0x18] sm:$0xff]
      %v480 = vld [vmem:[#allocation2 + $0x20] sm:$0xff]
      %v481 = vld [vmem:[#allocation2 + $0x28] sm:$0xff]
      %vm482 = vcmp.ge.s32.totalorder %v452, 2
      %vm483 = vcmp.ge.s32.totalorder %v453, 2
      %vm484 = vcmp.lt.s32.totalorder %v452, 18
      %vm485 = vcmp.lt.s32.totalorder %v453, 18
      %vm486 = vmand %vm482, %vm484
      %vm487 = vmand %vm483, %vm485
      %v488 = vsel %vm486, 1, 0
      %v489 = vsel %vm487, 1, 0
      %vm490 = vcmp.eq.s32.totalorder %v488, 1
      %vm491 = vcmp.eq.s32.totalorder %v489, 1
      %498 = vrot.lane.b32.xlu0 %v476, 127
      %v499 = vpop.permute.xlu0 %498
      %500 = vrot.lane.b32.xlu0 %v477, 127
      %v501 = vpop.permute.xlu0 %500
      %502 = vrot.lane.b32.xlu0 %v478, 127
      %v503 = vpop.permute.xlu0 %502
      %504 = vrot.lane.b32.xlu0 %v479, 127
      %v505 = vpop.permute.xlu0 %504
      %506 = vrot.lane.b32.xlu0 %v480, 127
      %v507 = vpop.permute.xlu0 %506
      %508 = vrot.lane.b32.xlu0 %v481, 127
      %v509 = vpop.permute.xlu0 %508
      %vm510 = vcmask 1039360
      %v511 = vsel %vm510, %v499, %v501
      %v512 = vsel %vm510, %v501, %v503
      %v513 = vsel %vm510, %v505, %v507
      %v514 = vsel %vm510, %v507, %v509
      %v519 = vsel %vm490, %v511, 0.0
      %v520 = vsel %vm491, %v512, 0.0
      %v521 = vsel %vm490, %v513, 0.0
      %v522 = vsel %vm491, %v514, 0.0
      %v523 = vpack.c.bf16 %v521, %v519
      %v524 = vpack.c.bf16 %v522, %v520
      %525 = vst [vmem:[#allocation3 + $0x10] sm:$0xff] %v523
      %526 = vst [vmem:[#allocation3 + $0x18] sm:$0xff] %v524
      %v527 = vld [vmem:[#allocation2] sm:$0xff]
      %v528 = vld [vmem:[#allocation2 + $0x8] sm:$0xff]
      %v529 = vld [vmem:[#allocation2 + $0x10] sm:$0xff]
      %v530 = vld [vmem:[#allocation2 + $0x18] sm:$0xff]
      %v531 = vld [vmem:[#allocation2 + $0x20] sm:$0xff]
      %v532 = vld [vmem:[#allocation2 + $0x28] sm:$0xff]
      %vm533 = vcmp.ge.s32.totalorder %v452, 1
      %vm534 = vcmp.ge.s32.totalorder %v453, 1
      %vm535 = vcmp.lt.s32.totalorder %v452, 17
      %vm536 = vcmp.lt.s32.totalorder %v453, 17
      %vm537 = vmand %vm533, %vm535
      %vm538 = vmand %vm534, %vm536
      %v539 = vsel %vm537, 1, 0
      %v540 = vsel %vm538, 1, 0
      %vm541 = vcmp.eq.s32.totalorder %v539, 1
      %vm542 = vcmp.eq.s32.totalorder %v540, 1
      %549 = vrot.lane.b32.xlu0 %v527, 126
      %v550 = vpop.permute.xlu0 %549
      %551 = vrot.lane.b32.xlu0 %v528, 126
      %v552 = vpop.permute.xlu0 %551
      %553 = vrot.lane.b32.xlu0 %v529, 126
      %v554 = vpop.permute.xlu0 %553
      %555 = vrot.lane.b32.xlu0 %v530, 126
      %v556 = vpop.permute.xlu0 %555
      %557 = vrot.lane.b32.xlu0 %v531, 126
      %v558 = vpop.permute.xlu0 %557
      %559 = vrot.lane.b32.xlu0 %v532, 126
      %v560 = vpop.permute.xlu0 %559
      %vm561 = vcmask 1031168
      %v562 = vsel %vm561, %v550, %v552
      %v563 = vsel %vm561, %v552, %v554
      %v564 = vsel %vm561, %v556, %v558
      %v565 = vsel %vm561, %v558, %v560
      %v570 = vsel %vm541, %v562, 0.0
      %v571 = vsel %vm542, %v563, 0.0
      %v572 = vsel %vm541, %v564, 0.0
      %v573 = vsel %vm542, %v565, 0.0
      %v574 = vpack.c.bf16 %v572, %v570
      %v575 = vpack.c.bf16 %v573, %v571
      %576 = vst [vmem:[#allocation3 + $0x20] sm:$0xff] %v574
      %577 = vst [vmem:[#allocation3 + $0x28] sm:$0xff] %v575
      %v578 = vld [vmem:[#allocation2] sm:$0xff]
      %v579 = vld [vmem:[#allocation2 + $0x8] sm:$0xff]
      %v580 = vld [vmem:[#allocation2 + $0x10] sm:$0xff]
      %v581 = vld [vmem:[#allocation2 + $0x18] sm:$0xff]
      %v582 = vld [vmem:[#allocation2 + $0x20] sm:$0xff]
      %v583 = vld [vmem:[#allocation2 + $0x28] sm:$0xff]
      %v584 = vpack.c.bf16 %v581, %v578
      %v585 = vpack.c.bf16 %v582, %v579
      %v586 = vpack.c.bf16 %v583, %v580
      %590 = vrot.lane.b32.xlu0 %v584, 125
      %v591 = vpop.permute.xlu0 %590
      %592 = vrot.lane.b32.xlu0 %v585, 125
      %v593 = vpop.permute.xlu0 %592
      %594 = vrot.lane.b32.xlu0 %v586, 125
      %v595 = vpop.permute.xlu0 %594
      %vm596 = vcmask 1022976
      %v597 = vsel %vm596, %v591, %v593
      %v598 = vsel %vm596, %v593, %v595
      %601 = vst [vmem:[#allocation3 + $0x30] sm:$0xff] %v597
      %602 = vst [vmem:[#allocation3 + $0x38] sm:$0xff] %v598
      %v603 = vld [vmem:[#allocation2] sm:$0xff]
      %v604 = vld [vmem:[#allocation2 + $0x8] sm:$0xff]
      %v605 = vld [vmem:[#allocation2 + $0x10] sm:$0xff]
      %v606 = vld [vmem:[#allocation2 + $0x18] sm:$0xff]
      %v607 = vld [vmem:[#allocation2 + $0x20] sm:$0xff]
      %v608 = vld [vmem:[#allocation2 + $0x28] sm:$0xff]
      %vm609 = vcmp.ge.s32.totalorder %v452, 4294967295
      %vm610 = vcmp.ge.s32.totalorder %v453, 4294967295
      %vm611 = vcmp.lt.s32.totalorder %v452, 15
      %vm612 = vcmp.lt.s32.totalorder %v453, 15
      %vm613 = vmand %vm609, %vm611
      %vm614 = vmand %vm610, %vm612
      %v615 = vsel %vm613, 1, 0
      %v616 = vsel %vm614, 1, 0
      %vm617 = vcmp.eq.s32.totalorder %v615, 1
      %vm618 = vcmp.eq.s32.totalorder %v616, 1
      %625 = vrot.lane.b32.xlu0 %v603, 124
      %v626 = vpop.permute.xlu0 %625
      %627 = vrot.lane.b32.xlu0 %v604, 124
      %v628 = vpop.permute.xlu0 %627
      %629 = vrot.lane.b32.xlu0 %v605, 124
      %v630 = vpop.permute.xlu0 %629
      %631 = vrot.lane.b32.xlu0 %v606, 124
      %v632 = vpop.permute.xlu0 %631
      %633 = vrot.lane.b32.xlu0 %v607, 124
      %v634 = vpop.permute.xlu0 %633
      %635 = vrot.lane.b32.xlu0 %v608, 124
      %v636 = vpop.permute.xlu0 %635
      %vm637 = vcmask 1014784
      %v638 = vsel %vm637, %v626, %v628
      %v639 = vsel %vm637, %v628, %v630
      %v640 = vsel %vm637, %v632, %v634
      %v641 = vsel %vm637, %v634, %v636
      %v646 = vsel %vm617, %v638, 0.0
      %v647 = vsel %vm618, %v639, 0.0
      %v648 = vsel %vm617, %v640, 0.0
      %v649 = vsel %vm618, %v641, 0.0
      %v650 = vpack.c.bf16 %v648, %v646
      %v651 = vpack.c.bf16 %v649, %v647
      %652 = vst [vmem:[#allocation3 + $0x40] sm:$0xff] %v650
      %653 = vst [vmem:[#allocation3 + $0x48] sm:$0xff] %v651
      %v654 = vld [vmem:[#allocation2] sm:$0xff]
      %v655 = vld [vmem:[#allocation2 + $0x8] sm:$0xff]
      %v656 = vld [vmem:[#allocation2 + $0x10] sm:$0xff]
      %v657 = vld [vmem:[#allocation2 + $0x18] sm:$0xff]
      %v658 = vld [vmem:[#allocation2 + $0x20] sm:$0xff]
      %v659 = vld [vmem:[#allocation2 + $0x28] sm:$0xff]
      %vm660 = vcmp.ge.s32.totalorder %v452, 4294967294
      %vm661 = vcmp.ge.s32.totalorder %v453, 4294967294
      %vm662 = vcmp.lt.s32.totalorder %v452, 14
      %vm663 = vcmp.lt.s32.totalorder %v453, 14
      %vm664 = vmand %vm660, %vm662
      %vm665 = vmand %vm661, %vm663
      %v666 = vsel %vm664, 1, 0
      %v667 = vsel %vm665, 1, 0
      %vm668 = vcmp.eq.s32.totalorder %v666, 1
      %vm669 = vcmp.eq.s32.totalorder %v667, 1
      %676 = vrot.lane.b32.xlu0 %v654, 123
      %v677 = vpop.permute.xlu0 %676
      %678 = vrot.lane.b32.xlu0 %v655, 123
      %v679 = vpop.permute.xlu0 %678
      %680 = vrot.lane.b32.xlu0 %v656, 123
      %v681 = vpop.permute.xlu0 %680
      %682 = vrot.lane.b32.xlu0 %v657, 123
      %v683 = vpop.permute.xlu0 %682
      %684 = vrot.lane.b32.xlu0 %v658, 123
      %v685 = vpop.permute.xlu0 %684
      %686 = vrot.lane.b32.xlu0 %v659, 123
      %v687 = vpop.permute.xlu0 %686
      %vm688 = vcmask 1006592
      %v689 = vsel %vm688, %v677, %v679
      %v690 = vsel %vm688, %v679, %v681
      %v691 = vsel %vm688, %v683, %v685
      %v692 = vsel %vm688, %v685, %v687
      %v697 = vsel %vm668, %v689, 0.0
      %v698 = vsel %vm669, %v690, 0.0
      %v699 = vsel %vm668, %v691, 0.0
      %v700 = vsel %vm669, %v692, 0.0
      %v701 = vpack.c.bf16 %v699, %v697
      %v702 = vpack.c.bf16 %v700, %v698
      %703 = vst [vmem:[#allocation3 + $0x50] sm:$0xff] %v701
      %704 = vst [vmem:[#allocation3 + $0x58] sm:$0xff] %v702
      %v705 = vld [vmem:[#allocation2] sm:$0xff]
      %v706 = vld [vmem:[#allocation2 + $0x8] sm:$0xff]
      %v707 = vld [vmem:[#allocation2 + $0x10] sm:$0xff]
      %v708 = vld [vmem:[#allocation2 + $0x18] sm:$0xff]
      %v709 = vld [vmem:[#allocation2 + $0x20] sm:$0xff]
      %v710 = vld [vmem:[#allocation2 + $0x28] sm:$0xff]
      %vm711 = vcmp.ge.s32.totalorder %v452, 4294967293
      %vm712 = vcmp.ge.s32.totalorder %v453, 4294967293
      %vm713 = vcmp.lt.s32.totalorder %v452, 13
      %vm714 = vcmp.lt.s32.totalorder %v453, 13
      %vm715 = vmand %vm711, %vm713
      %vm716 = vmand %vm712, %vm714
      %v717 = vsel %vm715, 1, 0
      %v718 = vsel %vm716, 1, 0
      %vm719 = vcmp.eq.s32.totalorder %v717, 1
      %vm720 = vcmp.eq.s32.totalorder %v718, 1
      %727 = vrot.lane.b32.xlu0 %v705, 122
      %v728 = vpop.permute.xlu0 %727
      %729 = vrot.lane.b32.xlu0 %v706, 122
      %v730 = vpop.permute.xlu0 %729
      %731 = vrot.lane.b32.xlu0 %v707, 122
      %v732 = vpop.permute.xlu0 %731
      %733 = vrot.lane.b32.xlu0 %v708, 122
      %v734 = vpop.permute.xlu0 %733
      %735 = vrot.lane.b32.xlu0 %v709, 122
      %v736 = vpop.permute.xlu0 %735
      %737 = vrot.lane.b32.xlu0 %v710, 122
      %v738 = vpop.permute.xlu0 %737
      %vm739 = vcmask 998400
      %v740 = vsel %vm739, %v728, %v730
      %v741 = vsel %vm739, %v730, %v732
      %v742 = vsel %vm739, %v734, %v736
      %v743 = vsel %vm739, %v736, %v738
      %v748 = vsel %vm719, %v740, 0.0
      %v749 = vsel %vm720, %v741, 0.0
      %v750 = vsel %vm719, %v742, 0.0
      %v751 = vsel %vm720, %v743, 0.0
      %v752 = vpack.c.bf16 %v750, %v748
      %v753 = vpack.c.bf16 %v751, %v749
      %754 = vst [vmem:[#allocation3 + $0x60] sm:$0xff] %v752
      %755 = vst [vmem:[#allocation3 + $0x68] sm:$0xff] %v753
      %v756 = vld [vmem:[#allocation2] sm:$0xff]
      %v757 = vld [vmem:[#allocation2 + $0x8] sm:$0xff]
      %v758 = vld [vmem:[#allocation2 + $0x10] sm:$0xff]
      %v759 = vld [vmem:[#allocation2 + $0x18] sm:$0xff]
      %v760 = vld [vmem:[#allocation2 + $0x20] sm:$0xff]
      %v761 = vld [vmem:[#allocation2 + $0x28] sm:$0xff]
      %768 = vrot.lane.b32.xlu0 %v756, 112
      %v769 = vpop.permute.xlu0 %768
      %770 = vrot.lane.b32.xlu0 %v757, 112
      %v771 = vpop.permute.xlu0 %770
      %772 = vrot.lane.b32.xlu0 %v758, 112
      %v773 = vpop.permute.xlu0 %772
      %774 = vrot.lane.b32.xlu0 %v759, 112
      %v775 = vpop.permute.xlu0 %774
      %776 = vrot.lane.b32.xlu0 %v760, 112
      %v777 = vpop.permute.xlu0 %776
      %778 = vrot.lane.b32.xlu0 %v761, 112
      %v779 = vpop.permute.xlu0 %778
      %vm780 = vcmask 916480
      %v781 = vsel %vm780, %v769, %v771
      %v782 = vsel %vm780, %v771, %v773
      %v783 = vsel %vm780, %v775, %v777
      %v784 = vsel %vm780, %v777, %v779
      %v789 = vsel %vm466, %v781, 0.0
      %v790 = vsel %vm467, %v782, 0.0
      %v791 = vsel %vm466, %v783, 0.0
      %v792 = vsel %vm467, %v784, 0.0
      %v793 = vpack.c.bf16 %v791, %v789
      %v794 = vpack.c.bf16 %v792, %v790
      %795 = vst [vmem:[#allocation3 + $0x70] sm:$0xff] %v793
      %796 = vst [vmem:[#allocation3 + $0x78] sm:$0xff] %v794
      %v797 = vld [vmem:[#allocation2] sm:$0xff]
      %v798 = vld [vmem:[#allocation2 + $0x8] sm:$0xff]
      %v799 = vld [vmem:[#allocation2 + $0x10] sm:$0xff]
      %v800 = vld [vmem:[#allocation2 + $0x18] sm:$0xff]
      %v801 = vld [vmem:[#allocation2 + $0x20] sm:$0xff]
      %v802 = vld [vmem:[#allocation2 + $0x28] sm:$0xff]
      %809 = vrot.lane.b32.xlu0 %v797, 111
      %v810 = vpop.permute.xlu0 %809
      %811 = vrot.lane.b32.xlu0 %v798, 111
      %v812 = vpop.permute.xlu0 %811
      %813 = vrot.lane.b32.xlu0 %v799, 111
      %v814 = vpop.permute.xlu0 %813
      %815 = vrot.lane.b32.xlu0 %v800, 111
      %v816 = vpop.permute.xlu0 %815
      %817 = vrot.lane.b32.xlu0 %v801, 111
      %v818 = vpop.permute.xlu0 %817
      %819 = vrot.lane.b32.xlu0 %v802, 111
      %v820 = vpop.permute.xlu0 %819
      %vm821 = vcmask 908288
      %v822 = vsel %vm821, %v810, %v812
      %v823 = vsel %vm821, %v812, %v814
      %v824 = vsel %vm821, %v816, %v818
      %v825 = vsel %vm821, %v818, %v820
      %v830 = vsel %vm490, %v822, 0.0
      %v831 = vsel %vm491, %v823, 0.0
      %v832 = vsel %vm490, %v824, 0.0
      %v833 = vsel %vm491, %v825, 0.0
      %v834 = vpack.c.bf16 %v832, %v830
      %v835 = vpack.c.bf16 %v833, %v831
      %836 = vst [vmem:[#allocation3 + $0x80] sm:$0xff] %v834
      %837 = vst [vmem:[#allocation3 + $0x88] sm:$0xff] %v835
      %v838 = vld [vmem:[#allocation2] sm:$0xff]
      %v839 = vld [vmem:[#allocation2 + $0x8] sm:$0xff]
      %v840 = vld [vmem:[#allocation2 + $0x10] sm:$0xff]
      %v841 = vld [vmem:[#allocation2 + $0x18] sm:$0xff]
      %v842 = vld [vmem:[#allocation2 + $0x20] sm:$0xff]
      %v843 = vld [vmem:[#allocation2 + $0x28] sm:$0xff]
      %850 = vrot.lane.b32.xlu0 %v838, 110
      %v851 = vpop.permute.xlu0 %850
      %852 = vrot.lane.b32.xlu0 %v839, 110
      %v853 = vpop.permute.xlu0 %852
      %854 = vrot.lane.b32.xlu0 %v840, 110
      %v855 = vpop.permute.xlu0 %854
      %856 = vrot.lane.b32.xlu0 %v841, 110
      %v857 = vpop.permute.xlu0 %856
      %858 = vrot.lane.b32.xlu0 %v842, 110
      %v859 = vpop.permute.xlu0 %858
      %860 = vrot.lane.b32.xlu0 %v843, 110
      %v861 = vpop.permute.xlu0 %860
      %vm862 = vcmask 900096
      %v863 = vsel %vm862, %v851, %v853
      %v864 = vsel %vm862, %v853, %v855
      %v865 = vsel %vm862, %v857, %v859
      %v866 = vsel %vm862, %v859, %v861
      %v871 = vsel %vm541, %v863, 0.0
      %v872 = vsel %vm542, %v864, 0.0
      %v873 = vsel %vm541, %v865, 0.0
      %v874 = vsel %vm542, %v866, 0.0
      %v875 = vpack.c.bf16 %v873, %v871
      %v876 = vpack.c.bf16 %v874, %v872
      %877 = vst [vmem:[#allocation3 + $0x90] sm:$0xff] %v875
      %878 = vst [vmem:[#allocation3 + $0x98] sm:$0xff] %v876
      %v879 = vld [vmem:[#allocation2] sm:$0xff]
      %v880 = vld [vmem:[#allocation2 + $0x8] sm:$0xff]
      %v881 = vld [vmem:[#allocation2 + $0x10] sm:$0xff]
      %v882 = vld [vmem:[#allocation2 + $0x18] sm:$0xff]
      %v883 = vld [vmem:[#allocation2 + $0x20] sm:$0xff]
      %v884 = vld [vmem:[#allocation2 + $0x28] sm:$0xff]
      %v885 = vpack.c.bf16 %v882, %v879
      %v886 = vpack.c.bf16 %v883, %v880
      %v887 = vpack.c.bf16 %v884, %v881
      %891 = vrot.lane.b32.xlu0 %v885, 109
      %v892 = vpop.permute.xlu0 %891
      %893 = vrot.lane.b32.xlu0 %v886, 109
      %v894 = vpop.permute.xlu0 %893
      %895 = vrot.lane.b32.xlu0 %v887, 109
      %v896 = vpop.permute.xlu0 %895
      %vm897 = vcmask 891904
      %v898 = vsel %vm897, %v892, %v894
      %v899 = vsel %vm897, %v894, %v896
      %902 = vst [vmem:[#allocation3 + $0xa0] sm:$0xff] %v898
      %903 = vst [vmem:[#allocation3 + $0xa8] sm:$0xff] %v899
      %v904 = vld [vmem:[#allocation2] sm:$0xff]
      %v905 = vld [vmem:[#allocation2 + $0x8] sm:$0xff]
      %v906 = vld [vmem:[#allocation2 + $0x10] sm:$0xff]
      %v907 = vld [vmem:[#allocation2 + $0x18] sm:$0xff]
      %v908 = vld [vmem:[#allocation2 + $0x20] sm:$0xff]
      %v909 = vld [vmem:[#allocation2 + $0x28] sm:$0xff]
      %916 = vrot.lane.b32.xlu0 %v904, 108
      %v917 = vpop.permute.xlu0 %916
      %918 = vrot.lane.b32.xlu0 %v905, 108
      %v919 = vpop.permute.xlu0 %918
      %920 = vrot.lane.b32.xlu0 %v906, 108
      %v921 = vpop.permute.xlu0 %920
      %922 = vrot.lane.b32.xlu0 %v907, 108
      %v923 = vpop.permute.xlu0 %922
      %924 = vrot.lane.b32.xlu0 %v908, 108
      %v925 = vpop.permute.xlu0 %924
      %926 = vrot.lane.b32.xlu0 %v909, 108
      %v927 = vpop.permute.xlu0 %926
      %vm928 = vcmask 883712
      %v929 = vsel %vm928, %v917, %v919
      %v930 = vsel %vm928, %v919, %v921
      %v931 = vsel %vm928, %v923, %v925
      %v932 = vsel %vm928, %v925, %v927
      %v937 = vsel %vm617, %v929, 0.0
      %v938 = vsel %vm618, %v930, 0.0
      %v939 = vsel %vm617, %v931, 0.0
      %v940 = vsel %vm618, %v932, 0.0
      %v941 = vpack.c.bf16 %v939, %v937
      %v942 = vpack.c.bf16 %v940, %v938
      %943 = vst [vmem:[#allocation3 + $0xb0] sm:$0xff] %v941
      %944 = vst [vmem:[#allocation3 + $0xb8] sm:$0xff] %v942
      %v945 = vld [vmem:[#allocation2] sm:$0xff]
      %v946 = vld [vmem:[#allocation2 + $0x8] sm:$0xff]
      %v947 = vld [vmem:[#allocation2 + $0x10] sm:$0xff]
      %v948 = vld [vmem:[#allocation2 + $0x18] sm:$0xff]
      %v949 = vld [vmem:[#allocation2 + $0x20] sm:$0xff]
      %v950 = vld [vmem:[#allocation2 + $0x28] sm:$0xff]
      %957 = vrot.lane.b32.xlu0 %v945, 107
      %v958 = vpop.permute.xlu0 %957
      %959 = vrot.lane.b32.xlu0 %v946, 107
      %v960 = vpop.permute.xlu0 %959
      %961 = vrot.lane.b32.xlu0 %v947, 107
      %v962 = vpop.permute.xlu0 %961
      %963 = vrot.lane.b32.xlu0 %v948, 107
      %v964 = vpop.permute.xlu0 %963
      %965 = vrot.lane.b32.xlu0 %v949, 107
      %v966 = vpop.permute.xlu0 %965
      %967 = vrot.lane.b32.xlu0 %v950, 107
      %v968 = vpop.permute.xlu0 %967
      %vm969 = vcmask 875520
      %v970 = vsel %vm969, %v958, %v960
      %v971 = vsel %vm969, %v960, %v962
      %v972 = vsel %vm969, %v964, %v966
      %v973 = vsel %vm969, %v966, %v968
      %v978 = vsel %vm668, %v970, 0.0
      %v979 = vsel %vm669, %v971, 0.0
      %v980 = vsel %vm668, %v972, 0.0
      %v981 = vsel %vm669, %v973, 0.0
      %v982 = vpack.c.bf16 %v980, %v978
      %v983 = vpack.c.bf16 %v981, %v979
      %984 = vst [vmem:[#allocation3 + $0xc0] sm:$0xff] %v982
      %985 = vst [vmem:[#allocation3 + $0xc8] sm:$0xff] %v983
      %v986 = vld [vmem:[#allocation2] sm:$0xff]
      %v987 = vld [vmem:[#allocation2 + $0x8] sm:$0xff]
      %v988 = vld [vmem:[#allocation2 + $0x10] sm:$0xff]
      %v989 = vld [vmem:[#allocation2 + $0x18] sm:$0xff]
      %v990 = vld [vmem:[#allocation2 + $0x20] sm:$0xff]
      %v991 = vld [vmem:[#allocation2 + $0x28] sm:$0xff]
      %998 = vrot.lane.b32.xlu0 %v986, 106
      %v999 = vpop.permute.xlu0 %998
      %1000 = vrot.lane.b32.xlu0 %v987, 106
      %v1001 = vpop.permute.xlu0 %1000
      %1002 = vrot.lane.b32.xlu0 %v988, 106
      %v1003 = vpop.permute.xlu0 %1002
      %1004 = vrot.lane.b32.xlu0 %v989, 106
      %v1005 = vpop.permute.xlu0 %1004
      %1006 = vrot.lane.b32.xlu0 %v990, 106
      %v1007 = vpop.permute.xlu0 %1006
      %1008 = vrot.lane.b32.xlu0 %v991, 106
      %v1009 = vpop.permute.xlu0 %1008
      %vm1010 = vcmask 867328
      %v1011 = vsel %vm1010, %v999, %v1001
      %v1012 = vsel %vm1010, %v1001, %v1003
      %v1013 = vsel %vm1010, %v1005, %v1007
      %v1014 = vsel %vm1010, %v1007, %v1009
      %v1019 = vsel %vm719, %v1011, 0.0
      %v1020 = vsel %vm720, %v1012, 0.0
      %v1021 = vsel %vm719, %v1013, 0.0
      %v1022 = vsel %vm720, %v1014, 0.0
      %v1023 = vpack.c.bf16 %v1021, %v1019
      %v1024 = vpack.c.bf16 %v1022, %v1020
      %1025 = vst [vmem:[#allocation3 + $0xd0] sm:$0xff] %v1023
      %1026 = vst [vmem:[#allocation3 + $0xd8] sm:$0xff] %v1024
      %v1027 = vld [vmem:[#allocation2] sm:$0xff]
      %v1028 = vld [vmem:[#allocation2 + $0x8] sm:$0xff]
      %v1029 = vld [vmem:[#allocation2 + $0x10] sm:$0xff]
      %v1030 = vld [vmem:[#allocation2 + $0x18] sm:$0xff]
      %v1031 = vld [vmem:[#allocation2 + $0x20] sm:$0xff]
      %v1032 = vld [vmem:[#allocation2 + $0x28] sm:$0xff]
      %1039 = vrot.lane.b32.xlu0 %v1027, 96
      %v1040 = vpop.permute.xlu0 %1039
      %1041 = vrot.lane.b32.xlu0 %v1028, 96
      %v1042 = vpop.permute.xlu0 %1041
      %1043 = vrot.lane.b32.xlu0 %v1029, 96
      %v1044 = vpop.permute.xlu0 %1043
      %1045 = vrot.lane.b32.xlu0 %v1030, 96
      %v1046 = vpop.permute.xlu0 %1045
      %1047 = vrot.lane.b32.xlu0 %v1031, 96
      %v1048 = vpop.permute.xlu0 %1047
      %1049 = vrot.lane.b32.xlu0 %v1032, 96
      %v1050 = vpop.permute.xlu0 %1049
      %vm1051 = vcmask 785408
      %v1052 = vsel %vm1051, %v1040, %v1042
      %v1053 = vsel %vm1051, %v1042, %v1044
      %v1054 = vsel %vm1051, %v1046, %v1048
      %v1055 = vsel %vm1051, %v1048, %v1050
      %v1060 = vsel %vm466, %v1052, 0.0
      %v1061 = vsel %vm467, %v1053, 0.0
      %v1062 = vsel %vm466, %v1054, 0.0
      %v1063 = vsel %vm467, %v1055, 0.0
      %v1064 = vpack.c.bf16 %v1062, %v1060
      %v1065 = vpack.c.bf16 %v1063, %v1061
      %1066 = vst [vmem:[#allocation3 + $0xe0] sm:$0xff] %v1064
      %1067 = vst [vmem:[#allocation3 + $0xe8] sm:$0xff] %v1065
      %v1068 = vld [vmem:[#allocation2] sm:$0xff]
      %v1069 = vld [vmem:[#allocation2 + $0x8] sm:$0xff]
      %v1070 = vld [vmem:[#allocation2 + $0x10] sm:$0xff]
      %v1071 = vld [vmem:[#allocation2 + $0x18] sm:$0xff]
      %v1072 = vld [vmem:[#allocation2 + $0x20] sm:$0xff]
      %v1073 = vld [vmem:[#allocation2 + $0x28] sm:$0xff]
      %1080 = vrot.lane.b32.xlu0 %v1068, 95
      %v1081 = vpop.permute.xlu0 %1080
      %1082 = vrot.lane.b32.xlu0 %v1069, 95
      %v1083 = vpop.permute.xlu0 %1082
      %1084 = vrot.lane.b32.xlu0 %v1070, 95
      %v1085 = vpop.permute.xlu0 %1084
      %1086 = vrot.lane.b32.xlu0 %v1071, 95
      %v1087 = vpop.permute.xlu0 %1086
      %1088 = vrot.lane.b32.xlu0 %v1072, 95
      %v1089 = vpop.permute.xlu0 %1088
      %1090 = vrot.lane.b32.xlu0 %v1073, 95
      %v1091 = vpop.permute.xlu0 %1090
      %vm1092 = vcmask 777216
      %v1093 = vsel %vm1092, %v1081, %v1083
      %v1094 = vsel %vm1092, %v1083, %v1085
      %v1095 = vsel %vm1092, %v1087, %v1089
      %v1096 = vsel %vm1092, %v1089, %v1091
      %v1101 = vsel %vm490, %v1093, 0.0
      %v1102 = vsel %vm491, %v1094, 0.0
      %v1103 = vsel %vm490, %v1095, 0.0
      %v1104 = vsel %vm491, %v1096, 0.0
      %v1105 = vpack.c.bf16 %v1103, %v1101
      %v1106 = vpack.c.bf16 %v1104, %v1102
      %1107 = vst [vmem:[#allocation3 + $0xf0] sm:$0xff] %v1105
      %1108 = vst [vmem:[#allocation3 + $0xf8] sm:$0xff] %v1106
      %v1109 = vld [vmem:[#allocation2] sm:$0xff]
      %v1110 = vld [vmem:[#allocation2 + $0x8] sm:$0xff]
      %v1111 = vld [vmem:[#allocation2 + $0x10] sm:$0xff]
      %v1112 = vld [vmem:[#allocation2 + $0x18] sm:$0xff]
      %v1113 = vld [vmem:[#allocation2 + $0x20] sm:$0xff]
      %v1114 = vld [vmem:[#allocation2 + $0x28] sm:$0xff]
      %1121 = vrot.lane.b32.xlu0 %v1109, 94
      %v1122 = vpop.permute.xlu0 %1121
      %1123 = vrot.lane.b32.xlu0 %v1110, 94
      %v1124 = vpop.permute.xlu0 %1123
      %1125 = vrot.lane.b32.xlu0 %v1111, 94
      %v1126 = vpop.permute.xlu0 %1125
      %1127 = vrot.lane.b32.xlu0 %v1112, 94
      %v1128 = vpop.permute.xlu0 %1127
      %1129 = vrot.lane.b32.xlu0 %v1113, 94
      %v1130 = vpop.permute.xlu0 %1129
      %1131 = vrot.lane.b32.xlu0 %v1114, 94
      %v1132 = vpop.permute.xlu0 %1131
      %vm1133 = vcmask 769024
      %v1134 = vsel %vm1133, %v1122, %v1124
      %v1135 = vsel %vm1133, %v1124, %v1126
      %v1136 = vsel %vm1133, %v1128, %v1130
      %v1137 = vsel %vm1133, %v1130, %v1132
      %v1142 = vsel %vm541, %v1134, 0.0
      %v1143 = vsel %vm542, %v1135, 0.0
      %v1144 = vsel %vm541, %v1136, 0.0
      %v1145 = vsel %vm542, %v1137, 0.0
      %v1146 = vpack.c.bf16 %v1144, %v1142
      %v1147 = vpack.c.bf16 %v1145, %v1143
      %1148 = vst [vmem:[#allocation3 + $0x100] sm:$0xff] %v1146
      %1149 = vst [vmem:[#allocation3 + $0x108] sm:$0xff] %v1147
      %v1150 = vld [vmem:[#allocation2] sm:$0xff]
      %v1151 = vld [vmem:[#allocation2 + $0x8] sm:$0xff]
      %v1152 = vld [vmem:[#allocation2 + $0x10] sm:$0xff]
      %v1153 = vld [vmem:[#allocation2 + $0x18] sm:$0xff]
      %v1154 = vld [vmem:[#allocation2 + $0x20] sm:$0xff]
      %v1155 = vld [vmem:[#allocation2 + $0x28] sm:$0xff]
      %v1156 = vpack.c.bf16 %v1153, %v1150
      %v1157 = vpack.c.bf16 %v1154, %v1151
      %v1158 = vpack.c.bf16 %v1155, %v1152
      %1162 = vrot.lane.b32.xlu0 %v1156, 93
      %v1163 = vpop.permute.xlu0 %1162
      %1164 = vrot.lane.b32.xlu0 %v1157, 93
      %v1165 = vpop.permute.xlu0 %1164
      %1166 = vrot.lane.b32.xlu0 %v1158, 93
      %v1167 = vpop.permute.xlu0 %1166
      %vm1168 = vcmask 760832
      %v1169 = vsel %vm1168, %v1163, %v1165
      %v1170 = vsel %vm1168, %v1165, %v1167
      %1173 = vst [vmem:[#allocation3 + $0x110] sm:$0xff] %v1169
      %1174 = vst [vmem:[#allocation3 + $0x118] sm:$0xff] %v1170
      %v1175 = vld [vmem:[#allocation2] sm:$0xff]
      %v1176 = vld [vmem:[#allocation2 + $0x8] sm:$0xff]
      %v1177 = vld [vmem:[#allocation2 + $0x10] sm:$0xff]
      %v1178 = vld [vmem:[#allocation2 + $0x18] sm:$0xff]
      %v1179 = vld [vmem:[#allocation2 + $0x20] sm:$0xff]
      %v1180 = vld [vmem:[#allocation2 + $0x28] sm:$0xff]
      %1187 = vrot.lane.b32.xlu0 %v1175, 92
      %v1188 = vpop.permute.xlu0 %1187
      %1189 = vrot.lane.b32.xlu0 %v1176, 92
      %v1190 = vpop.permute.xlu0 %1189
      %1191 = vrot.lane.b32.xlu0 %v1177, 92
      %v1192 = vpop.permute.xlu0 %1191
      %1193 = vrot.lane.b32.xlu0 %v1178, 92
      %v1194 = vpop.permute.xlu0 %1193
      %1195 = vrot.lane.b32.xlu0 %v1179, 92
      %v1196 = vpop.permute.xlu0 %1195
      %1197 = vrot.lane.b32.xlu0 %v1180, 92
      %v1198 = vpop.permute.xlu0 %1197
      %vm1199 = vcmask 752640
      %v1200 = vsel %vm1199, %v1188, %v1190
      %v1201 = vsel %vm1199, %v1190, %v1192
      %v1202 = vsel %vm1199, %v1194, %v1196
      %v1203 = vsel %vm1199, %v1196, %v1198
      %v1208 = vsel %vm617, %v1200, 0.0
      %v1209 = vsel %vm618, %v1201, 0.0
      %v1210 = vsel %vm617, %v1202, 0.0
      %v1211 = vsel %vm618, %v1203, 0.0
      %v1212 = vpack.c.bf16 %v1210, %v1208
      %v1213 = vpack.c.bf16 %v1211, %v1209
      %1214 = vst [vmem:[#allocation3 + $0x120] sm:$0xff] %v1212
      %1215 = vst [vmem:[#allocation3 + $0x128] sm:$0xff] %v1213
      %v1216 = vld [vmem:[#allocation2] sm:$0xff]
      %v1217 = vld [vmem:[#allocation2 + $0x8] sm:$0xff]
      %v1218 = vld [vmem:[#allocation2 + $0x10] sm:$0xff]
      %v1219 = vld [vmem:[#allocation2 + $0x18] sm:$0xff]
      %v1220 = vld [vmem:[#allocation2 + $0x20] sm:$0xff]
      %v1221 = vld [vmem:[#allocation2 + $0x28] sm:$0xff]
      %1228 = vrot.lane.b32.xlu0 %v1216, 91
      %v1229 = vpop.permute.xlu0 %1228
      %1230 = vrot.lane.b32.xlu0 %v1217, 91
      %v1231 = vpop.permute.xlu0 %1230
      %1232 = vrot.lane.b32.xlu0 %v1218, 91
      %v1233 = vpop.permute.xlu0 %1232
      %1234 = vrot.lane.b32.xlu0 %v1219, 91
      %v1235 = vpop.permute.xlu0 %1234
      %1236 = vrot.lane.b32.xlu0 %v1220, 91
      %v1237 = vpop.permute.xlu0 %1236
      %1238 = vrot.lane.b32.xlu0 %v1221, 91
      %v1239 = vpop.permute.xlu0 %1238
      %vm1240 = vcmask 744448
      %v1241 = vsel %vm1240, %v1229, %v1231
      %v1242 = vsel %vm1240, %v1231, %v1233
      %v1243 = vsel %vm1240, %v1235, %v1237
      %v1244 = vsel %vm1240, %v1237, %v1239
      %v1249 = vsel %vm668, %v1241, 0.0
      %v1250 = vsel %vm669, %v1242, 0.0
      %v1251 = vsel %vm668, %v1243, 0.0
      %v1252 = vsel %vm669, %v1244, 0.0
      %v1253 = vpack.c.bf16 %v1251, %v1249
      %v1254 = vpack.c.bf16 %v1252, %v1250
      %1255 = vst [vmem:[#allocation3 + $0x130] sm:$0xff] %v1253
      %1256 = vst [vmem:[#allocation3 + $0x138] sm:$0xff] %v1254
      %v1257 = vld [vmem:[#allocation2] sm:$0xff]
      %v1258 = vld [vmem:[#allocation2 + $0x8] sm:$0xff]
      %v1259 = vld [vmem:[#allocation2 + $0x10] sm:$0xff]
      %v1260 = vld [vmem:[#allocation2 + $0x18] sm:$0xff]
      %v1261 = vld [vmem:[#allocation2 + $0x20] sm:$0xff]
      %v1262 = vld [vmem:[#allocation2 + $0x28] sm:$0xff]
      %1269 = vrot.lane.b32.xlu0 %v1257, 90
      %v1270 = vpop.permute.xlu0 %1269
      %1271 = vrot.lane.b32.xlu0 %v1258, 90
      %v1272 = vpop.permute.xlu0 %1271
      %1273 = vrot.lane.b32.xlu0 %v1259, 90
      %v1274 = vpop.permute.xlu0 %1273
      %1275 = vrot.lane.b32.xlu0 %v1260, 90
      %v1276 = vpop.permute.xlu0 %1275
      %1277 = vrot.lane.b32.xlu0 %v1261, 90
      %v1278 = vpop.permute.xlu0 %1277
      %1279 = vrot.lane.b32.xlu0 %v1262, 90
      %v1280 = vpop.permute.xlu0 %1279
      %vm1281 = vcmask 736256
      %v1282 = vsel %vm1281, %v1270, %v1272
      %v1283 = vsel %vm1281, %v1272, %v1274
      %v1284 = vsel %vm1281, %v1276, %v1278
      %v1285 = vsel %vm1281, %v1278, %v1280
      %v1290 = vsel %vm719, %v1282, 0.0
      %v1291 = vsel %vm720, %v1283, 0.0
      %v1292 = vsel %vm719, %v1284, 0.0
      %v1293 = vsel %vm720, %v1285, 0.0
      %v1294 = vpack.c.bf16 %v1292, %v1290
      %v1295 = vpack.c.bf16 %v1293, %v1291
      %1296 = vst [vmem:[#allocation3 + $0x140] sm:$0xff] %v1294
      %1297 = vst [vmem:[#allocation3 + $0x148] sm:$0xff] %v1295
      %v1298 = vld [vmem:[#allocation2] sm:$0xff]
      %v1299 = vld [vmem:[#allocation2 + $0x8] sm:$0xff]
      %v1300 = vld [vmem:[#allocation2 + $0x10] sm:$0xff]
      %v1301 = vld [vmem:[#allocation2 + $0x18] sm:$0xff]
      %v1302 = vld [vmem:[#allocation2 + $0x20] sm:$0xff]
      %v1303 = vld [vmem:[#allocation2 + $0x28] sm:$0xff]
      %1310 = vrot.lane.b32.xlu0 %v1298, 80
      %v1311 = vpop.permute.xlu0 %1310
      %1312 = vrot.lane.b32.xlu0 %v1299, 80
      %v1313 = vpop.permute.xlu0 %1312
      %1314 = vrot.lane.b32.xlu0 %v1300, 80
      %v1315 = vpop.permute.xlu0 %1314
      %1316 = vrot.lane.b32.xlu0 %v1301, 80
      %v1317 = vpop.permute.xlu0 %1316
      %1318 = vrot.lane.b32.xlu0 %v1302, 80
      %v1319 = vpop.permute.xlu0 %1318
      %1320 = vrot.lane.b32.xlu0 %v1303, 80
      %v1321 = vpop.permute.xlu0 %1320
      %vm1322 = vcmask 654336
      %v1323 = vsel %vm1322, %v1311, %v1313
      %v1324 = vsel %vm1322, %v1313, %v1315
      %v1325 = vsel %vm1322, %v1317, %v1319
      %v1326 = vsel %vm1322, %v1319, %v1321
      %v1331 = vsel %vm466, %v1323, 0.0
      %v1332 = vsel %vm467, %v1324, 0.0
      %v1333 = vsel %vm466, %v1325, 0.0
      %v1334 = vsel %vm467, %v1326, 0.0
      %v1335 = vpack.c.bf16 %v1333, %v1331
      %v1336 = vpack.c.bf16 %v1334, %v1332
      %1337 = vst [vmem:[#allocation3 + $0x150] sm:$0xff] %v1335
      %1338 = vst [vmem:[#allocation3 + $0x158] sm:$0xff] %v1336
      %v1339 = vld [vmem:[#allocation2] sm:$0xff]
      %v1340 = vld [vmem:[#allocation2 + $0x8] sm:$0xff]
      %v1341 = vld [vmem:[#allocation2 + $0x10] sm:$0xff]
      %v1342 = vld [vmem:[#allocation2 + $0x18] sm:$0xff]
      %v1343 = vld [vmem:[#allocation2 + $0x20] sm:$0xff]
      %v1344 = vld [vmem:[#allocation2 + $0x28] sm:$0xff]
      %1351 = vrot.lane.b32.xlu0 %v1339, 79
      %v1352 = vpop.permute.xlu0 %1351
      %1353 = vrot.lane.b32.xlu0 %v1340, 79
      %v1354 = vpop.permute.xlu0 %1353
      %1355 = vrot.lane.b32.xlu0 %v1341, 79
      %v1356 = vpop.permute.xlu0 %1355
      %1357 = vrot.lane.b32.xlu0 %v1342, 79
      %v1358 = vpop.permute.xlu0 %1357
      %1359 = vrot.lane.b32.xlu0 %v1343, 79
      %v1360 = vpop.permute.xlu0 %1359
      %1361 = vrot.lane.b32.xlu0 %v1344, 79
      %v1362 = vpop.permute.xlu0 %1361
      %vm1363 = vcmask 646144
      %v1364 = vsel %vm1363, %v1352, %v1354
      %v1365 = vsel %vm1363, %v1354, %v1356
      %v1366 = vsel %vm1363, %v1358, %v1360
      %v1367 = vsel %vm1363, %v1360, %v1362
      %v1372 = vsel %vm490, %v1364, 0.0
      %v1373 = vsel %vm491, %v1365, 0.0
      %v1374 = vsel %vm490, %v1366, 0.0
      %v1375 = vsel %vm491, %v1367, 0.0
      %v1376 = vpack.c.bf16 %v1374, %v1372
      %v1377 = vpack.c.bf16 %v1375, %v1373
      %1378 = vst [vmem:[#allocation3 + $0x160] sm:$0xff] %v1376
      %1379 = vst [vmem:[#allocation3 + $0x168] sm:$0xff] %v1377
      %v1380 = vld [vmem:[#allocation2] sm:$0xff]
      %v1381 = vld [vmem:[#allocation2 + $0x8] sm:$0xff]
      %v1382 = vld [vmem:[#allocation2 + $0x10] sm:$0xff]
      %v1383 = vld [vmem:[#allocation2 + $0x18] sm:$0xff]
      %v1384 = vld [vmem:[#allocation2 + $0x20] sm:$0xff]
      %v1385 = vld [vmem:[#allocation2 + $0x28] sm:$0xff]
      %1392 = vrot.lane.b32.xlu0 %v1380, 78
      %v1393 = vpop.permute.xlu0 %1392
      %1394 = vrot.lane.b32.xlu0 %v1381, 78
      %v1395 = vpop.permute.xlu0 %1394
      %1396 = vrot.lane.b32.xlu0 %v1382, 78
      %v1397 = vpop.permute.xlu0 %1396
      %1398 = vrot.lane.b32.xlu0 %v1383, 78
      %v1399 = vpop.permute.xlu0 %1398
      %1400 = vrot.lane.b32.xlu0 %v1384, 78
      %v1401 = vpop.permute.xlu0 %1400
      %1402 = vrot.lane.b32.xlu0 %v1385, 78
      %v1403 = vpop.permute.xlu0 %1402
      %vm1404 = vcmask 637952
      %v1405 = vsel %vm1404, %v1393, %v1395
      %v1406 = vsel %vm1404, %v1395, %v1397
      %v1407 = vsel %vm1404, %v1399, %v1401
      %v1408 = vsel %vm1404, %v1401, %v1403
      %v1413 = vsel %vm541, %v1405, 0.0
      %v1414 = vsel %vm542, %v1406, 0.0
      %v1415 = vsel %vm541, %v1407, 0.0
      %v1416 = vsel %vm542, %v1408, 0.0
      %v1417 = vpack.c.bf16 %v1415, %v1413
      %v1418 = vpack.c.bf16 %v1416, %v1414
      %1419 = vst [vmem:[#allocation3 + $0x170] sm:$0xff] %v1417
      %1420 = vst [vmem:[#allocation3 + $0x178] sm:$0xff] %v1418
      %v1421 = vld [vmem:[#allocation2] sm:$0xff]
      %v1422 = vld [vmem:[#allocation2 + $0x8] sm:$0xff]
      %v1423 = vld [vmem:[#allocation2 + $0x10] sm:$0xff]
      %v1424 = vld [vmem:[#allocation2 + $0x18] sm:$0xff]
      %v1425 = vld [vmem:[#allocation2 + $0x20] sm:$0xff]
      %v1426 = vld [vmem:[#allocation2 + $0x28] sm:$0xff]
      %v1427 = vpack.c.bf16 %v1424, %v1421
      %v1428 = vpack.c.bf16 %v1425, %v1422
      %v1429 = vpack.c.bf16 %v1426, %v1423
      %1433 = vrot.lane.b32.xlu0 %v1427, 77
      %v1434 = vpop.permute.xlu0 %1433
      %1435 = vrot.lane.b32.xlu0 %v1428, 77
      %v1436 = vpop.permute.xlu0 %1435
      %1437 = vrot.lane.b32.xlu0 %v1429, 77
      %v1438 = vpop.permute.xlu0 %1437
      %vm1439 = vcmask 629760
      %v1440 = vsel %vm1439, %v1434, %v1436
      %v1441 = vsel %vm1439, %v1436, %v1438
      %1444 = vst [vmem:[#allocation3 + $0x180] sm:$0xff] %v1440
      %1445 = vst [vmem:[#allocation3 + $0x188] sm:$0xff] %v1441
      %v1446 = vld [vmem:[#allocation2] sm:$0xff]
      %v1447 = vld [vmem:[#allocation2 + $0x8] sm:$0xff]
      %v1448 = vld [vmem:[#allocation2 + $0x10] sm:$0xff]
      %v1449 = vld [vmem:[#allocation2 + $0x18] sm:$0xff]
      %v1450 = vld [vmem:[#allocation2 + $0x20] sm:$0xff]
      %v1451 = vld [vmem:[#allocation2 + $0x28] sm:$0xff]
      %1458 = vrot.lane.b32.xlu0 %v1446, 76
      %v1459 = vpop.permute.xlu0 %1458
      %1460 = vrot.lane.b32.xlu0 %v1447, 76
      %v1461 = vpop.permute.xlu0 %1460
      %1462 = vrot.lane.b32.xlu0 %v1448, 76
      %v1463 = vpop.permute.xlu0 %1462
      %1464 = vrot.lane.b32.xlu0 %v1449, 76
      %v1465 = vpop.permute.xlu0 %1464
      %1466 = vrot.lane.b32.xlu0 %v1450, 76
      %v1467 = vpop.permute.xlu0 %1466
      %1468 = vrot.lane.b32.xlu0 %v1451, 76
      %v1469 = vpop.permute.xlu0 %1468
      %vm1470 = vcmask 621568
      %v1471 = vsel %vm1470, %v1459, %v1461
      %v1472 = vsel %vm1470, %v1461, %v1463
      %v1473 = vsel %vm1470, %v1465, %v1467
      %v1474 = vsel %vm1470, %v1467, %v1469
      %v1479 = vsel %vm617, %v1471, 0.0
      %v1480 = vsel %vm618, %v1472, 0.0
      %v1481 = vsel %vm617, %v1473, 0.0
      %v1482 = vsel %vm618, %v1474, 0.0
      %v1483 = vpack.c.bf16 %v1481, %v1479
      %v1484 = vpack.c.bf16 %v1482, %v1480
      %1485 = vst [vmem:[#allocation3 + $0x190] sm:$0xff] %v1483
      %1486 = vst [vmem:[#allocation3 + $0x198] sm:$0xff] %v1484
      %v1487 = vld [vmem:[#allocation2] sm:$0xff]
      %v1488 = vld [vmem:[#allocation2 + $0x8] sm:$0xff]
      %v1489 = vld [vmem:[#allocation2 + $0x10] sm:$0xff]
      %v1490 = vld [vmem:[#allocation2 + $0x18] sm:$0xff]
      %v1491 = vld [vmem:[#allocation2 + $0x20] sm:$0xff]
      %v1492 = vld [vmem:[#allocation2 + $0x28] sm:$0xff]
      %1499 = vrot.lane.b32.xlu0 %v1487, 75
      %v1500 = vpop.permute.xlu0 %1499
      %1501 = vrot.lane.b32.xlu0 %v1488, 75
      %v1502 = vpop.permute.xlu0 %1501
      %1503 = vrot.lane.b32.xlu0 %v1489, 75
      %v1504 = vpop.permute.xlu0 %1503
      %1505 = vrot.lane.b32.xlu0 %v1490, 75
      %v1506 = vpop.permute.xlu0 %1505
      %1507 = vrot.lane.b32.xlu0 %v1491, 75
      %v1508 = vpop.permute.xlu0 %1507
      %1509 = vrot.lane.b32.xlu0 %v1492, 75
      %v1510 = vpop.permute.xlu0 %1509
      %vm1511 = vcmask 613376
      %v1512 = vsel %vm1511, %v1500, %v1502
      %v1513 = vsel %vm1511, %v1502, %v1504
      %v1514 = vsel %vm1511, %v1506, %v1508
      %v1515 = vsel %vm1511, %v1508, %v1510
      %v1520 = vsel %vm668, %v1512, 0.0
      %v1521 = vsel %vm669, %v1513, 0.0
      %v1522 = vsel %vm668, %v1514, 0.0
      %v1523 = vsel %vm669, %v1515, 0.0
      %v1524 = vpack.c.bf16 %v1522, %v1520
      %v1525 = vpack.c.bf16 %v1523, %v1521
      %1526 = vst [vmem:[#allocation3 + $0x1a0] sm:$0xff] %v1524
      %1527 = vst [vmem:[#allocation3 + $0x1a8] sm:$0xff] %v1525
      %v1528 = vld [vmem:[#allocation2] sm:$0xff]
      %v1529 = vld [vmem:[#allocation2 + $0x8] sm:$0xff]
      %v1530 = vld [vmem:[#allocation2 + $0x10] sm:$0xff]
      %v1531 = vld [vmem:[#allocation2 + $0x18] sm:$0xff]
      %v1532 = vld [vmem:[#allocation2 + $0x20] sm:$0xff]
      %v1533 = vld [vmem:[#allocation2 + $0x28] sm:$0xff]
      %1540 = vrot.lane.b32.xlu0 %v1528, 74
      %v1541 = vpop.permute.xlu0 %1540
      %1542 = vrot.lane.b32.xlu0 %v1529, 74
      %v1543 = vpop.permute.xlu0 %1542
      %1544 = vrot.lane.b32.xlu0 %v1530, 74
      %v1545 = vpop.permute.xlu0 %1544
      %1546 = vrot.lane.b32.xlu0 %v1531, 74
      %v1547 = vpop.permute.xlu0 %1546
      %1548 = vrot.lane.b32.xlu0 %v1532, 74
      %v1549 = vpop.permute.xlu0 %1548
      %1550 = vrot.lane.b32.xlu0 %v1533, 74
      %v1551 = vpop.permute.xlu0 %1550
      %vm1552 = vcmask 605184
      %v1553 = vsel %vm1552, %v1541, %v1543
      %v1554 = vsel %vm1552, %v1543, %v1545
      %v1555 = vsel %vm1552, %v1547, %v1549
      %v1556 = vsel %vm1552, %v1549, %v1551
      %v1561 = vsel %vm719, %v1553, 0.0
      %v1562 = vsel %vm720, %v1554, 0.0
      %v1563 = vsel %vm719, %v1555, 0.0
      %v1564 = vsel %vm720, %v1556, 0.0
      %v1565 = vpack.c.bf16 %v1563, %v1561
      %v1566 = vpack.c.bf16 %v1564, %v1562
      %1567 = vst [vmem:[#allocation3 + $0x1b0] sm:$0xff] %v1565
      %1568 = vst [vmem:[#allocation3 + $0x1b8] sm:$0xff] %v1566
      %v1569 = vld [vmem:[#allocation2] sm:$0xff]
      %v1570 = vld [vmem:[#allocation2 + $0x8] sm:$0xff]
      %v1571 = vld [vmem:[#allocation2 + $0x10] sm:$0xff]
      %v1572 = vld [vmem:[#allocation2 + $0x18] sm:$0xff]
      %v1573 = vld [vmem:[#allocation2 + $0x20] sm:$0xff]
      %v1574 = vld [vmem:[#allocation2 + $0x28] sm:$0xff]
      %1581 = vrot.lane.b32.xlu0 %v1569, 64
      %v1582 = vpop.permute.xlu0 %1581
      %1583 = vrot.lane.b32.xlu0 %v1570, 64
      %v1584 = vpop.permute.xlu0 %1583
      %1585 = vrot.lane.b32.xlu0 %v1571, 64
      %v1586 = vpop.permute.xlu0 %1585
      %1587 = vrot.lane.b32.xlu0 %v1572, 64
      %v1588 = vpop.permute.xlu0 %1587
      %1589 = vrot.lane.b32.xlu0 %v1573, 64
      %v1590 = vpop.permute.xlu0 %1589
      %1591 = vrot.lane.b32.xlu0 %v1574, 64
      %v1592 = vpop.permute.xlu0 %1591
      %vm1593 = vcmask 523264
      %v1594 = vsel %vm1593, %v1582, %v1584
      %v1595 = vsel %vm1593, %v1584, %v1586
      %v1596 = vsel %vm1593, %v1588, %v1590
      %v1597 = vsel %vm1593, %v1590, %v1592
      %v1602 = vsel %vm466, %v1594, 0.0
      %v1603 = vsel %vm467, %v1595, 0.0
      %v1604 = vsel %vm466, %v1596, 0.0
      %v1605 = vsel %vm467, %v1597, 0.0
      %v1606 = vpack.c.bf16 %v1604, %v1602
      %v1607 = vpack.c.bf16 %v1605, %v1603
      %1608 = vst [vmem:[#allocation3 + $0x1c0] sm:$0xff] %v1606
      %1609 = vst [vmem:[#allocation3 + $0x1c8] sm:$0xff] %v1607
      %v1610 = vld [vmem:[#allocation2] sm:$0xff]
      %v1611 = vld [vmem:[#allocation2 + $0x8] sm:$0xff]
      %v1612 = vld [vmem:[#allocation2 + $0x10] sm:$0xff]
      %v1613 = vld [vmem:[#allocation2 + $0x18] sm:$0xff]
      %v1614 = vld [vmem:[#allocation2 + $0x20] sm:$0xff]
      %v1615 = vld [vmem:[#allocation2 + $0x28] sm:$0xff]
      %1622 = vrot.lane.b32.xlu0 %v1610, 63
      %v1623 = vpop.permute.xlu0 %1622
      %1624 = vrot.lane.b32.xlu0 %v1611, 63
      %v1625 = vpop.permute.xlu0 %1624
      %1626 = vrot.lane.b32.xlu0 %v1612, 63
      %v1627 = vpop.permute.xlu0 %1626
      %1628 = vrot.lane.b32.xlu0 %v1613, 63
      %v1629 = vpop.permute.xlu0 %1628
      %1630 = vrot.lane.b32.xlu0 %v1614, 63
      %v1631 = vpop.permute.xlu0 %1630
      %1632 = vrot.lane.b32.xlu0 %v1615, 63
      %v1633 = vpop.permute.xlu0 %1632
      %vm1634 = vcmask 515072
      %v1635 = vsel %vm1634, %v1623, %v1625
      %v1636 = vsel %vm1634, %v1625, %v1627
      %v1637 = vsel %vm1634, %v1629, %v1631
      %v1638 = vsel %vm1634, %v1631, %v1633
      %v1643 = vsel %vm490, %v1635, 0.0
      %v1644 = vsel %vm491, %v1636, 0.0
      %v1645 = vsel %vm490, %v1637, 0.0
      %v1646 = vsel %vm491, %v1638, 0.0
      %v1647 = vpack.c.bf16 %v1645, %v1643
      %v1648 = vpack.c.bf16 %v1646, %v1644
      %1649 = vst [vmem:[#allocation3 + $0x1d0] sm:$0xff] %v1647
      %1650 = vst [vmem:[#allocation3 + $0x1d8] sm:$0xff] %v1648
      %v1651 = vld [vmem:[#allocation2] sm:$0xff]
      %v1652 = vld [vmem:[#allocation2 + $0x8] sm:$0xff]
      %v1653 = vld [vmem:[#allocation2 + $0x10] sm:$0xff]
      %v1654 = vld [vmem:[#allocation2 + $0x18] sm:$0xff]
      %v1655 = vld [vmem:[#allocation2 + $0x20] sm:$0xff]
      %v1656 = vld [vmem:[#allocation2 + $0x28] sm:$0xff]
      %1663 = vrot.lane.b32.xlu0 %v1651, 62
      %v1664 = vpop.permute.xlu0 %1663
      %1665 = vrot.lane.b32.xlu0 %v1652, 62
      %v1666 = vpop.permute.xlu0 %1665
      %1667 = vrot.lane.b32.xlu0 %v1653, 62
      %v1668 = vpop.permute.xlu0 %1667
      %1669 = vrot.lane.b32.xlu0 %v1654, 62
      %v1670 = vpop.permute.xlu0 %1669
      %1671 = vrot.lane.b32.xlu0 %v1655, 62
      %v1672 = vpop.permute.xlu0 %1671
      %1673 = vrot.lane.b32.xlu0 %v1656, 62
      %v1674 = vpop.permute.xlu0 %1673
      %vm1675 = vcmask 506880
      %v1676 = vsel %vm1675, %v1664, %v1666
      %v1677 = vsel %vm1675, %v1666, %v1668
      %v1678 = vsel %vm1675, %v1670, %v1672
      %v1679 = vsel %vm1675, %v1672, %v1674
      %v1684 = vsel %vm541, %v1676, 0.0
      %v1685 = vsel %vm542, %v1677, 0.0
      %v1686 = vsel %vm541, %v1678, 0.0
      %v1687 = vsel %vm542, %v1679, 0.0
      %v1688 = vpack.c.bf16 %v1686, %v1684
      %v1689 = vpack.c.bf16 %v1687, %v1685
      %1690 = vst [vmem:[#allocation3 + $0x1e0] sm:$0xff] %v1688
      %1691 = vst [vmem:[#allocation3 + $0x1e8] sm:$0xff] %v1689
      %v1692 = vld [vmem:[#allocation2] sm:$0xff]
      %v1693 = vld [vmem:[#allocation2 + $0x8] sm:$0xff]
      %v1694 = vld [vmem:[#allocation2 + $0x10] sm:$0xff]
      %v1695 = vld [vmem:[#allocation2 + $0x18] sm:$0xff]
      %v1696 = vld [vmem:[#allocation2 + $0x20] sm:$0xff]
      %v1697 = vld [vmem:[#allocation2 + $0x28] sm:$0xff]
      %v1698 = vpack.c.bf16 %v1695, %v1692
      %v1699 = vpack.c.bf16 %v1696, %v1693
      %v1700 = vpack.c.bf16 %v1697, %v1694
      %1704 = vrot.lane.b32.xlu0 %v1698, 61
      %v1705 = vpop.permute.xlu0 %1704
      %1706 = vrot.lane.b32.xlu0 %v1699, 61
      %v1707 = vpop.permute.xlu0 %1706
      %1708 = vrot.lane.b32.xlu0 %v1700, 61
      %v1709 = vpop.permute.xlu0 %1708
      %vm1710 = vcmask 498688
      %v1711 = vsel %vm1710, %v1705, %v1707
      %v1712 = vsel %vm1710, %v1707, %v1709
      %1715 = vst [vmem:[#allocation3 + $0x1f0] sm:$0xff] %v1711
      %1716 = vst [vmem:[#allocation3 + $0x1f8] sm:$0xff] %v1712
      %v1717 = vld [vmem:[#allocation2] sm:$0xff]
      %v1718 = vld [vmem:[#allocation2 + $0x8] sm:$0xff]
      %v1719 = vld [vmem:[#allocation2 + $0x10] sm:$0xff]
      %v1720 = vld [vmem:[#allocation2 + $0x18] sm:$0xff]
      %v1721 = vld [vmem:[#allocation2 + $0x20] sm:$0xff]
      %v1722 = vld [vmem:[#allocation2 + $0x28] sm:$0xff]
      %1729 = vrot.lane.b32.xlu0 %v1717, 60
      %v1730 = vpop.permute.xlu0 %1729
      %1731 = vrot.lane.b32.xlu0 %v1718, 60
      %v1732 = vpop.permute.xlu0 %1731
      %1733 = vrot.lane.b32.xlu0 %v1719, 60
      %v1734 = vpop.permute.xlu0 %1733
      %1735 = vrot.lane.b32.xlu0 %v1720, 60
      %v1736 = vpop.permute.xlu0 %1735
      %1737 = vrot.lane.b32.xlu0 %v1721, 60
      %v1738 = vpop.permute.xlu0 %1737
      %1739 = vrot.lane.b32.xlu0 %v1722, 60
      %v1740 = vpop.permute.xlu0 %1739
      %vm1741 = vcmask 490496
      %v1742 = vsel %vm1741, %v1730, %v1732
      %v1743 = vsel %vm1741, %v1732, %v1734
      %v1744 = vsel %vm1741, %v1736, %v1738
      %v1745 = vsel %vm1741, %v1738, %v1740
      %v1750 = vsel %vm617, %v1742, 0.0
      %v1751 = vsel %vm618, %v1743, 0.0
      %v1752 = vsel %vm617, %v1744, 0.0
      %v1753 = vsel %vm618, %v1745, 0.0
      %v1754 = vpack.c.bf16 %v1752, %v1750
      %v1755 = vpack.c.bf16 %v1753, %v1751
      %1756 = vst [vmem:[#allocation3 + $0x200] sm:$0xff] %v1754
      %1757 = vst [vmem:[#allocation3 + $0x208] sm:$0xff] %v1755
      %v1758 = vld [vmem:[#allocation2] sm:$0xff]
      %v1759 = vld [vmem:[#allocation2 + $0x8] sm:$0xff]
      %v1760 = vld [vmem:[#allocation2 + $0x10] sm:$0xff]
      %v1761 = vld [vmem:[#allocation2 + $0x18] sm:$0xff]
      %v1762 = vld [vmem:[#allocation2 + $0x20] sm:$0xff]
      %v1763 = vld [vmem:[#allocation2 + $0x28] sm:$0xff]
      %1770 = vrot.lane.b32.xlu0 %v1758, 59
      %v1771 = vpop.permute.xlu0 %1770
      %1772 = vrot.lane.b32.xlu0 %v1759, 59
      %v1773 = vpop.permute.xlu0 %1772
      %1774 = vrot.lane.b32.xlu0 %v1760, 59
      %v1775 = vpop.permute.xlu0 %1774
      %1776 = vrot.lane.b32.xlu0 %v1761, 59
      %v1777 = vpop.permute.xlu0 %1776
      %1778 = vrot.lane.b32.xlu0 %v1762, 59
      %v1779 = vpop.permute.xlu0 %1778
      %1780 = vrot.lane.b32.xlu0 %v1763, 59
      %v1781 = vpop.permute.xlu0 %1780
      %vm1782 = vcmask 482304
      %v1783 = vsel %vm1782, %v1771, %v1773
      %v1784 = vsel %vm1782, %v1773, %v1775
      %v1785 = vsel %vm1782, %v1777, %v1779
      %v1786 = vsel %vm1782, %v1779, %v1781
      %v1791 = vsel %vm668, %v1783, 0.0
      %v1792 = vsel %vm669, %v1784, 0.0
      %v1793 = vsel %vm668, %v1785, 0.0
      %v1794 = vsel %vm669, %v1786, 0.0
      %v1795 = vpack.c.bf16 %v1793, %v1791
      %v1796 = vpack.c.bf16 %v1794, %v1792
      %1797 = vst [vmem:[#allocation3 + $0x210] sm:$0xff] %v1795
      %1798 = vst [vmem:[#allocation3 + $0x218] sm:$0xff] %v1796
      %v1799 = vld [vmem:[#allocation2] sm:$0xff]
      %v1800 = vld [vmem:[#allocation2 + $0x8] sm:$0xff]
      %v1801 = vld [vmem:[#allocation2 + $0x10] sm:$0xff]
      %v1802 = vld [vmem:[#allocation2 + $0x18] sm:$0xff]
      %v1803 = vld [vmem:[#allocation2 + $0x20] sm:$0xff]
      %v1804 = vld [vmem:[#allocation2 + $0x28] sm:$0xff]
      %1811 = vrot.lane.b32.xlu0 %v1799, 58
      %v1812 = vpop.permute.xlu0 %1811
      %1813 = vrot.lane.b32.xlu0 %v1800, 58
      %v1814 = vpop.permute.xlu0 %1813
      %1815 = vrot.lane.b32.xlu0 %v1801, 58
      %v1816 = vpop.permute.xlu0 %1815
      %1817 = vrot.lane.b32.xlu0 %v1802, 58
      %v1818 = vpop.permute.xlu0 %1817
      %1819 = vrot.lane.b32.xlu0 %v1803, 58
      %v1820 = vpop.permute.xlu0 %1819
      %1821 = vrot.lane.b32.xlu0 %v1804, 58
      %v1822 = vpop.permute.xlu0 %1821
      %vm1823 = vcmask 474112
      %v1824 = vsel %vm1823, %v1812, %v1814
      %v1825 = vsel %vm1823, %v1814, %v1816
      %v1826 = vsel %vm1823, %v1818, %v1820
      %v1827 = vsel %vm1823, %v1820, %v1822
      %v1832 = vsel %vm719, %v1824, 0.0
      %v1833 = vsel %vm720, %v1825, 0.0
      %v1834 = vsel %vm719, %v1826, 0.0
      %v1835 = vsel %vm720, %v1827, 0.0
      %v1836 = vpack.c.bf16 %v1834, %v1832
      %v1837 = vpack.c.bf16 %v1835, %v1833
      %1838 = vst [vmem:[#allocation3 + $0x220] sm:$0xff] %v1836
      %1839 = vst [vmem:[#allocation3 + $0x228] sm:$0xff] %v1837
      %v1840 = vld [vmem:[#allocation2] sm:$0xff]
      %v1841 = vld [vmem:[#allocation2 + $0x8] sm:$0xff]
      %v1842 = vld [vmem:[#allocation2 + $0x10] sm:$0xff]
      %v1843 = vld [vmem:[#allocation2 + $0x18] sm:$0xff]
      %v1844 = vld [vmem:[#allocation2 + $0x20] sm:$0xff]
      %v1845 = vld [vmem:[#allocation2 + $0x28] sm:$0xff]
      %1852 = vrot.lane.b32.xlu0 %v1840, 48
      %v1853 = vpop.permute.xlu0 %1852
      %1854 = vrot.lane.b32.xlu0 %v1841, 48
      %v1855 = vpop.permute.xlu0 %1854
      %1856 = vrot.lane.b32.xlu0 %v1842, 48
      %v1857 = vpop.permute.xlu0 %1856
      %1858 = vrot.lane.b32.xlu0 %v1843, 48
      %v1859 = vpop.permute.xlu0 %1858
      %1860 = vrot.lane.b32.xlu0 %v1844, 48
      %v1861 = vpop.permute.xlu0 %1860
      %1862 = vrot.lane.b32.xlu0 %v1845, 48
      %v1863 = vpop.permute.xlu0 %1862
      %vm1864 = vcmask 392192
      %v1865 = vsel %vm1864, %v1853, %v1855
      %v1866 = vsel %vm1864, %v1855, %v1857
      %v1867 = vsel %vm1864, %v1859, %v1861
      %v1868 = vsel %vm1864, %v1861, %v1863
      %v1873 = vsel %vm466, %v1865, 0.0
      %v1874 = vsel %vm467, %v1866, 0.0
      %v1875 = vsel %vm466, %v1867, 0.0
      %v1876 = vsel %vm467, %v1868, 0.0
      %v1877 = vpack.c.bf16 %v1875, %v1873
      %v1878 = vpack.c.bf16 %v1876, %v1874
      %1879 = vst [vmem:[#allocation3 + $0x230] sm:$0xff] %v1877
      %1880 = vst [vmem:[#allocation3 + $0x238] sm:$0xff] %v1878
      %v1881 = vld [vmem:[#allocation2] sm:$0xff]
      %v1882 = vld [vmem:[#allocation2 + $0x8] sm:$0xff]
      %v1883 = vld [vmem:[#allocation2 + $0x10] sm:$0xff]
      %v1884 = vld [vmem:[#allocation2 + $0x18] sm:$0xff]
      %v1885 = vld [vmem:[#allocation2 + $0x20] sm:$0xff]
      %v1886 = vld [vmem:[#allocation2 + $0x28] sm:$0xff]
      %1893 = vrot.lane.b32.xlu0 %v1881, 47
      %v1894 = vpop.permute.xlu0 %1893
      %1895 = vrot.lane.b32.xlu0 %v1882, 47
      %v1896 = vpop.permute.xlu0 %1895
      %1897 = vrot.lane.b32.xlu0 %v1883, 47
      %v1898 = vpop.permute.xlu0 %1897
      %1899 = vrot.lane.b32.xlu0 %v1884, 47
      %v1900 = vpop.permute.xlu0 %1899
      %1901 = vrot.lane.b32.xlu0 %v1885, 47
      %v1902 = vpop.permute.xlu0 %1901
      %1903 = vrot.lane.b32.xlu0 %v1886, 47
      %v1904 = vpop.permute.xlu0 %1903
      %vm1905 = vcmask 384000
      %v1906 = vsel %vm1905, %v1894, %v1896
      %v1907 = vsel %vm1905, %v1896, %v1898
      %v1908 = vsel %vm1905, %v1900, %v1902
      %v1909 = vsel %vm1905, %v1902, %v1904
      %v1914 = vsel %vm490, %v1906, 0.0
      %v1915 = vsel %vm491, %v1907, 0.0
      %v1916 = vsel %vm490, %v1908, 0.0
      %v1917 = vsel %vm491, %v1909, 0.0
      %v1918 = vpack.c.bf16 %v1916, %v1914
      %v1919 = vpack.c.bf16 %v1917, %v1915
      %1920 = vst [vmem:[#allocation3 + $0x240] sm:$0xff] %v1918
      %1921 = vst [vmem:[#allocation3 + $0x248] sm:$0xff] %v1919
      %v1922 = vld [vmem:[#allocation2] sm:$0xff]
      %v1923 = vld [vmem:[#allocation2 + $0x8] sm:$0xff]
      %v1924 = vld [vmem:[#allocation2 + $0x10] sm:$0xff]
      %v1925 = vld [vmem:[#allocation2 + $0x18] sm:$0xff]
      %v1926 = vld [vmem:[#allocation2 + $0x20] sm:$0xff]
      %v1927 = vld [vmem:[#allocation2 + $0x28] sm:$0xff]
      %1934 = vrot.lane.b32.xlu0 %v1922, 46
      %v1935 = vpop.permute.xlu0 %1934
      %1936 = vrot.lane.b32.xlu0 %v1923, 46
      %v1937 = vpop.permute.xlu0 %1936
      %1938 = vrot.lane.b32.xlu0 %v1924, 46
      %v1939 = vpop.permute.xlu0 %1938
      %1940 = vrot.lane.b32.xlu0 %v1925, 46
      %v1941 = vpop.permute.xlu0 %1940
      %1942 = vrot.lane.b32.xlu0 %v1926, 46
      %v1943 = vpop.permute.xlu0 %1942
      %1944 = vrot.lane.b32.xlu0 %v1927, 46
      %v1945 = vpop.permute.xlu0 %1944
      %vm1946 = vcmask 375808
      %v1947 = vsel %vm1946, %v1935, %v1937
      %v1948 = vsel %vm1946, %v1937, %v1939
      %v1949 = vsel %vm1946, %v1941, %v1943
      %v1950 = vsel %vm1946, %v1943, %v1945
      %v1955 = vsel %vm541, %v1947, 0.0
      %v1956 = vsel %vm542, %v1948, 0.0
      %v1957 = vsel %vm541, %v1949, 0.0
      %v1958 = vsel %vm542, %v1950, 0.0
      %v1959 = vpack.c.bf16 %v1957, %v1955
      %v1960 = vpack.c.bf16 %v1958, %v1956
      %1961 = vst [vmem:[#allocation3 + $0x250] sm:$0xff] %v1959
      %1962 = vst [vmem:[#allocation3 + $0x258] sm:$0xff] %v1960
      %v1963 = vld [vmem:[#allocation2] sm:$0xff]
      %v1964 = vld [vmem:[#allocation2 + $0x8] sm:$0xff]
      %v1965 = vld [vmem:[#allocation2 + $0x10] sm:$0xff]
      %v1966 = vld [vmem:[#allocation2 + $0x18] sm:$0xff]
      %v1967 = vld [vmem:[#allocation2 + $0x20] sm:$0xff]
      %v1968 = vld [vmem:[#allocation2 + $0x28] sm:$0xff]
      %v1969 = vpack.c.bf16 %v1966, %v1963
      %v1970 = vpack.c.bf16 %v1967, %v1964
      %v1971 = vpack.c.bf16 %v1968, %v1965
      %1975 = vrot.lane.b32.xlu0 %v1969, 45
      %v1976 = vpop.permute.xlu0 %1975
      %1977 = vrot.lane.b32.xlu0 %v1970, 45
      %v1978 = vpop.permute.xlu0 %1977
      %1979 = vrot.lane.b32.xlu0 %v1971, 45
      %v1980 = vpop.permute.xlu0 %1979
      %vm1981 = vcmask 367616
      %v1982 = vsel %vm1981, %v1976, %v1978
      %v1983 = vsel %vm1981, %v1978, %v1980
      %1986 = vst [vmem:[#allocation3 + $0x260] sm:$0xff] %v1982
      %1987 = vst [vmem:[#allocation3 + $0x268] sm:$0xff] %v1983
      %v1988 = vld [vmem:[#allocation2] sm:$0xff]
      %v1989 = vld [vmem:[#allocation2 + $0x8] sm:$0xff]
      %v1990 = vld [vmem:[#allocation2 + $0x10] sm:$0xff]
      %v1991 = vld [vmem:[#allocation2 + $0x18] sm:$0xff]
      %v1992 = vld [vmem:[#allocation2 + $0x20] sm:$0xff]
      %v1993 = vld [vmem:[#allocation2 + $0x28] sm:$0xff]
      %2000 = vrot.lane.b32.xlu0 %v1988, 44
      %v2001 = vpop.permute.xlu0 %2000
      %2002 = vrot.lane.b32.xlu0 %v1989, 44
      %v2003 = vpop.permute.xlu0 %2002
      %2004 = vrot.lane.b32.xlu0 %v1990, 44
      %v2005 = vpop.permute.xlu0 %2004
      %2006 = vrot.lane.b32.xlu0 %v1991, 44
      %v2007 = vpop.permute.xlu0 %2006
      %2008 = vrot.lane.b32.xlu0 %v1992, 44
      %v2009 = vpop.permute.xlu0 %2008
      %2010 = vrot.lane.b32.xlu0 %v1993, 44
      %v2011 = vpop.permute.xlu0 %2010
      %vm2012 = vcmask 359424
      %v2013 = vsel %vm2012, %v2001, %v2003
      %v2014 = vsel %vm2012, %v2003, %v2005
      %v2015 = vsel %vm2012, %v2007, %v2009
      %v2016 = vsel %vm2012, %v2009, %v2011
      %v2021 = vsel %vm617, %v2013, 0.0
      %v2022 = vsel %vm618, %v2014, 0.0
      %v2023 = vsel %vm617, %v2015, 0.0
      %v2024 = vsel %vm618, %v2016, 0.0
      %v2025 = vpack.c.bf16 %v2023, %v2021
      %v2026 = vpack.c.bf16 %v2024, %v2022
      %2027 = vst [vmem:[#allocation3 + $0x270] sm:$0xff] %v2025
      %2028 = vst [vmem:[#allocation3 + $0x278] sm:$0xff] %v2026
      %v2029 = vld [vmem:[#allocation2] sm:$0xff]
      %v2030 = vld [vmem:[#allocation2 + $0x8] sm:$0xff]
      %v2031 = vld [vmem:[#allocation2 + $0x10] sm:$0xff]
      %v2032 = vld [vmem:[#allocation2 + $0x18] sm:$0xff]
      %v2033 = vld [vmem:[#allocation2 + $0x20] sm:$0xff]
      %v2034 = vld [vmem:[#allocation2 + $0x28] sm:$0xff]
      %2041 = vrot.lane.b32.xlu0 %v2029, 43
      %v2042 = vpop.permute.xlu0 %2041
      %2043 = vrot.lane.b32.xlu0 %v2030, 43
      %v2044 = vpop.permute.xlu0 %2043
      %2045 = vrot.lane.b32.xlu0 %v2031, 43
      %v2046 = vpop.permute.xlu0 %2045
      %2047 = vrot.lane.b32.xlu0 %v2032, 43
      %v2048 = vpop.permute.xlu0 %2047
      %2049 = vrot.lane.b32.xlu0 %v2033, 43
      %v2050 = vpop.permute.xlu0 %2049
      %2051 = vrot.lane.b32.xlu0 %v2034, 43
      %v2052 = vpop.permute.xlu0 %2051
      %vm2053 = vcmask 351232
      %v2054 = vsel %vm2053, %v2042, %v2044
      %v2055 = vsel %vm2053, %v2044, %v2046
      %v2056 = vsel %vm2053, %v2048, %v2050
      %v2057 = vsel %vm2053, %v2050, %v2052
      %v2062 = vsel %vm668, %v2054, 0.0
      %v2063 = vsel %vm669, %v2055, 0.0
      %v2064 = vsel %vm668, %v2056, 0.0
      %v2065 = vsel %vm669, %v2057, 0.0
      %v2066 = vpack.c.bf16 %v2064, %v2062
      %v2067 = vpack.c.bf16 %v2065, %v2063
      %2068 = vst [vmem:[#allocation3 + $0x280] sm:$0xff] %v2066
      %2069 = vst [vmem:[#allocation3 + $0x288] sm:$0xff] %v2067
      %v2070 = vld [vmem:[#allocation2] sm:$0xff]
      %v2071 = vld [vmem:[#allocation2 + $0x8] sm:$0xff]
      %v2072 = vld [vmem:[#allocation2 + $0x10] sm:$0xff]
      %v2073 = vld [vmem:[#allocation2 + $0x18] sm:$0xff]
      %v2074 = vld [vmem:[#allocation2 + $0x20] sm:$0xff]
      %v2075 = vld [vmem:[#allocation2 + $0x28] sm:$0xff]
      %2082 = vrot.lane.b32.xlu0 %v2070, 42
      %v2083 = vpop.permute.xlu0 %2082
      %2084 = vrot.lane.b32.xlu0 %v2071, 42
      %v2085 = vpop.permute.xlu0 %2084
      %2086 = vrot.lane.b32.xlu0 %v2072, 42
      %v2087 = vpop.permute.xlu0 %2086
      %2088 = vrot.lane.b32.xlu0 %v2073, 42
      %v2089 = vpop.permute.xlu0 %2088
      %2090 = vrot.lane.b32.xlu0 %v2074, 42
      %v2091 = vpop.permute.xlu0 %2090
      %2092 = vrot.lane.b32.xlu0 %v2075, 42
      %v2093 = vpop.permute.xlu0 %2092
      %vm2094 = vcmask 343040
      %v2095 = vsel %vm2094, %v2083, %v2085
      %v2096 = vsel %vm2094, %v2085, %v2087
      %v2097 = vsel %vm2094, %v2089, %v2091
      %v2098 = vsel %vm2094, %v2091, %v2093
      %v2103 = vsel %vm719, %v2095, 0.0
      %v2104 = vsel %vm720, %v2096, 0.0
      %v2105 = vsel %vm719, %v2097, 0.0
      %v2106 = vsel %vm720, %v2098, 0.0
      %v2107 = vpack.c.bf16 %v2105, %v2103
      %v2108 = vpack.c.bf16 %v2106, %v2104
      %2109 = vst [vmem:[#allocation3 + $0x290] sm:$0xff] %v2107
      %2110 = vst [vmem:[#allocation3 + $0x298] sm:$0xff] %v2108
      %v2111 = vld [vmem:[#allocation2] sm:$0xff]
      %v2112 = vld [vmem:[#allocation2 + $0x8] sm:$0xff]
      %v2113 = vld [vmem:[#allocation2 + $0x10] sm:$0xff]
      %v2114 = vld [vmem:[#allocation2 + $0x18] sm:$0xff]
      %v2115 = vld [vmem:[#allocation2 + $0x20] sm:$0xff]
      %v2116 = vld [vmem:[#allocation2 + $0x28] sm:$0xff]
      %2123 = vrot.lane.b32.xlu0 %v2111, 32
      %v2124 = vpop.permute.xlu0 %2123
      %2125 = vrot.lane.b32.xlu0 %v2112, 32
      %v2126 = vpop.permute.xlu0 %2125
      %2127 = vrot.lane.b32.xlu0 %v2113, 32
      %v2128 = vpop.permute.xlu0 %2127
      %2129 = vrot.lane.b32.xlu0 %v2114, 32
      %v2130 = vpop.permute.xlu0 %2129
      %2131 = vrot.lane.b32.xlu0 %v2115, 32
      %v2132 = vpop.permute.xlu0 %2131
      %2133 = vrot.lane.b32.xlu0 %v2116, 32
      %v2134 = vpop.permute.xlu0 %2133
      %vm2135 = vcmask 261120
      %v2136 = vsel %vm2135, %v2124, %v2126
      %v2137 = vsel %vm2135, %v2126, %v2128
      %v2138 = vsel %vm2135, %v2130, %v2132
      %v2139 = vsel %vm2135, %v2132, %v2134
      %v2144 = vsel %vm466, %v2136, 0.0
      %v2145 = vsel %vm467, %v2137, 0.0
      %v2146 = vsel %vm466, %v2138, 0.0
      %v2147 = vsel %vm467, %v2139, 0.0
      %v2148 = vpack.c.bf16 %v2146, %v2144
      %v2149 = vpack.c.bf16 %v2147, %v2145
      %2150 = vst [vmem:[#allocation3 + $0x2a0] sm:$0xff] %v2148
      %2151 = vst [vmem:[#allocation3 + $0x2a8] sm:$0xff] %v2149
      %v2152 = vld [vmem:[#allocation2] sm:$0xff]
      %v2153 = vld [vmem:[#allocation2 + $0x8] sm:$0xff]
      %v2154 = vld [vmem:[#allocation2 + $0x10] sm:$0xff]
      %v2155 = vld [vmem:[#allocation2 + $0x18] sm:$0xff]
      %v2156 = vld [vmem:[#allocation2 + $0x20] sm:$0xff]
      %v2157 = vld [vmem:[#allocation2 + $0x28] sm:$0xff]
      %2164 = vrot.lane.b32.xlu0 %v2152, 31
      %v2165 = vpop.permute.xlu0 %2164
      %2166 = vrot.lane.b32.xlu0 %v2153, 31
      %v2167 = vpop.permute.xlu0 %2166
      %2168 = vrot.lane.b32.xlu0 %v2154, 31
      %v2169 = vpop.permute.xlu0 %2168
      %2170 = vrot.lane.b32.xlu0 %v2155, 31
      %v2171 = vpop.permute.xlu0 %2170
      %2172 = vrot.lane.b32.xlu0 %v2156, 31
      %v2173 = vpop.permute.xlu0 %2172
      %2174 = vrot.lane.b32.xlu0 %v2157, 31
      %v2175 = vpop.permute.xlu0 %2174
      %vm2176 = vcmask 252928
      %v2177 = vsel %vm2176, %v2165, %v2167
      %v2178 = vsel %vm2176, %v2167, %v2169
      %v2179 = vsel %vm2176, %v2171, %v2173
      %v2180 = vsel %vm2176, %v2173, %v2175
      %v2185 = vsel %vm490, %v2177, 0.0
      %v2186 = vsel %vm491, %v2178, 0.0
      %v2187 = vsel %vm490, %v2179, 0.0
      %v2188 = vsel %vm491, %v2180, 0.0
      %v2189 = vpack.c.bf16 %v2187, %v2185
      %v2190 = vpack.c.bf16 %v2188, %v2186
      %2191 = vst [vmem:[#allocation3 + $0x2b0] sm:$0xff] %v2189
      %2192 = vst [vmem:[#allocation3 + $0x2b8] sm:$0xff] %v2190
      %v2193 = vld [vmem:[#allocation2] sm:$0xff]
      %v2194 = vld [vmem:[#allocation2 + $0x8] sm:$0xff]
      %v2195 = vld [vmem:[#allocation2 + $0x10] sm:$0xff]
      %v2196 = vld [vmem:[#allocation2 + $0x18] sm:$0xff]
      %v2197 = vld [vmem:[#allocation2 + $0x20] sm:$0xff]
      %v2198 = vld [vmem:[#allocation2 + $0x28] sm:$0xff]
      %2205 = vrot.lane.b32.xlu0 %v2193, 30
      %v2206 = vpop.permute.xlu0 %2205
      %2207 = vrot.lane.b32.xlu0 %v2194, 30
      %v2208 = vpop.permute.xlu0 %2207
      %2209 = vrot.lane.b32.xlu0 %v2195, 30
      %v2210 = vpop.permute.xlu0 %2209
      %2211 = vrot.lane.b32.xlu0 %v2196, 30
      %v2212 = vpop.permute.xlu0 %2211
      %2213 = vrot.lane.b32.xlu0 %v2197, 30
      %v2214 = vpop.permute.xlu0 %2213
      %2215 = vrot.lane.b32.xlu0 %v2198, 30
      %v2216 = vpop.permute.xlu0 %2215
      %vm2217 = vcmask 244736
      %v2218 = vsel %vm2217, %v2206, %v2208
      %v2219 = vsel %vm2217, %v2208, %v2210
      %v2220 = vsel %vm2217, %v2212, %v2214
      %v2221 = vsel %vm2217, %v2214, %v2216
      %v2226 = vsel %vm541, %v2218, 0.0
      %v2227 = vsel %vm542, %v2219, 0.0
      %v2228 = vsel %vm541, %v2220, 0.0
      %v2229 = vsel %vm542, %v2221, 0.0
      %v2230 = vpack.c.bf16 %v2228, %v2226
      %v2231 = vpack.c.bf16 %v2229, %v2227
      %2232 = vst [vmem:[#allocation3 + $0x2c0] sm:$0xff] %v2230
      %2233 = vst [vmem:[#allocation3 + $0x2c8] sm:$0xff] %v2231
      %v2234 = vld [vmem:[#allocation2] sm:$0xff]
      %v2235 = vld [vmem:[#allocation2 + $0x8] sm:$0xff]
      %v2236 = vld [vmem:[#allocation2 + $0x10] sm:$0xff]
      %v2237 = vld [vmem:[#allocation2 + $0x18] sm:$0xff]
      %v2238 = vld [vmem:[#allocation2 + $0x20] sm:$0xff]
      %v2239 = vld [vmem:[#allocation2 + $0x28] sm:$0xff]
      %v2240 = vpack.c.bf16 %v2237, %v2234
      %v2241 = vpack.c.bf16 %v2238, %v2235
      %v2242 = vpack.c.bf16 %v2239, %v2236
      %2246 = vrot.lane.b32.xlu0 %v2240, 29
      %v2247 = vpop.permute.xlu0 %2246
      %2248 = vrot.lane.b32.xlu0 %v2241, 29
      %v2249 = vpop.permute.xlu0 %2248
      %2250 = vrot.lane.b32.xlu0 %v2242, 29
      %v2251 = vpop.permute.xlu0 %2250
      %vm2252 = vcmask 236544
      %v2253 = vsel %vm2252, %v2247, %v2249
      %v2254 = vsel %vm2252, %v2249, %v2251
      %2257 = vst [vmem:[#allocation3 + $0x2d0] sm:$0xff] %v2253
      %2258 = vst [vmem:[#allocation3 + $0x2d8] sm:$0xff] %v2254
      %v2259 = vld [vmem:[#allocation2] sm:$0xff]
      %v2260 = vld [vmem:[#allocation2 + $0x8] sm:$0xff]
      %v2261 = vld [vmem:[#allocation2 + $0x10] sm:$0xff]
      %v2262 = vld [vmem:[#allocation2 + $0x18] sm:$0xff]
      %v2263 = vld [vmem:[#allocation2 + $0x20] sm:$0xff]
      %v2264 = vld [vmem:[#allocation2 + $0x28] sm:$0xff]
      %2271 = vrot.lane.b32.xlu0 %v2259, 28
      %v2272 = vpop.permute.xlu0 %2271
      %2273 = vrot.lane.b32.xlu0 %v2260, 28
      %v2274 = vpop.permute.xlu0 %2273
      %2275 = vrot.lane.b32.xlu0 %v2261, 28
      %v2276 = vpop.permute.xlu0 %2275
      %2277 = vrot.lane.b32.xlu0 %v2262, 28
      %v2278 = vpop.permute.xlu0 %2277
      %2279 = vrot.lane.b32.xlu0 %v2263, 28
      %v2280 = vpop.permute.xlu0 %2279
      %2281 = vrot.lane.b32.xlu0 %v2264, 28
      %v2282 = vpop.permute.xlu0 %2281
      %vm2283 = vcmask 228352
      %v2284 = vsel %vm2283, %v2272, %v2274
      %v2285 = vsel %vm2283, %v2274, %v2276
      %v2286 = vsel %vm2283, %v2278, %v2280
      %v2287 = vsel %vm2283, %v2280, %v2282
      %v2292 = vsel %vm617, %v2284, 0.0
      %v2293 = vsel %vm618, %v2285, 0.0
      %v2294 = vsel %vm617, %v2286, 0.0
      %v2295 = vsel %vm618, %v2287, 0.0
      %v2296 = vpack.c.bf16 %v2294, %v2292
      %v2297 = vpack.c.bf16 %v2295, %v2293
      %2298 = vst [vmem:[#allocation3 + $0x2e0] sm:$0xff] %v2296
      %2299 = vst [vmem:[#allocation3 + $0x2e8] sm:$0xff] %v2297
      %v2300 = vld [vmem:[#allocation2] sm:$0xff]
      %v2301 = vld [vmem:[#allocation2 + $0x8] sm:$0xff]
      %v2302 = vld [vmem:[#allocation2 + $0x10] sm:$0xff]
      %v2303 = vld [vmem:[#allocation2 + $0x18] sm:$0xff]
      %v2304 = vld [vmem:[#allocation2 + $0x20] sm:$0xff]
      %v2305 = vld [vmem:[#allocation2 + $0x28] sm:$0xff]
      %2312 = vrot.lane.b32.xlu0 %v2300, 27
      %v2313 = vpop.permute.xlu0 %2312
      %2314 = vrot.lane.b32.xlu0 %v2301, 27
      %v2315 = vpop.permute.xlu0 %2314
      %2316 = vrot.lane.b32.xlu0 %v2302, 27
      %v2317 = vpop.permute.xlu0 %2316
      %2318 = vrot.lane.b32.xlu0 %v2303, 27
      %v2319 = vpop.permute.xlu0 %2318
      %2320 = vrot.lane.b32.xlu0 %v2304, 27
      %v2321 = vpop.permute.xlu0 %2320
      %2322 = vrot.lane.b32.xlu0 %v2305, 27
      %v2323 = vpop.permute.xlu0 %2322
      %vm2324 = vcmask 220160
      %v2325 = vsel %vm2324, %v2313, %v2315
      %v2326 = vsel %vm2324, %v2315, %v2317
      %v2327 = vsel %vm2324, %v2319, %v2321
      %v2328 = vsel %vm2324, %v2321, %v2323
      %v2333 = vsel %vm668, %v2325, 0.0
      %v2334 = vsel %vm669, %v2326, 0.0
      %v2335 = vsel %vm668, %v2327, 0.0
      %v2336 = vsel %vm669, %v2328, 0.0
      %v2337 = vpack.c.bf16 %v2335, %v2333
      %v2338 = vpack.c.bf16 %v2336, %v2334
      %2339 = vst [vmem:[#allocation3 + $0x2f0] sm:$0xff] %v2337
      %2340 = vst [vmem:[#allocation3 + $0x2f8] sm:$0xff] %v2338
      %v2341 = vld [vmem:[#allocation2] sm:$0xff]
      %v2342 = vld [vmem:[#allocation2 + $0x8] sm:$0xff]
      %v2343 = vld [vmem:[#allocation2 + $0x10] sm:$0xff]
      %v2344 = vld [vmem:[#allocation2 + $0x18] sm:$0xff]
      %v2345 = vld [vmem:[#allocation2 + $0x20] sm:$0xff]
      %v2346 = vld [vmem:[#allocation2 + $0x28] sm:$0xff]
      %2353 = vrot.lane.b32.xlu0 %v2341, 26
      %v2354 = vpop.permute.xlu0 %2353
      %2355 = vrot.lane.b32.xlu0 %v2342, 26
      %v2356 = vpop.permute.xlu0 %2355
      %2357 = vrot.lane.b32.xlu0 %v2343, 26
      %v2358 = vpop.permute.xlu0 %2357
      %2359 = vrot.lane.b32.xlu0 %v2344, 26
      %v2360 = vpop.permute.xlu0 %2359
      %2361 = vrot.lane.b32.xlu0 %v2345, 26
      %v2362 = vpop.permute.xlu0 %2361
      %2363 = vrot.lane.b32.xlu0 %v2346, 26
      %v2364 = vpop.permute.xlu0 %2363
      %vm2365 = vcmask 211968
      %v2366 = vsel %vm2365, %v2354, %v2356
      %v2367 = vsel %vm2365, %v2356, %v2358
      %v2368 = vsel %vm2365, %v2360, %v2362
      %v2369 = vsel %vm2365, %v2362, %v2364
      %v2374 = vsel %vm719, %v2366, 0.0
      %v2375 = vsel %vm720, %v2367, 0.0
      %v2376 = vsel %vm719, %v2368, 0.0
      %v2377 = vsel %vm720, %v2369, 0.0
      %v2378 = vpack.c.bf16 %v2376, %v2374
      %v2379 = vpack.c.bf16 %v2377, %v2375
      %2380 = vst [vmem:[#allocation3 + $0x300] sm:$0xff] %v2378
      %2381 = vst [vmem:[#allocation3 + $0x308] sm:$0xff] %v2379
      %v2382 = vld [vmem:[%s1] sm:$0xff]
      %v2383 = vld [vmem:[%s1 + $0x8] sm:$0xff]
      %v2384 = vld [vmem:[%s1 + $0x10] sm:$0xff]
      %v2385 = vld [vmem:[%s1 + $0x18] sm:$0xf]
      %v2386 = vld [vmem:[%s1 + $0x1c] sm:$0xff]
      %v2387 = vld [vmem:[%s1 + $0x24] sm:$0xff]
      %v2388 = vld [vmem:[%s1 + $0x2c] sm:$0xff]
      %v2389 = vld [vmem:[%s1 + $0x34] sm:$0xf]
      %v2390 = vld [vmem:[#allocation3] sm:$0xff]
      %v2391 = vld [vmem:[#allocation3 + $0x8] sm:$0xff]
      %v2392 = vld [vmem:[#allocation3 + $0x10] sm:$0xff]
      %v2393 = vld [vmem:[#allocation3 + $0x18] sm:$0xff]
      %v2394 = vld [vmem:[#allocation3 + $0x20] sm:$0xff]
      %v2395 = vld [vmem:[#allocation3 + $0x28] sm:$0xff]
      %v2396 = vld [vmem:[#allocation3 + $0x30] sm:$0xff]
      %v2397 = vld [vmem:[#allocation3 + $0x38] sm:$0xff]
      %v2398 = vld [vmem:[#allocation3 + $0x40] sm:$0xff]
      %v2399 = vld [vmem:[#allocation3 + $0x48] sm:$0xff]
      %v2400 = vld [vmem:[#allocation3 + $0x50] sm:$0xff]
      %v2401 = vld [vmem:[#allocation3 + $0x58] sm:$0xff]
      %v2402 = vld [vmem:[#allocation3 + $0x60] sm:$0xff]
      %v2403 = vld [vmem:[#allocation3 + $0x68] sm:$0xff]
      %v2404 = vld [vmem:[#allocation3 + $0x70] sm:$0xff]
      %v2405 = vld [vmem:[#allocation3 + $0x78] sm:$0xff]
      %v2406 = vld [vmem:[#allocation3 + $0x80] sm:$0xff]
      %v2407 = vld [vmem:[#allocation3 + $0x88] sm:$0xff]
      %v2408 = vld [vmem:[#allocation3 + $0x90] sm:$0xff]
      %v2409 = vld [vmem:[#allocation3 + $0x98] sm:$0xff]
      %v2410 = vld [vmem:[#allocation3 + $0xa0] sm:$0xff]
      %v2411 = vld [vmem:[#allocation3 + $0xa8] sm:$0xff]
      %v2412 = vld [vmem:[#allocation3 + $0xb0] sm:$0xff]
      %v2413 = vld [vmem:[#allocation3 + $0xb8] sm:$0xff]
      %v2414 = vld [vmem:[#allocation3 + $0xc0] sm:$0xff]
      %v2415 = vld [vmem:[#allocation3 + $0xc8] sm:$0xff]
      %v2416 = vld [vmem:[#allocation3 + $0xd0] sm:$0xff]
      %v2417 = vld [vmem:[#allocation3 + $0xd8] sm:$0xff]
      %v2418 = vld [vmem:[#allocation3 + $0xe0] sm:$0xff]
      %v2419 = vld [vmem:[#allocation3 + $0xe8] sm:$0xff]
      %v2420 = vld [vmem:[#allocation3 + $0xf0] sm:$0xff]
      %v2421 = vld [vmem:[#allocation3 + $0xf8] sm:$0xff]
      %v2422 = vld [vmem:[#allocation3 + $0x100] sm:$0xff]
      %v2423 = vld [vmem:[#allocation3 + $0x108] sm:$0xff]
      %v2424 = vld [vmem:[#allocation3 + $0x110] sm:$0xff]
      %v2425 = vld [vmem:[#allocation3 + $0x118] sm:$0xff]
      %v2426 = vld [vmem:[#allocation3 + $0x120] sm:$0xff]
      %v2427 = vld [vmem:[#allocation3 + $0x128] sm:$0xff]
      %v2428 = vld [vmem:[#allocation3 + $0x130] sm:$0xff]
      %v2429 = vld [vmem:[#allocation3 + $0x138] sm:$0xff]
      %v2430 = vld [vmem:[#allocation3 + $0x140] sm:$0xff]
      %v2431 = vld [vmem:[#allocation3 + $0x148] sm:$0xff]
      %v2432 = vld [vmem:[#allocation3 + $0x150] sm:$0xff]
      %v2433 = vld [vmem:[#allocation3 + $0x158] sm:$0xff]
      %v2434 = vld [vmem:[#allocation3 + $0x160] sm:$0xff]
      %v2435 = vld [vmem:[#allocation3 + $0x168] sm:$0xff]
      %v2436 = vld [vmem:[#allocation3 + $0x170] sm:$0xff]
      %v2437 = vld [vmem:[#allocation3 + $0x178] sm:$0xff]
      %v2438 = vld [vmem:[#allocation3 + $0x180] sm:$0xff]
      %v2439 = vld [vmem:[#allocation3 + $0x188] sm:$0xff]
      %v2440 = vld [vmem:[#allocation3 + $0x190] sm:$0xff]
      %v2441 = vld [vmem:[#allocation3 + $0x198] sm:$0xff]
      %v2442 = vld [vmem:[#allocation3 + $0x1a0] sm:$0xff]
      %v2443 = vld [vmem:[#allocation3 + $0x1a8] sm:$0xff]
      %v2444 = vld [vmem:[#allocation3 + $0x1b0] sm:$0xff]
      %v2445 = vld [vmem:[#allocation3 + $0x1b8] sm:$0xff]
      %v2446 = vld [vmem:[#allocation3 + $0x1c0] sm:$0xff]
      %v2447 = vld [vmem:[#allocation3 + $0x1c8] sm:$0xff]
      %v2448 = vld [vmem:[#allocation3 + $0x1d0] sm:$0xff]
      %v2449 = vld [vmem:[#allocation3 + $0x1d8] sm:$0xff]
      %v2450 = vld [vmem:[#allocation3 + $0x1e0] sm:$0xff]
      %v2451 = vld [vmem:[#allocation3 + $0x1e8] sm:$0xff]
      %v2452 = vld [vmem:[#allocation3 + $0x1f0] sm:$0xff]
      %v2453 = vld [vmem:[#allocation3 + $0x1f8] sm:$0xff]
      %v2454 = vld [vmem:[#allocation3 + $0x200] sm:$0xff]
      %v2455 = vld [vmem:[#allocation3 + $0x208] sm:$0xff]
      %v2456 = vld [vmem:[#allocation3 + $0x210] sm:$0xff]
      %v2457 = vld [vmem:[#allocation3 + $0x218] sm:$0xff]
      %v2458 = vld [vmem:[#allocation3 + $0x220] sm:$0xff]
      %v2459 = vld [vmem:[#allocation3 + $0x228] sm:$0xff]
      %v2460 = vld [vmem:[#allocation3 + $0x230] sm:$0xff]
      %v2461 = vld [vmem:[#allocation3 + $0x238] sm:$0xff]
      %v2462 = vld [vmem:[#allocation3 + $0x240] sm:$0xff]
      %v2463 = vld [vmem:[#allocation3 + $0x248] sm:$0xff]
      %v2464 = vld [vmem:[#allocation3 + $0x250] sm:$0xff]
      %v2465 = vld [vmem:[#allocation3 + $0x258] sm:$0xff]
      %v2466 = vld [vmem:[#allocation3 + $0x260] sm:$0xff]
      %v2467 = vld [vmem:[#allocation3 + $0x268] sm:$0xff]
      %v2468 = vld [vmem:[#allocation3 + $0x270] sm:$0xff]
      %v2469 = vld [vmem:[#allocation3 + $0x278] sm:$0xff]
      %v2470 = vld [vmem:[#allocation3 + $0x280] sm:$0xff]
      %v2471 = vld [vmem:[#allocation3 + $0x288] sm:$0xff]
      %v2472 = vld [vmem:[#allocation3 + $0x290] sm:$0xff]
      %v2473 = vld [vmem:[#allocation3 + $0x298] sm:$0xff]
      %v2474 = vld [vmem:[#allocation3 + $0x2a0] sm:$0xff]
      %v2475 = vld [vmem:[#allocation3 + $0x2a8] sm:$0xff]
      %v2476 = vld [vmem:[#allocation3 + $0x2b0] sm:$0xff]
      %v2477 = vld [vmem:[#allocation3 + $0x2b8] sm:$0xff]
      %v2478 = vld [vmem:[#allocation3 + $0x2c0] sm:$0xff]
      %v2479 = vld [vmem:[#allocation3 + $0x2c8] sm:$0xff]
      %v2480 = vld [vmem:[#allocation3 + $0x2d0] sm:$0xff]
      %v2481 = vld [vmem:[#allocation3 + $0x2d8] sm:$0xff]
      %v2482 = vld [vmem:[#allocation3 + $0x2e0] sm:$0xff]
      %v2483 = vld [vmem:[#allocation3 + $0x2e8] sm:$0xff]
      %v2484 = vld [vmem:[#allocation3 + $0x2f0] sm:$0xff]
      %v2485 = vld [vmem:[#allocation3 + $0x2f8] sm:$0xff]
      %v2486 = vld [vmem:[#allocation3 + $0x300] sm:$0xff]
      %v2487 = vld [vmem:[#allocation3 + $0x308] sm:$0xff]
      %v2496 = vunpack.c.l.b16 %v2382
      %v2497 = vunpack.c.h.b16 %v2382
      %v2498 = vunpack.c.l.b16 %v2383
      %v2499 = vunpack.c.h.b16 %v2383
      %v2500 = vunpack.c.l.b16 %v2384
      %v2501 = vunpack.c.h.b16 %v2384
      %v2502 = vunpack.c.l.b16 %v2385
      %v2503 = vunpack.c.l.b16 %v2386
      %v2504 = vunpack.c.h.b16 %v2386
      %v2505 = vunpack.c.l.b16 %v2387
      %v2506 = vunpack.c.h.b16 %v2387
      %v2507 = vunpack.c.l.b16 %v2388
      %v2508 = vunpack.c.h.b16 %v2388
      %v2509 = vunpack.c.l.b16 %v2389
      %v2510 = vpack.c.b16 %v2503, %v2496
      %v2511 = vpack.c.b16 %v2504, %v2497
      %v2512 = vpack.c.b16 %v2505, %v2498
      %v2513 = vpack.c.b16 %v2506, %v2499
      %v2514 = vpack.c.b16 %v2507, %v2500
      %v2515 = vpack.c.b16 %v2508, %v2501
      %v2516 = vpack.c.b16 %v2509, %v2502
      %vm2523 = vcmask 130048
      %v2525 = vsel %vm2523, %v2516, 0
      %2527 = vmatprep.subr.bf16.mxu0 %v2391
      %2528 = vmatpush1.bf16.msra.mxu0 %v2390
      %2529 = vmatprep.subr.bf16.mxu0 %v2393
      %2530 = vmatpush1.bf16.msra.mxu0 %v2392
      %2531 = vmatprep.subr.bf16.mxu0 %v2395
      %2532 = vmatpush1.bf16.msra.mxu0 %v2394
      %2533 = vmatprep.subr.bf16.mxu0 %v2397
      %2534 = vmatpush1.bf16.msra.mxu0 %v2396
      %2535 = vmatprep.subr.bf16.mxu0 %v2399
      %2536 = vmatpush1.bf16.msra.mxu0 %v2398
      %2537 = vmatprep.subr.bf16.mxu0 %v2401
      %2538 = vmatpush1.bf16.msra.mxu0 %v2400
      %2539 = vmatprep.subr.bf16.mxu0 %v2403
      %2540 = vmatpush1.bf16.msra.mxu0 %v2402
      %2541 = vmatprep.subr.bf16.mxu0 %v2405
      %2542 = vmatpush1.bf16.msra.mxu0 %v2404
      %2543 = vmatprep.subr.bf16.mxu0 %v2407
      %2544 = vmatpush1.bf16.msra.mxu0 %v2406
      %2545 = vmatprep.subr.bf16.mxu0 %v2409
      %2546 = vmatpush1.bf16.msra.mxu0 %v2408
      %2547 = vmatprep.subr.bf16.mxu0 %v2411
      %2548 = vmatpush1.bf16.msra.mxu0 %v2410
      %2549 = vmatprep.subr.bf16.mxu0 %v2413
      %2550 = vmatpush1.bf16.msra.mxu0 %v2412
      %2551 = vmatprep.subr.bf16.mxu0 %v2415
      %2552 = vmatpush1.bf16.msra.mxu0 %v2414
      %2553 = vmatprep.subr.bf16.mxu0 %v2417
      %2554 = vmatpush1.bf16.msra.mxu0 %v2416
      %2555 = vmatprep.subr.bf16.mxu0 %v2419
      %2556 = vmatpush1.bf16.msra.mxu0 %v2418
      %2557 = vmatprep.subr.bf16.mxu0 %v2421
      %2558 = vmatpush1.bf16.msra.mxu0 %v2420
      %2559 = vmatprep.mubr.bf16.mxu0 %v2511
      %2560 = vmatmul.mubr.bf16.gmra.mrb[0].mxu0 %v2510
      %v2561 = vpop.f32.mrb[0].mxu0
      %v2562 = vadd.f32 0.0, %v2561
      %v2563 = vpop.f32.mrb[0].mxu0
      %v2564 = vadd.f32 0.0, %v2563
      %v2565 = vpop.f32.mrb[0].mxu0
      %v2566 = vadd.f32 0.0, %v2565
      %v2567 = vpop.f32.mrb[0].mxu0
      %v2568 = vadd.f32 0.0, %v2567
      %2569 = vdwg.mxu0
      %2570 = vmatprep.subr.bf16.mxu0 %v2423
      %2571 = vmatpush1.bf16.msra.mxu0 %v2422
      %2572 = vmatprep.subr.bf16.mxu0 %v2425
      %2573 = vmatpush1.bf16.msra.mxu0 %v2424
      %2574 = vmatprep.subr.bf16.mxu0 %v2427
      %2575 = vmatpush1.bf16.msra.mxu0 %v2426
      %2576 = vmatprep.subr.bf16.mxu0 %v2429
      %2577 = vmatpush1.bf16.msra.mxu0 %v2428
      %2578 = vmatprep.subr.bf16.mxu0 %v2431
      %2579 = vmatpush1.bf16.msra.mxu0 %v2430
      %2580 = vmatprep.subr.bf16.mxu0 %v2433
      %2581 = vmatpush1.bf16.msra.mxu0 %v2432
      %2582 = vmatprep.subr.bf16.mxu0 %v2435
      %2583 = vmatpush1.bf16.msra.mxu0 %v2434
      %2584 = vmatprep.subr.bf16.mxu0 %v2437
      %2585 = vmatpush1.bf16.msra.mxu0 %v2436
      %2586 = vmatprep.subr.bf16.mxu0 %v2439
      %2587 = vmatpush1.bf16.msra.mxu0 %v2438
      %2588 = vmatprep.subr.bf16.mxu0 %v2441
      %2589 = vmatpush1.bf16.msra.mxu0 %v2440
      %2590 = vmatprep.subr.bf16.mxu0 %v2443
      %2591 = vmatpush1.bf16.msra.mxu0 %v2442
      %2592 = vmatprep.subr.bf16.mxu0 %v2445
      %2593 = vmatpush1.bf16.msra.mxu0 %v2444
      %2594 = vmatprep.subr.bf16.mxu0 %v2447
      %2595 = vmatpush1.bf16.msra.mxu0 %v2446
      %2596 = vmatprep.subr.bf16.mxu0 %v2449
      %2597 = vmatpush1.bf16.msra.mxu0 %v2448
      %2598 = vmatprep.subr.bf16.mxu0 %v2451
      %2599 = vmatpush1.bf16.msra.mxu0 %v2450
      %2600 = vmatprep.subr.bf16.mxu0 %v2453
      %2601 = vmatpush1.bf16.msra.mxu0 %v2452
      %2602 = vmatprep.mubr.bf16.mxu0 %v2513
      %2603 = vmatmul.mubr.bf16.gmra.mrb[0].mxu0 %v2512
      %v2604 = vpop.f32.mrb[0].mxu0
      %v2605 = vadd.f32 %v2562, %v2604
      %v2606 = vpop.f32.mrb[0].mxu0
      %v2607 = vadd.f32 %v2564, %v2606
      %v2608 = vpop.f32.mrb[0].mxu0
      %v2609 = vadd.f32 %v2566, %v2608
      %v2610 = vpop.f32.mrb[0].mxu0
      %v2611 = vadd.f32 %v2568, %v2610
      %2612 = vdwg.mxu0
      %2613 = vmatprep.subr.bf16.mxu0 %v2455
      %2614 = vmatpush1.bf16.msra.mxu0 %v2454
      %2615 = vmatprep.subr.bf16.mxu0 %v2457
      %2616 = vmatpush1.bf16.msra.mxu0 %v2456
      %2617 = vmatprep.subr.bf16.mxu0 %v2459
      %2618 = vmatpush1.bf16.msra.mxu0 %v2458
      %2619 = vmatprep.subr.bf16.mxu0 %v2461
      %2620 = vmatpush1.bf16.msra.mxu0 %v2460
      %2621 = vmatprep.subr.bf16.mxu0 %v2463
      %2622 = vmatpush1.bf16.msra.mxu0 %v2462
      %2623 = vmatprep.subr.bf16.mxu0 %v2465
      %2624 = vmatpush1.bf16.msra.mxu0 %v2464
      %2625 = vmatprep.subr.bf16.mxu0 %v2467
      %2626 = vmatpush1.bf16.msra.mxu0 %v2466
      %2627 = vmatprep.subr.bf16.mxu0 %v2469
      %2628 = vmatpush1.bf16.msra.mxu0 %v2468
      %2629 = vmatprep.subr.bf16.mxu0 %v2471
      %2630 = vmatpush1.bf16.msra.mxu0 %v2470
      %2631 = vmatprep.subr.bf16.mxu0 %v2473
      %2632 = vmatpush1.bf16.msra.mxu0 %v2472
      %2633 = vmatprep.subr.bf16.mxu0 %v2475
      %2634 = vmatpush1.bf16.msra.mxu0 %v2474
      %2635 = vmatprep.subr.bf16.mxu0 %v2477
      %2636 = vmatpush1.bf16.msra.mxu0 %v2476
      %2637 = vmatprep.subr.bf16.mxu0 %v2479
      %2638 = vmatpush1.bf16.msra.mxu0 %v2478
      %2639 = vmatprep.subr.bf16.mxu0 %v2481
      %2640 = vmatpush1.bf16.msra.mxu0 %v2480
      %2641 = vmatprep.subr.bf16.mxu0 %v2483
      %2642 = vmatpush1.bf16.msra.mxu0 %v2482
      %2643 = vmatprep.subr.bf16.mxu0 %v2485
      %2644 = vmatpush1.bf16.msra.mxu0 %v2484
      %2645 = vmatprep.mubr.bf16.mxu0 %v2515
      %2646 = vmatmul.mubr.bf16.gmra.mrb[0].mxu0 %v2514
      %v2647 = vpop.f32.mrb[0].mxu0
      %v2648 = vadd.f32 %v2605, %v2647
      %v2649 = vpop.f32.mrb[0].mxu0
      %v2650 = vadd.f32 %v2607, %v2649
      %v2651 = vpop.f32.mrb[0].mxu0
      %v2652 = vadd.f32 %v2609, %v2651
      %v2653 = vpop.f32.mrb[0].mxu0
      %v2654 = vadd.f32 %v2611, %v2653
      %2655 = vdwg.mxu0
      %2656 = vmatprep.subr.bf16.mxu0 %v2487
      %2657 = vmatpush1.bf16.msra.mxu0 %v2486
      %2658 = vmatprep.subr.bf16.mxu0 0
      %2659 = vmatpush1.bf16.msra.mxu0 0
      %2660 = vmatprep.subr.bf16.mxu0 0
      %2661 = vmatpush1.bf16.msra.mxu0 0
      %2662 = vmatprep.subr.bf16.mxu0 0
      %2663 = vmatpush1.bf16.msra.mxu0 0
      %2664 = vmatprep.subr.bf16.mxu0 0
      %2665 = vmatpush1.bf16.msra.mxu0 0
      %2666 = vmatprep.subr.bf16.mxu0 0
      %2667 = vmatpush1.bf16.msra.mxu0 0
      %2668 = vmatprep.subr.bf16.mxu0 0
      %2669 = vmatpush1.bf16.msra.mxu0 0
      %2670 = vmatprep.subr.bf16.mxu0 0
      %2671 = vmatpush1.bf16.msra.mxu0 0
      %2672 = vmatprep.subr.bf16.mxu0 0
      %2673 = vmatpush1.bf16.msra.mxu0 0
      %2674 = vmatprep.subr.bf16.mxu0 0
      %2675 = vmatpush1.bf16.msra.mxu0 0
      %2676 = vmatprep.subr.bf16.mxu0 0
      %2677 = vmatpush1.bf16.msra.mxu0 0
      %2678 = vmatprep.subr.bf16.mxu0 0
      %2679 = vmatpush1.bf16.msra.mxu0 0
      %2680 = vmatprep.subr.bf16.mxu0 0
      %2681 = vmatpush1.bf16.msra.mxu0 0
      %2682 = vmatprep.subr.bf16.mxu0 0
      %2683 = vmatpush1.bf16.msra.mxu0 0
      %2684 = vmatprep.subr.bf16.mxu0 0
      %2685 = vmatpush1.bf16.msra.mxu0 0
      %2686 = vmatprep.subr.bf16.mxu0 0
      %2687 = vmatpush1.bf16.msra.mxu0 0
      %2688 = vmatprep.mubr.bf16.mxu0 0
      %2689 = vmatmul.mubr.bf16.gmra.mrb[0].mxu0 %v2525
      %v2690 = vpop.f32.mrb[0].mxu0
      %v2691 = vadd.f32 %v2648, %v2690
      %v2692 = vpop.f32.mrb[0].mxu0
      %v2693 = vadd.f32 %v2650, %v2692
      %v2694 = vpop.f32.mrb[0].mxu0
      %v2695 = vadd.f32 %v2652, %v2694
      %v2696 = vpop.f32.mrb[0].mxu0
      %v2697 = vadd.f32 %v2654, %v2696
      %2698 = vdwg.mxu0
      %v2699 = vld [vmem:[%s2] sm:$0xff]
      %v2700 = vld [vmem:[%s2 + $0x8] sm:$0xff]
      %2702 = vset.pattern.permute.xlu0 0
      %2703 = vperm.xlu0 %2702, %v2699
      %v2704 = vpop.permute.xlu0 %2703
      %2707 = vset.pattern.permute.xlu0 0
      %2708 = vperm.xlu0 %2707, %v2700
      %v2709 = vpop.permute.xlu0 %2708
      %v2711 = vmul.f32 %v2691, %v2704
      %v2712 = vmul.f32 %v2693, %v2704
      %v2713 = vmul.f32 %v2695, %v2709
      %v2714 = vmul.f32 %v2697, %v2709
      %v2715 = vld [vmem:[%s3] sm:$0xff]
      %v2716 = vld [vmem:[%s3 + $0x8] sm:$0xff]
      %2718 = vset.pattern.permute.xlu0 0
      %2719 = vperm.xlu0 %2718, %v2715
      %v2720 = vpop.permute.xlu0 %2719
      %2723 = vset.pattern.permute.xlu0 0
      %2724 = vperm.xlu0 %2723, %v2716
      %v2725 = vpop.permute.xlu0 %2724
      %v2727 = vadd.f32 %v2711, %v2720
      %v2728 = vadd.f32 %v2712, %v2720
      %v2729 = vadd.f32 %v2713, %v2725
      %v2730 = vadd.f32 %v2714, %v2725
      %v2731 = vmax.f32 %v2727, 0.0
      %v2732 = vmax.f32 %v2728, 0.0
      %v2733 = vmax.f32 %v2729, 0.0
      %v2734 = vmax.f32 %v2730, 0.0
      %v2735 = vld [vmem:[%s4] sm:$0xf]
      %v2736 = vld [vmem:[%s4 + $0x4] sm:$0xf]
      %v2737 = vpack.c.bf16 %v2733, %v2731
      %v2738 = vpack.c.bf16 %v2734, %v2732
      %v2741 = vunpack.c.l.b16 %v2735
      %v2742 = vunpack.c.l.b16 %v2736
      %v2743 = vpack.c.b16 %v2742, %v2741
      %v2745 = vsel %vm2523, %v2743, 0
      %2747 = vmatprep.subr.bf16.mxu0 %v2738
      %2748 = vmatpush1.bf16.msra.mxu0 %v2737
      %2749 = vmatprep.subr.bf16.mxu0 0
      %2750 = vmatpush1.bf16.msra.mxu0 0
      %2751 = vmatprep.subr.bf16.mxu0 0
      %2752 = vmatpush1.bf16.msra.mxu0 0
      %2753 = vmatprep.subr.bf16.mxu0 0
      %2754 = vmatpush1.bf16.msra.mxu0 0
      %2755 = vmatprep.subr.bf16.mxu0 0
      %2756 = vmatpush1.bf16.msra.mxu0 0
      %2757 = vmatprep.subr.bf16.mxu0 0
      %2758 = vmatpush1.bf16.msra.mxu0 0
      %2759 = vmatprep.subr.bf16.mxu0 0
      %2760 = vmatpush1.bf16.msra.mxu0 0
      %2761 = vmatprep.subr.bf16.mxu0 0
      %2762 = vmatpush1.bf16.msra.mxu0 0
      %2763 = vmatprep.subr.bf16.mxu0 0
      %2764 = vmatpush1.bf16.msra.mxu0 0
      %2765 = vmatprep.subr.bf16.mxu0 0
      %2766 = vmatpush1.bf16.msra.mxu0 0
      %2767 = vmatprep.subr.bf16.mxu0 0
      %2768 = vmatpush1.bf16.msra.mxu0 0
      %2769 = vmatprep.subr.bf16.mxu0 0
      %2770 = vmatpush1.bf16.msra.mxu0 0
      %2771 = vmatprep.subr.bf16.mxu0 0
      %2772 = vmatpush1.bf16.msra.mxu0 0
      %2773 = vmatprep.subr.bf16.mxu0 0
      %2774 = vmatpush1.bf16.msra.mxu0 0
      %2775 = vmatprep.subr.bf16.mxu0 0
      %2776 = vmatpush1.bf16.msra.mxu0 0
      %2777 = vmatprep.subr.bf16.mxu0 0
      %2778 = vmatpush1.bf16.msra.mxu0 0
      %2779 = vmatprep.mubr.bf16.mxu0 0
      %2780 = vmatmul.mubr.bf16.gmra.mrb[0].mxu0 %v2745
      %v2781 = vpop.f32.mrb[0].mxu0
      %v2782 = vadd.f32 0.0, %v2781
      %v2783 = vpop.f32.mrb[0].mxu0
      %v2784 = vadd.f32 0.0, %v2783
      %v2785 = vpop.f32.mrb[0].mxu0
      %v2786 = vadd.f32 0.0, %v2785
      %v2787 = vpop.f32.mrb[0].mxu0
      %v2788 = vadd.f32 0.0, %v2787
      %2789 = vdwg.mxu0
      %v2790 = vld [vmem:[%s5] sm:$0xff]
      %v2791 = vld [vmem:[%s5 + $0x8] sm:$0xff]
      %2793 = vset.pattern.permute.xlu0 0
      %2794 = vperm.xlu0 %2793, %v2790
      %v2795 = vpop.permute.xlu0 %2794
      %2798 = vset.pattern.permute.xlu0 0
      %2799 = vperm.xlu0 %2798, %v2791
      %v2800 = vpop.permute.xlu0 %2799
      %v2802 = vmul.f32 %v2782, %v2795
      %v2803 = vmul.f32 %v2784, %v2795
      %v2804 = vmul.f32 %v2786, %v2800
      %v2805 = vmul.f32 %v2788, %v2800
      %v2806 = vld [vmem:[%s6] sm:$0xff]
      %v2807 = vld [vmem:[%s6 + $0x8] sm:$0xff]
      %2809 = vset.pattern.permute.xlu0 0
      %2810 = vperm.xlu0 %2809, %v2806
      %v2811 = vpop.permute.xlu0 %2810
      %2814 = vset.pattern.permute.xlu0 0
      %2815 = vperm.xlu0 %2814, %v2807
      %v2816 = vpop.permute.xlu0 %2815
      %v2818 = vadd.f32 %v2802, %v2811
      %v2819 = vadd.f32 %v2803, %v2811
      %v2820 = vadd.f32 %v2804, %v2816
      %v2821 = vadd.f32 %v2805, %v2816
      %v2822 = vmax.f32 %v2818, 0.0
      %v2823 = vmax.f32 %v2819, 0.0
      %v2824 = vmax.f32 %v2820, 0.0
      %v2825 = vmax.f32 %v2821, 0.0
      %v2826 = vld [vmem:[%s7] sm:$0xf]
      %v2827 = vld [vmem:[%s7 + $0x4] sm:$0xf]
      %v2828 = vpack.c.bf16 %v390, %v388
      %v2829 = vpack.c.bf16 %v391, %v389
      %v2830 = vld [vmem:[%s8] sm:$0xf]
      %v2831 = vld [vmem:[%s8 + $0x4] sm:$0xf]
      %v2832 = vpack.c.bf16 %v2824, %v2822
      %v2833 = vpack.c.bf16 %v2825, %v2823
      %v2836 = vunpack.c.l.b16 %v2830
      %v2837 = vunpack.c.l.b16 %v2831
      %v2838 = vpack.c.b16 %v2837, %v2836
      %v2840 = vsel %vm2523, %v2838, 0
      %2842 = vmatprep.subr.bf16.mxu0 %v2833
      %2843 = vmatpush1.bf16.msra.mxu0 %v2832
      %2844 = vmatprep.subr.bf16.mxu0 0
      %2845 = vmatpush1.bf16.msra.mxu0 0
      %2846 = vmatprep.subr.bf16.mxu0 0
      %2847 = vmatpush1.bf16.msra.mxu0 0
      %2848 = vmatprep.subr.bf16.mxu0 0
      %2849 = vmatpush1.bf16.msra.mxu0 0
      %2850 = vmatprep.subr.bf16.mxu0 0
      %2851 = vmatpush1.bf16.msra.mxu0 0
      %2852 = vmatprep.subr.bf16.mxu0 0
      %2853 = vmatpush1.bf16.msra.mxu0 0
      %2854 = vmatprep.subr.bf16.mxu0 0
      %2855 = vmatpush1.bf16.msra.mxu0 0
      %2856 = vmatprep.subr.bf16.mxu0 0
      %2857 = vmatpush1.bf16.msra.mxu0 0
      %2858 = vmatprep.subr.bf16.mxu0 0
      %2859 = vmatpush1.bf16.msra.mxu0 0
      %2860 = vmatprep.subr.bf16.mxu0 0
      %2861 = vmatpush1.bf16.msra.mxu0 0
      %2862 = vmatprep.subr.bf16.mxu0 0
      %2863 = vmatpush1.bf16.msra.mxu0 0
      %2864 = vmatprep.subr.bf16.mxu0 0
      %2865 = vmatpush1.bf16.msra.mxu0 0
      %2866 = vmatprep.subr.bf16.mxu0 0
      %2867 = vmatpush1.bf16.msra.mxu0 0
      %2868 = vmatprep.subr.bf16.mxu0 0
      %2869 = vmatpush1.bf16.msra.mxu0 0
      %2870 = vmatprep.subr.bf16.mxu0 0
      %2871 = vmatpush1.bf16.msra.mxu0 0
      %2872 = vmatprep.subr.bf16.mxu0 0
      %2873 = vmatpush1.bf16.msra.mxu0 0
      %2874 = vmatprep.mubr.bf16.mxu0 0
      %2875 = vmatmul.mubr.bf16.gmra.mrb[0].mxu0 %v2840
      %v2876 = vpop.f32.mrb[0].mxu0
      %v2877 = vadd.f32 0.0, %v2876
      %v2878 = vpop.f32.mrb[0].mxu0
      %v2879 = vadd.f32 0.0, %v2878
      %v2880 = vpop.f32.mrb[0].mxu0
      %v2881 = vadd.f32 0.0, %v2880
      %v2882 = vpop.f32.mrb[0].mxu0
      %v2883 = vadd.f32 0.0, %v2882
      %2884 = vdwg.mxu0
      %v2887 = vunpack.c.l.b16 %v2826
      %v2888 = vunpack.c.l.b16 %v2827
      %v2889 = vpack.c.b16 %v2888, %v2887
      %v2891 = vsel %vm2523, %v2889, 0
      %2893 = vmatprep.subr.bf16.mxu0 %v2829
      %2894 = vmatpush1.bf16.msra.mxu0 %v2828
      %2895 = vmatprep.subr.bf16.mxu0 0
      %2896 = vmatpush1.bf16.msra.mxu0 0
      %2897 = vmatprep.subr.bf16.mxu0 0
      %2898 = vmatpush1.bf16.msra.mxu0 0
      %2899 = vmatprep.subr.bf16.mxu0 0
      %2900 = vmatpush1.bf16.msra.mxu0 0
      %2901 = vmatprep.subr.bf16.mxu0 0
      %2902 = vmatpush1.bf16.msra.mxu0 0
      %2903 = vmatprep.subr.bf16.mxu0 0
      %2904 = vmatpush1.bf16.msra.mxu0 0
      %2905 = vmatprep.subr.bf16.mxu0 0
      %2906 = vmatpush1.bf16.msra.mxu0 0
      %2907 = vmatprep.subr.bf16.mxu0 0
      %2908 = vmatpush1.bf16.msra.mxu0 0
      %2909 = vmatprep.subr.bf16.mxu0 0
      %2910 = vmatpush1.bf16.msra.mxu0 0
      %2911 = vmatprep.subr.bf16.mxu0 0
      %2912 = vmatpush1.bf16.msra.mxu0 0
      %2913 = vmatprep.subr.bf16.mxu0 0
      %2914 = vmatpush1.bf16.msra.mxu0 0
      %2915 = vmatprep.subr.bf16.mxu0 0
      %2916 = vmatpush1.bf16.msra.mxu0 0
      %2917 = vmatprep.subr.bf16.mxu0 0
      %2918 = vmatpush1.bf16.msra.mxu0 0
      %2919 = vmatprep.subr.bf16.mxu0 0
      %2920 = vmatpush1.bf16.msra.mxu0 0
      %2921 = vmatprep.subr.bf16.mxu0 0
      %2922 = vmatpush1.bf16.msra.mxu0 0
      %2923 = vmatprep.subr.bf16.mxu0 0
      %2924 = vmatpush1.bf16.msra.mxu0 0
      %2925 = vmatprep.mubr.bf16.mxu0 0
      %2926 = vmatmul.mubr.bf16.gmra.mrb[0].mxu0 %v2891
      %v2927 = vpop.f32.mrb[0].mxu0
      %v2928 = vadd.f32 %v2877, %v2927
      %v2929 = vpop.f32.mrb[0].mxu0
      %v2930 = vadd.f32 %v2879, %v2929
      %v2931 = vpop.f32.mrb[0].mxu0
      %v2932 = vadd.f32 %v2881, %v2931
      %v2933 = vpop.f32.mrb[0].mxu0
      %v2934 = vadd.f32 %v2883, %v2933
      %2935 = vdwg.mxu0
      %v2936 = vld [vmem:[%s9] sm:$0xff]
      %v2937 = vld [vmem:[%s9 + $0x8] sm:$0xff]
      %2939 = vset.pattern.permute.xlu0 0
      %2940 = vperm.xlu0 %2939, %v2936
      %v2941 = vpop.permute.xlu0 %2940
      %2944 = vset.pattern.permute.xlu0 0
      %2945 = vperm.xlu0 %2944, %v2937
      %v2946 = vpop.permute.xlu0 %2945
      %v2948 = vmul.f32 %v2928, %v2941
      %v2949 = vmul.f32 %v2930, %v2941
      %v2950 = vmul.f32 %v2932, %v2946
      %v2951 = vmul.f32 %v2934, %v2946
      %v2952 = vld [vmem:[%s10] sm:$0xff]
      %v2953 = vld [vmem:[%s10 + $0x8] sm:$0xff]
      %2955 = vset.pattern.permute.xlu0 0
      %2956 = vperm.xlu0 %2955, %v2952
      %v2957 = vpop.permute.xlu0 %2956
      %2960 = vset.pattern.permute.xlu0 0
      %2961 = vperm.xlu0 %2960, %v2953
      %v2962 = vpop.permute.xlu0 %2961
      %v2964 = vadd.f32 %v2948, %v2957
      %v2965 = vadd.f32 %v2949, %v2957
      %v2966 = vadd.f32 %v2950, %v2962
      %v2967 = vadd.f32 %v2951, %v2962
      %v2968 = vmax.f32 %v2964, 0.0
      %v2969 = vmax.f32 %v2965, 0.0
      %v2970 = vmax.f32 %v2966, 0.0
      %v2971 = vmax.f32 %v2967, 0.0
      %2972 = vst [vmem:[%s386] sm:$0xff] %v2968
      %2973 = vst [vmem:[%s386 + $0x8] sm:$0xff] %v2969
      %2974 = vst [vmem:[%s386 + $0x10] sm:$0xff] %v2970
      %2975 = vst [vmem:[%s386 + $0x18] sm:$0xff] %v2971
      %p2976 = scmp.lt.s32.totalorder %s22, 1
      %s2977 = scalar_select %p2976, %s22, 1
      %s2978 = smul.addr %s2977, 4
      %s2979 = smul.addr %s2978, 8
      %s2980 = scalar_lea.vmem %s11, %s2979
      // Predicated region
      $region65: #{multiscale_pyramid_forward.1} parent=63 // pred_check
        %p2981 = pneg %p276
      $region66: #{multiscale_pyramid_forward.1} parent=63 // pred_check_branch
        %2983 = sbr.rel (%p2981) target = $region68
      $region67: #{multiscale_pyramid_forward.1} parent=63 // pred_region
        _
      $region68: #{multiscale_pyramid_forward.1} parent=63 // pred_fallthru
        _
    $region64: #{multiscale_pyramid_forward.1} parent=5 // pred_fallthru
      _
    %p2984 = scmp.le.s32.totalorder 2, %s17
    // Predicated region
    $region69: #{multiscale_pyramid_forward.1} parent=5 // pred_check
      %p2985 = pneg %p2984
    $region70: #{multiscale_pyramid_forward.1} parent=5 // pred_check_branch
      %2987 = sbr.rel (%p2985) target = $region72
    $region71: #{multiscale_pyramid_forward.1} parent=5 // pred_region
      %s2988 = ssub.s32 %s17, 2
      // Predicated region
      $region73: #{multiscale_pyramid_forward.1} parent=71 // pred_check
        %p2989 = pneg %p282
      $region74: #{multiscale_pyramid_forward.1} parent=71 // pred_check_branch
        %2991 = sbr.rel (%p2989) target = $region76
      $region75: #{multiscale_pyramid_forward.1} parent=71 // pred_region
        %p2992 = scmp.lt.s32.totalorder %s23, 1
        %s2993 = scalar_select %p2992, %s23, 1
        %s2994 = smul.addr %s2993, 4
        %s2995 = smul.addr %s2994, 8
        %s2996 = scalar_lea.vmem %s11, %s2995
      $region76: #{multiscale_pyramid_forward.1} parent=71 // pred_fallthru
        _
    $region72: #{multiscale_pyramid_forward.1} parent=5 // pred_fallthru
      _
  $region6: #{multiscale_pyramid_forward.1} parent=0 // loop_footer
    %s21 = sadd.s32 1, %s17
  $region7: #{multiscale_pyramid_forward.1} parent=0 // loop_footer_branch
    %16 = sbr.rel target = $region3
  $region8: #{multiscale_pyramid_forward.1} parent=0 // loop_exit
    _

</llo_original>
